<compile_context>
chip_gen: v5e
topology: v5e:2x2
jax: 0.10.0
libtpu: 0.0.40
codegen_flags: <defaults>
</compile_context>

<pallas_src>
import jax
import jax.numpy as jnp
from jax.experimental import pallas as pl
from jax.experimental.pallas import tpu as pltpu


# ---------------------------------------------------------------------------
# Kernels
# ---------------------------------------------------------------------------

def _prelu(x, a):
    # PyTorch nn.PReLU() with a single shared slope `a` (shape (1,1), broadcast).
    return jnp.where(x >= 0, x, x * a)


def _conv_prelu_pool_kernel(p00_ref, p01_ref, p10_ref, p11_ref,
                            w_ref, b_ref, a_ref, o_ref):
    """Fused conv (im2col matmul) + bias + PReLU + 2x2/2 max-pool.

    p??_ref : (tn, K)     im2col patches, one per pre-pool position
                          (rows = batch*pooled_h*pooled_w, K = C_in*kH*kW)
    w_ref   : (K, C_out)  conv weight flattened (ci, ky, kx)-major
    b_ref   : (1, C_out)  bias
    a_ref   : (1, 1)      PReLU slope
    o_ref   : (tn, C_out) pooled activations
    """
    w = w_ref[...]
    b = b_ref[...]
    a = a_ref[...]

    def branch(p_ref):
        y = jnp.dot(p_ref[...], w, preferred_element_type=jnp.float32) + b
        return _prelu(y, a)   # PReLU before max == PyTorch (PReLU, then MaxPool)

    out = jnp.maximum(jnp.maximum(branch(p00_ref), branch(p01_ref)),
                      jnp.maximum(branch(p10_ref), branch(p11_ref)))
    o_ref[...] = out.astype(o_ref.dtype)


def _fc_head_kernel(x_ref, w1_ref, b1_ref, a1_ref, w2_ref, b2_ref, a2_ref,
                    w3_ref, b3_ref, o_ref):
    """Fused FC head: Linear -> PReLU -> Linear -> PReLU -> Linear -> L2 norm."""
    h = jnp.dot(x_ref[...], w1_ref[...], preferred_element_type=jnp.float32)
    h = _prelu(h + b1_ref[...], a1_ref[...])
    h = jnp.dot(h, w2_ref[...], preferred_element_type=jnp.float32)
    h = _prelu(h + b2_ref[...], a2_ref[...])
    y = jnp.dot(h, w3_ref[...], preferred_element_type=jnp.float32) + b3_ref[...]
    # output /= output.pow(2).sum(1, keepdim=True).sqrt()
    norm = jnp.sqrt(jnp.sum(y * y, axis=1, keepdims=True))
    o_ref[...] = (y / norm).astype(o_ref.dtype)


# ---------------------------------------------------------------------------
# pallas_call wrappers (row-tiled grid, weights resident across steps)
# ---------------------------------------------------------------------------

_VMEM_LIMIT = 32 * 1024 * 1024


def _row_tile(n, max_tile=512):
    # Whole array for small inputs (single grid step); 8-aligned tiles otherwise.
    return n if n <= max_tile else max_tile


def _conv_prelu_pool(groups, w, b, a):
    n, k = groups[0].shape
    c_out = w.shape[1]
    tn = _row_tile(n)
    row_spec = pl.BlockSpec((tn, k), lambda i: (i, 0))

    def fixed(shape):
        return pl.BlockSpec(shape, lambda i: (0, 0))

    flops = 4 * (2 * n * k * c_out + 2 * n * c_out) + 3 * n * c_out
    bytes_accessed = 4 * (4 * n * k + k * c_out + c_out + 1 + n * c_out)
    return pl.pallas_call(
        _conv_prelu_pool_kernel,
        out_shape=jax.ShapeDtypeStruct((n, c_out), jnp.float32),
        grid_spec=pltpu.PrefetchScalarGridSpec(
            num_scalar_prefetch=0,
            grid=(pl.cdiv(n, tn),),
            in_specs=[row_spec, row_spec, row_spec, row_spec,
                      fixed((k, c_out)), fixed((1, c_out)), fixed((1, 1))],
            out_specs=pl.BlockSpec((tn, c_out), lambda i: (i, 0)),
        ),
        compiler_params=pltpu.CompilerParams(
            dimension_semantics=("parallel",),
            vmem_limit_bytes=_VMEM_LIMIT,
        ),
        cost_estimate=pl.CostEstimate(flops=flops, transcendentals=0,
                                      bytes_accessed=bytes_accessed),
    )(groups[0], groups[1], groups[2], groups[3], w, b, a)


def _fc_head(x, p):
    b_rows, d_in = x.shape
    h1 = p["fw1"].shape[1]
    h2 = p["fw2"].shape[1]
    e = p["fw3"].shape[1]
    tb = _row_tile(b_rows)

    def fixed(shape):
        return pl.BlockSpec(shape, lambda i: (0, 0))

    flops = 2 * b_rows * (d_in * h1 + h1 * h2 + h2 * e) + 6 * b_rows * (h1 + h2)
    bytes_accessed = 4 * (b_rows * d_in + d_in * h1 + h1 * h2 + h2 * e
                          + h1 + h2 + e + 2 + b_rows * e)
    return pl.pallas_call(
        _fc_head_kernel,
        out_shape=jax.ShapeDtypeStruct((b_rows, e), jnp.float32),
        grid_spec=pltpu.PrefetchScalarGridSpec(
            num_scalar_prefetch=0,
            grid=(pl.cdiv(b_rows, tb),),
            in_specs=[pl.BlockSpec((tb, d_in), lambda i: (i, 0)),
                      fixed((d_in, h1)), fixed((1, h1)), fixed((1, 1)),
                      fixed((h1, h2)), fixed((1, h2)), fixed((1, 1)),
                      fixed((h2, e)), fixed((1, e))],
            out_specs=pl.BlockSpec((tb, e), lambda i: (i, 0)),
        ),
        compiler_params=pltpu.CompilerParams(
            dimension_semantics=("parallel",),
            vmem_limit_bytes=_VMEM_LIMIT,
        ),
        cost_estimate=pl.CostEstimate(flops=flops, transcendentals=b_rows,
                                      bytes_accessed=bytes_accessed),
    )(x, p["fw1"], p["fb1"], p["fa1"], p["fw2"], p["fb2"], p["fa2"],
      p["fw3"], p["fb3"])


# ---------------------------------------------------------------------------
# Host-side data movement (im2col) + full forward
# ---------------------------------------------------------------------------

def _im2col_pool_groups(x_nhwc, ksize):
    """Four im2col matrices, one per 2x2 max-pool position.

    x_nhwc: (B, H, W, C). Conv is stride-1 VALID, followed by 2x2/2 max-pool.
    Each returned matrix has shape (B*ph*pw, C*ksize*ksize) with per-patch
    feature order (c, ky, kx), matching the flattened conv weights.
    """
    b, h, w, c = x_nhwc.shape
    oh, ow = h - ksize + 1, w - ksize + 1
    ph, pw = oh // 2, ow // 2
    k = c * ksize * ksize
    cols = [x_nhwc[:, ky:ky + oh, kx:kx + ow, :]
            for ky in range(ksize) for kx in range(ksize)]
    patches = jnp.stack(cols, axis=-1)          # (B, oh, ow, C, ksize*ksize)
    patches = patches.reshape(b, oh, ow, k)     # feature idx = c*kk + ky*ksize + kx
    groups = []
    for py in range(2):
        for px in range(2):
            g = patches[:, py::2, px::2, :]     # (B, ph, pw, K)
            groups.append(g.reshape(b * ph * pw, k))
    return groups


def prepare_params(p):
    """One-time repack of PyTorch-layout params into the kernel-friendly layout.

    fc1 expects features in NCHW-flatten order (c, y, x); the kernels produce the
    conv-2 pooled output row-major in (y, x, c) order, so permute fw1's rows once
    here instead of transposing activations on every forward pass.
    """
    q = dict(p)
    q["fw1"] = (p["fw1"].reshape(64, 4, 4, 256)
                .transpose(1, 2, 0, 3)
                .reshape(64 * 4 * 4, 256))
    return q


def embedding_net_l2_forward(x, params):
    """EmbeddingNetL2.forward. x: (B, 1, 28, 28) f32 -> (B, 2) L2-normalized.

    `params` must come from `prepare_params` (fw1 rows pre-permuted).
    """
    b = x.shape[0]
    x_nhwc = jnp.transpose(x, (0, 2, 3, 1))                       # (B, 28, 28, 1)

    # Block 1: Conv2d(1, 32, 5) + PReLU + MaxPool2d(2, 2)
    g1 = _im2col_pool_groups(x_nhwc, 5)                           # 4 x (B*144, 25)
    c1 = _conv_prelu_pool(g1, params["w1"], params["b1"], params["a1"])
    c1 = c1.reshape(b, 12, 12, 32)

    # Block 2: Conv2d(32, 64, 5) + PReLU + MaxPool2d(2, 2)
    g2 = _im2col_pool_groups(c1, 5)                               # 4 x (B*16, 800)
    c2 = _conv_prelu_pool(g2, params["w2"], params["b2"], params["a2"])

    # Row-major reshape gives (y, x, c)-ordered features; fw1 rows were permuted
    # in prepare_params so no activation transpose is needed here.
    feat = c2.reshape(b, 64 * 4 * 4)                              # (B, 1024)

    # FC head + row-wise L2 normalization (single fused kernel)
    return _fc_head(feat, params)


def get_embedding(x, params):
    return embedding_net_l2_forward(x, params)


# ---------------------------------------------------------------------------
# Parameters + plain-JAX reference (faithful PyTorch port)
# ---------------------------------------------------------------------------

def init_params(key):
    ks = jax.random.split(key, 10)

    def w(k, fan_in, shape):
        return jax.random.normal(k, shape, jnp.float32) / jnp.sqrt(jnp.float32(fan_in))

    def bias(k, n):
        return 0.1 * jax.random.normal(k, (1, n), jnp.float32)

    return {
        # conv1: weight flattened as (ky*5 + kx, c_out); c_in = 1
        "w1": w(ks[0], 25, (25, 32)), "b1": bias(ks[1], 32),
        "a1": jnp.full((1, 1), 0.25, jnp.float32),
        # conv2: weight flattened as (ci*25 + ky*5 + kx, c_out)
        "w2": w(ks[2], 800, (800, 64)), "b2": bias(ks[3], 64),
        "a2": jnp.full((1, 1), 0.15, jnp.float32),
        # fc weights in PyTorch (NCHW-flatten) row order
        "fw1": w(ks[4], 1024, (1024, 256)), "fb1": bias(ks[5], 256),
        "fa1": jnp.full((1, 1), 0.30, jnp.float32),
        "fw2": w(ks[6], 256, (256, 256)), "fb2": bias(ks[7], 256),
        "fa2": jnp.full((1, 1), 0.05, jnp.float32),
        "fw3": w(ks[8], 256, (256, 2)), "fb3": bias(ks[9], 2),
    }


def reference_forward(x, p):
    """Plain-JAX port of the PyTorch module (f32-precision conv/matmul)."""
    hi = jax.lax.Precision.HIGHEST

    def prelu(v, a):
        return jnp.where(v >= 0, v, a * v)

    def maxpool2(v):  # NCHW, 2x2 window, stride 2
        return jax.lax.reduce_window(v, -jnp.inf, jax.lax.max,
                                     (1, 1, 2, 2), (1, 1, 2, 2), "VALID")

    w1 = jnp.transpose(p["w1"].reshape(5, 5, 32), (2, 0, 1))[:, None]   # (32,1,5,5)
    w2 = jnp.transpose(p["w2"].reshape(32, 5, 5, 64), (3, 0, 1, 2))     # (64,32,5,5)

    h = jax.lax.conv_general_dilated(x, w1, (1, 1), "VALID",
                                     dimension_numbers=("NCHW", "OIHW", "NCHW"),
                                     precision=hi)
    h = h + p["b1"].reshape(1, 32, 1, 1)
    h = maxpool2(prelu(h, p["a1"].reshape(())))

    h = jax.lax.conv_general_dilated(h, w2, (1, 1), "VALID",
                                     dimension_numbers=("NCHW", "OIHW", "NCHW"),
                                     precision=hi)
    h = h + p["b2"].reshape(1, 64, 1, 1)
    h = maxpool2(prelu(h, p["a2"].reshape(())))

    h = h.reshape(h.shape[0], -1)                     # NCHW flatten == .view(B, -1)
    h = prelu(jnp.dot(h, p["fw1"], precision=hi) + p["fb1"], p["fa1"].reshape(()))
    h = prelu(jnp.dot(h, p["fw2"], precision=hi) + p["fb2"], p["fa2"].reshape(()))
    y = jnp.dot(h, p["fw3"], precision=hi) + p["fb3"]
    return y / jnp.sqrt(jnp.sum(y * y, axis=1, keepdims=True))


# ---------------------------------------------------------------------------
# Main
# ---------------------------------------------------------------------------

if __name__ == "__main__":
    B = 2  # small batch; 1x28x28 input is what the fc stack (64*4*4) implies

    key = jax.random.PRNGKey(0)
    kp, kx = jax.random.split(key)
    params = init_params(kp)
    x = jax.random.normal(kx, (B, 1, 28, 28), jnp.float32)

    kernel_params = prepare_params(params)   # one-time weight repack, outside jit
    fwd = jax.jit(embedding_net_l2_forward)
    out = fwd(x, kernel_params)
    jax.block_until_ready(out)

    ref = reference_forward(x, params)
    assert out.shape == (B, 2)
    assert bool(jnp.all(jnp.isfinite(out)))
    assert jnp.allclose(out, ref, atol=3e-2, rtol=3e-2), (out, ref)

    print("KERNEL_OK")
</pallas_src>

<mosaic_0001>
module attributes {stable_mosaic.version = 11 : i64} {
  func.func @_conv_prelu_pool_kernel(%arg0: i32, %arg1: memref<288x25xf32, #tpu.memory_space<vmem>>, %arg2: memref<288x25xf32, #tpu.memory_space<vmem>>, %arg3: memref<288x25xf32, #tpu.memory_space<vmem>>, %arg4: memref<288x25xf32, #tpu.memory_space<vmem>>, %arg5: memref<25x32xf32, #tpu.memory_space<vmem>>, %arg6: memref<1x32xf32, #tpu.memory_space<vmem>>, %arg7: memref<1x1xf32, #tpu.memory_space<vmem>>, %arg8: memref<288x32xf32, #tpu.memory_space<vmem>>) attributes {dimension_semantics = [#tpu.dimension_semantics<parallel>], iteration_bounds = array<i64: 1>, scalar_prefetch = 0 : i64, scratch_operands = 0 : i64, tpu.core_type = #tpu.core_type<tc>, window_params = [{transform_indices = @transform_0, window_bounds = array<i64: 288, 25>}, {transform_indices = @transform_1, window_bounds = array<i64: 288, 25>}, {transform_indices = @transform_2, window_bounds = array<i64: 288, 25>}, {transform_indices = @transform_3, window_bounds = array<i64: 288, 25>}, {pipeline_mode = #tpu.pipeline_mode<synchronous>, transform_indices = @transform_4, window_bounds = array<i64: 25, 32>}, {pipeline_mode = #tpu.pipeline_mode<synchronous>, transform_indices = @transform_5, window_bounds = array<i64: 1, 32>}, {pipeline_mode = #tpu.pipeline_mode<synchronous>, transform_indices = @transform_6, window_bounds = array<i64: 1, 1>}, {transform_indices = @transform_7, window_bounds = array<i64: 288, 32>}]} {
    %c0 = arith.constant 0 : index
    %c0_0 = arith.constant 0 : index
    %0 = vector.load %arg5[%c0, %c0_0] : memref<25x32xf32, #tpu.memory_space<vmem>>, vector<25x32xf32>
    %c0_1 = arith.constant 0 : index
    %c0_2 = arith.constant 0 : index
    %1 = vector.load %arg6[%c0_1, %c0_2] : memref<1x32xf32, #tpu.memory_space<vmem>>, vector<1x32xf32>
    %c0_3 = arith.constant 0 : index
    %c0_4 = arith.constant 0 : index
    %2 = vector.load %arg7[%c0_3, %c0_4] : memref<1x1xf32, #tpu.memory_space<vmem>>, vector<1x1xf32>
    %c0_5 = arith.constant 0 : index
    %c0_6 = arith.constant 0 : index
    %3 = vector.load %arg1[%c0_5, %c0_6] : memref<288x25xf32, #tpu.memory_space<vmem>>, vector<288x25xf32>
    %cst = arith.constant dense<0.000000e+00> : vector<288x32xf32>
    %4 = tpu.matmul %3, %0, %cst {dimension_numbers = #tpu.dot_dimension_numbers<[1], [0], [0], [1], [0, 0, 1, 1], [], []>} : vector<288x25xf32>, vector<25x32xf32>, vector<288x32xf32> -> vector<288x32xf32>
    %5 = vector.broadcast %1 : vector<1x32xf32> to vector<288x32xf32>
    %6 = arith.addf %4, %5 : vector<288x32xf32>
    %cst_7 = arith.constant 0.000000e+00 : f32
    %7 = vector.broadcast %cst_7 : f32 to vector<288x32xf32>
    %8 = arith.cmpf oge, %6, %7 : vector<288x32xf32>
    %9 = vector.broadcast %2 : vector<1x1xf32> to vector<288x32xf32>
    %10 = arith.mulf %6, %9 : vector<288x32xf32>
    %11 = arith.select %8, %6, %10 : vector<288x32xi1>, vector<288x32xf32>
    %c0_8 = arith.constant 0 : index
    %c0_9 = arith.constant 0 : index
    %12 = vector.load %arg2[%c0_8, %c0_9] : memref<288x25xf32, #tpu.memory_space<vmem>>, vector<288x25xf32>
    %cst_10 = arith.constant dense<0.000000e+00> : vector<288x32xf32>
    %13 = tpu.matmul %12, %0, %cst_10 {dimension_numbers = #tpu.dot_dimension_numbers<[1], [0], [0], [1], [0, 0, 1, 1], [], []>} : vector<288x25xf32>, vector<25x32xf32>, vector<288x32xf32> -> vector<288x32xf32>
    %14 = vector.broadcast %1 : vector<1x32xf32> to vector<288x32xf32>
    %15 = arith.addf %13, %14 : vector<288x32xf32>
    %cst_11 = arith.constant 0.000000e+00 : f32
    %16 = vector.broadcast %cst_11 : f32 to vector<288x32xf32>
    %17 = arith.cmpf oge, %15, %16 : vector<288x32xf32>
    %18 = vector.broadcast %2 : vector<1x1xf32> to vector<288x32xf32>
    %19 = arith.mulf %15, %18 : vector<288x32xf32>
    %20 = arith.select %17, %15, %19 : vector<288x32xi1>, vector<288x32xf32>
    %21 = arith.maximumf %11, %20 : vector<288x32xf32>
    %c0_12 = arith.constant 0 : index
    %c0_13 = arith.constant 0 : index
    %22 = vector.load %arg3[%c0_12, %c0_13] : memref<288x25xf32, #tpu.memory_space<vmem>>, vector<288x25xf32>
    %cst_14 = arith.constant dense<0.000000e+00> : vector<288x32xf32>
    %23 = tpu.matmul %22, %0, %cst_14 {dimension_numbers = #tpu.dot_dimension_numbers<[1], [0], [0], [1], [0, 0, 1, 1], [], []>} : vector<288x25xf32>, vector<25x32xf32>, vector<288x32xf32> -> vector<288x32xf32>
    %24 = vector.broadcast %1 : vector<1x32xf32> to vector<288x32xf32>
    %25 = arith.addf %23, %24 : vector<288x32xf32>
    %cst_15 = arith.constant 0.000000e+00 : f32
    %26 = vector.broadcast %cst_15 : f32 to vector<288x32xf32>
    %27 = arith.cmpf oge, %25, %26 : vector<288x32xf32>
    %28 = vector.broadcast %2 : vector<1x1xf32> to vector<288x32xf32>
    %29 = arith.mulf %25, %28 : vector<288x32xf32>
    %30 = arith.select %27, %25, %29 : vector<288x32xi1>, vector<288x32xf32>
    %c0_16 = arith.constant 0 : index
    %c0_17 = arith.constant 0 : index
    %31 = vector.load %arg4[%c0_16, %c0_17] : memref<288x25xf32, #tpu.memory_space<vmem>>, vector<288x25xf32>
    %cst_18 = arith.constant dense<0.000000e+00> : vector<288x32xf32>
    %32 = tpu.matmul %31, %0, %cst_18 {dimension_numbers = #tpu.dot_dimension_numbers<[1], [0], [0], [1], [0, 0, 1, 1], [], []>} : vector<288x25xf32>, vector<25x32xf32>, vector<288x32xf32> -> vector<288x32xf32>
    %33 = vector.broadcast %1 : vector<1x32xf32> to vector<288x32xf32>
    %34 = arith.addf %32, %33 : vector<288x32xf32>
    %cst_19 = arith.constant 0.000000e+00 : f32
    %35 = vector.broadcast %cst_19 : f32 to vector<288x32xf32>
    %36 = arith.cmpf oge, %34, %35 : vector<288x32xf32>
    %37 = vector.broadcast %2 : vector<1x1xf32> to vector<288x32xf32>
    %38 = arith.mulf %34, %37 : vector<288x32xf32>
    %39 = arith.select %36, %34, %38 : vector<288x32xi1>, vector<288x32xf32>
    %40 = arith.maximumf %30, %39 : vector<288x32xf32>
    %41 = arith.maximumf %21, %40 : vector<288x32xf32>
    %c0_20 = arith.constant 0 : index
    %c0_21 = arith.constant 0 : index
    %42 = vector.load %arg8[%c0_20, %c0_21] : memref<288x32xf32, #tpu.memory_space<vmem>>, vector<288x32xf32>
    tpu.vector_store %arg8[%c0_20, %c0_21], %41 {strides = array<i32>} : memref<288x32xf32, #tpu.memory_space<vmem>>, vector<288x32xf32>,
    return
  }
  func.func @transform_0(%arg0: i32) -> (i32, i32) {
    %c0_i32 = arith.constant 0 : i32
    %c0_i32_0 = arith.constant 0 : i32
    return %arg0, %c0_i32 : i32, i32
  }
  func.func @transform_1(%arg0: i32) -> (i32, i32) {
    %c0_i32 = arith.constant 0 : i32
    %c0_i32_0 = arith.constant 0 : i32
    return %arg0, %c0_i32 : i32, i32
  }
  func.func @transform_2(%arg0: i32) -> (i32, i32) {
    %c0_i32 = arith.constant 0 : i32
    %c0_i32_0 = arith.constant 0 : i32
    return %arg0, %c0_i32 : i32, i32
  }
  func.func @transform_3(%arg0: i32) -> (i32, i32) {
    %c0_i32 = arith.constant 0 : i32
    %c0_i32_0 = arith.constant 0 : i32
    return %arg0, %c0_i32 : i32, i32
  }
  func.func @transform_4(%arg0: i32) -> (i32, i32) {
    %c0_i32 = arith.constant 0 : i32
    %c0_i32_0 = arith.constant 0 : i32
    %c0_i32_1 = arith.constant 0 : i32
    return %c0_i32, %c0_i32_0 : i32, i32
  }
  func.func @transform_5(%arg0: i32) -> (i32, i32) {
    %c0_i32 = arith.constant 0 : i32
    %c0_i32_0 = arith.constant 0 : i32
    %c0_i32_1 = arith.constant 0 : i32
    return %c0_i32, %c0_i32_0 : i32, i32
  }
  func.func @transform_6(%arg0: i32) -> (i32, i32) {
    %c0_i32 = arith.constant 0 : i32
    %c0_i32_0 = arith.constant 0 : i32
    %c0_i32_1 = arith.constant 0 : i32
    return %c0_i32, %c0_i32_0 : i32, i32
  }
  func.func @transform_7(%arg0: i32) -> (i32, i32) {
    %c0_i32 = arith.constant 0 : i32
    %c0_i32_0 = arith.constant 0 : i32
    return %arg0, %c0_i32 : i32, i32
  }
}

module attributes {stable_mosaic.version = 11 : i64} {
  func.func @_conv_prelu_pool_kernel(%arg0: i32, %arg1: memref<32x800xf32, #tpu.memory_space<vmem>>, %arg2: memref<32x800xf32, #tpu.memory_space<vmem>>, %arg3: memref<32x800xf32, #tpu.memory_space<vmem>>, %arg4: memref<32x800xf32, #tpu.memory_space<vmem>>, %arg5: memref<800x64xf32, #tpu.memory_space<vmem>>, %arg6: memref<1x64xf32, #tpu.memory_space<vmem>>, %arg7: memref<1x1xf32, #tpu.memory_space<vmem>>, %arg8: memref<32x64xf32, #tpu.memory_space<vmem>>) attributes {dimension_semantics = [#tpu.dimension_semantics<parallel>], iteration_bounds = array<i64: 1>, scalar_prefetch = 0 : i64, scratch_operands = 0 : i64, tpu.core_type = #tpu.core_type<tc>, window_params = [{transform_indices = @transform_0, window_bounds = array<i64: 32, 800>}, {transform_indices = @transform_1, window_bounds = array<i64: 32, 800>}, {transform_indices = @transform_2, window_bounds = array<i64: 32, 800>}, {transform_indices = @transform_3, window_bounds = array<i64: 32, 800>}, {pipeline_mode = #tpu.pipeline_mode<synchronous>, transform_indices = @transform_4, window_bounds = array<i64: 800, 64>}, {pipeline_mode = #tpu.pipeline_mode<synchronous>, transform_indices = @transform_5, window_bounds = array<i64: 1, 64>}, {pipeline_mode = #tpu.pipeline_mode<synchronous>, transform_indices = @transform_6, window_bounds = array<i64: 1, 1>}, {transform_indices = @transform_7, window_bounds = array<i64: 32, 64>}]} {
    %c0 = arith.constant 0 : index
    %c0_0 = arith.constant 0 : index
    %0 = vector.load %arg5[%c0, %c0_0] : memref<800x64xf32, #tpu.memory_space<vmem>>, vector<800x64xf32>
    %c0_1 = arith.constant 0 : index
    %c0_2 = arith.constant 0 : index
    %1 = vector.load %arg6[%c0_1, %c0_2] : memref<1x64xf32, #tpu.memory_space<vmem>>, vector<1x64xf32>
    %c0_3 = arith.constant 0 : index
    %c0_4 = arith.constant 0 : index
    %2 = vector.load %arg7[%c0_3, %c0_4] : memref<1x1xf32, #tpu.memory_space<vmem>>, vector<1x1xf32>
    %c0_5 = arith.constant 0 : index
    %c0_6 = arith.constant 0 : index
    %3 = vector.load %arg1[%c0_5, %c0_6] : memref<32x800xf32, #tpu.memory_space<vmem>>, vector<32x800xf32>
    %cst = arith.constant dense<0.000000e+00> : vector<32x64xf32>
    %4 = tpu.matmul %3, %0, %cst {dimension_numbers = #tpu.dot_dimension_numbers<[1], [0], [0], [1], [0, 0, 1, 1], [], []>} : vector<32x800xf32>, vector<800x64xf32>, vector<32x64xf32> -> vector<32x64xf32>
    %5 = vector.broadcast %1 : vector<1x64xf32> to vector<32x64xf32>
    %6 = arith.addf %4, %5 : vector<32x64xf32>
    %cst_7 = arith.constant 0.000000e+00 : f32
    %7 = vector.broadcast %cst_7 : f32 to vector<32x64xf32>
    %8 = arith.cmpf oge, %6, %7 : vector<32x64xf32>
    %9 = vector.broadcast %2 : vector<1x1xf32> to vector<32x64xf32>
    %10 = arith.mulf %6, %9 : vector<32x64xf32>
    %11 = arith.select %8, %6, %10 : vector<32x64xi1>, vector<32x64xf32>
    %c0_8 = arith.constant 0 : index
    %c0_9 = arith.constant 0 : index
    %12 = vector.load %arg2[%c0_8, %c0_9] : memref<32x800xf32, #tpu.memory_space<vmem>>, vector<32x800xf32>
    %cst_10 = arith.constant dense<0.000000e+00> : vector<32x64xf32>
    %13 = tpu.matmul %12, %0, %cst_10 {dimension_numbers = #tpu.dot_dimension_numbers<[1], [0], [0], [1], [0, 0, 1, 1], [], []>} : vector<32x800xf32>, vector<800x64xf32>, vector<32x64xf32> -> vector<32x64xf32>
    %14 = vector.broadcast %1 : vector<1x64xf32> to vector<32x64xf32>
    %15 = arith.addf %13, %14 : vector<32x64xf32>
    %cst_11 = arith.constant 0.000000e+00 : f32
    %16 = vector.broadcast %cst_11 : f32 to vector<32x64xf32>
    %17 = arith.cmpf oge, %15, %16 : vector<32x64xf32>
    %18 = vector.broadcast %2 : vector<1x1xf32> to vector<32x64xf32>
    %19 = arith.mulf %15, %18 : vector<32x64xf32>
    %20 = arith.select %17, %15, %19 : vector<32x64xi1>, vector<32x64xf32>
    %21 = arith.maximumf %11, %20 : vector<32x64xf32>
    %c0_12 = arith.constant 0 : index
    %c0_13 = arith.constant 0 : index
    %22 = vector.load %arg3[%c0_12, %c0_13] : memref<32x800xf32, #tpu.memory_space<vmem>>, vector<32x800xf32>
    %cst_14 = arith.constant dense<0.000000e+00> : vector<32x64xf32>
    %23 = tpu.matmul %22, %0, %cst_14 {dimension_numbers = #tpu.dot_dimension_numbers<[1], [0], [0], [1], [0, 0, 1, 1], [], []>} : vector<32x800xf32>, vector<800x64xf32>, vector<32x64xf32> -> vector<32x64xf32>
    %24 = vector.broadcast %1 : vector<1x64xf32> to vector<32x64xf32>
    %25 = arith.addf %23, %24 : vector<32x64xf32>
    %cst_15 = arith.constant 0.000000e+00 : f32
    %26 = vector.broadcast %cst_15 : f32 to vector<32x64xf32>
    %27 = arith.cmpf oge, %25, %26 : vector<32x64xf32>
    %28 = vector.broadcast %2 : vector<1x1xf32> to vector<32x64xf32>
    %29 = arith.mulf %25, %28 : vector<32x64xf32>
    %30 = arith.select %27, %25, %29 : vector<32x64xi1>, vector<32x64xf32>
    %c0_16 = arith.constant 0 : index
    %c0_17 = arith.constant 0 : index
    %31 = vector.load %arg4[%c0_16, %c0_17] : memref<32x800xf32, #tpu.memory_space<vmem>>, vector<32x800xf32>
    %cst_18 = arith.constant dense<0.000000e+00> : vector<32x64xf32>
    %32 = tpu.matmul %31, %0, %cst_18 {dimension_numbers = #tpu.dot_dimension_numbers<[1], [0], [0], [1], [0, 0, 1, 1], [], []>} : vector<32x800xf32>, vector<800x64xf32>, vector<32x64xf32> -> vector<32x64xf32>
    %33 = vector.broadcast %1 : vector<1x64xf32> to vector<32x64xf32>
    %34 = arith.addf %32, %33 : vector<32x64xf32>
    %cst_19 = arith.constant 0.000000e+00 : f32
    %35 = vector.broadcast %cst_19 : f32 to vector<32x64xf32>
    %36 = arith.cmpf oge, %34, %35 : vector<32x64xf32>
    %37 = vector.broadcast %2 : vector<1x1xf32> to vector<32x64xf32>
    %38 = arith.mulf %34, %37 : vector<32x64xf32>
    %39 = arith.select %36, %34, %38 : vector<32x64xi1>, vector<32x64xf32>
    %40 = arith.maximumf %30, %39 : vector<32x64xf32>
    %41 = arith.maximumf %21, %40 : vector<32x64xf32>
    %c0_20 = arith.constant 0 : index
    %c0_21 = arith.constant 0 : index
    %42 = vector.load %arg8[%c0_20, %c0_21] : memref<32x64xf32, #tpu.memory_space<vmem>>, vector<32x64xf32>
    tpu.vector_store %arg8[%c0_20, %c0_21], %41 {strides = array<i32>} : memref<32x64xf32, #tpu.memory_space<vmem>>, vector<32x64xf32>,
    return
  }
  func.func @transform_0(%arg0: i32) -> (i32, i32) {
    %c0_i32 = arith.constant 0 : i32
    %c0_i32_0 = arith.constant 0 : i32
    return %arg0, %c0_i32 : i32, i32
  }
  func.func @transform_1(%arg0: i32) -> (i32, i32) {
    %c0_i32 = arith.constant 0 : i32
    %c0_i32_0 = arith.constant 0 : i32
    return %arg0, %c0_i32 : i32, i32
  }
  func.func @transform_2(%arg0: i32) -> (i32, i32) {
    %c0_i32 = arith.constant 0 : i32
    %c0_i32_0 = arith.constant 0 : i32
    return %arg0, %c0_i32 : i32, i32
  }
  func.func @transform_3(%arg0: i32) -> (i32, i32) {
    %c0_i32 = arith.constant 0 : i32
    %c0_i32_0 = arith.constant 0 : i32
    return %arg0, %c0_i32 : i32, i32
  }
  func.func @transform_4(%arg0: i32) -> (i32, i32) {
    %c0_i32 = arith.constant 0 : i32
    %c0_i32_0 = arith.constant 0 : i32
    %c0_i32_1 = arith.constant 0 : i32
    return %c0_i32, %c0_i32_0 : i32, i32
  }
  func.func @transform_5(%arg0: i32) -> (i32, i32) {
    %c0_i32 = arith.constant 0 : i32
    %c0_i32_0 = arith.constant 0 : i32
    %c0_i32_1 = arith.constant 0 : i32
    return %c0_i32, %c0_i32_0 : i32, i32
  }
  func.func @transform_6(%arg0: i32) -> (i32, i32) {
    %c0_i32 = arith.constant 0 : i32
    %c0_i32_0 = arith.constant 0 : i32
    %c0_i32_1 = arith.constant 0 : i32
    return %c0_i32, %c0_i32_0 : i32, i32
  }
  func.func @transform_7(%arg0: i32) -> (i32, i32) {
    %c0_i32 = arith.constant 0 : i32
    %c0_i32_0 = arith.constant 0 : i32
    return %arg0, %c0_i32 : i32, i32
  }
}

module attributes {stable_mosaic.version = 11 : i64} {
  func.func @_fc_head_kernel(%arg0: i32, %arg1: memref<2x1024xf32, #tpu.memory_space<vmem>>, %arg2: memref<1024x256xf32, #tpu.memory_space<vmem>>, %arg3: memref<1x256xf32, #tpu.memory_space<vmem>>, %arg4: memref<1x1xf32, #tpu.memory_space<vmem>>, %arg5: memref<256x256xf32, #tpu.memory_space<vmem>>, %arg6: memref<1x256xf32, #tpu.memory_space<vmem>>, %arg7: memref<1x1xf32, #tpu.memory_space<vmem>>, %arg8: memref<256x2xf32, #tpu.memory_space<vmem>>, %arg9: memref<1x2xf32, #tpu.memory_space<vmem>>, %arg10: memref<2x2xf32, #tpu.memory_space<vmem>>) attributes {dimension_semantics = [#tpu.dimension_semantics<parallel>], iteration_bounds = array<i64: 1>, scalar_prefetch = 0 : i64, scratch_operands = 0 : i64, tpu.core_type = #tpu.core_type<tc>, window_params = [{transform_indices = @transform_0, window_bounds = array<i64: 2, 1024>}, {pipeline_mode = #tpu.pipeline_mode<synchronous>, transform_indices = @transform_1, window_bounds = array<i64: 1024, 256>}, {pipeline_mode = #tpu.pipeline_mode<synchronous>, transform_indices = @transform_2, window_bounds = array<i64: 1, 256>}, {pipeline_mode = #tpu.pipeline_mode<synchronous>, transform_indices = @transform_3, window_bounds = array<i64: 1, 1>}, {pipeline_mode = #tpu.pipeline_mode<synchronous>, transform_indices = @transform_4, window_bounds = array<i64: 256, 256>}, {pipeline_mode = #tpu.pipeline_mode<synchronous>, transform_indices = @transform_5, window_bounds = array<i64: 1, 256>}, {pipeline_mode = #tpu.pipeline_mode<synchronous>, transform_indices = @transform_6, window_bounds = array<i64: 1, 1>}, {pipeline_mode = #tpu.pipeline_mode<synchronous>, transform_indices = @transform_7, window_bounds = array<i64: 256, 2>}, {pipeline_mode = #tpu.pipeline_mode<synchronous>, transform_indices = @transform_8, window_bounds = array<i64: 1, 2>}, {transform_indices = @transform_9, window_bounds = array<i64: 2, 2>}]} {
    %c0 = arith.constant 0 : index
    %c0_0 = arith.constant 0 : index
    %0 = vector.load %arg1[%c0, %c0_0] : memref<2x1024xf32, #tpu.memory_space<vmem>>, vector<2x1024xf32>
    %c0_1 = arith.constant 0 : index
    %c0_2 = arith.constant 0 : index
    %1 = vector.load %arg2[%c0_1, %c0_2] : memref<1024x256xf32, #tpu.memory_space<vmem>>, vector<1024x256xf32>
    %cst = arith.constant dense<0.000000e+00> : vector<2x256xf32>
    %2 = tpu.matmul %0, %1, %cst {dimension_numbers = #tpu.dot_dimension_numbers<[1], [0], [0], [1], [0, 0, 1, 1], [], []>} : vector<2x1024xf32>, vector<1024x256xf32>, vector<2x256xf32> -> vector<2x256xf32>
    %c0_3 = arith.constant 0 : index
    %c0_4 = arith.constant 0 : index
    %3 = vector.load %arg3[%c0_3, %c0_4] : memref<1x256xf32, #tpu.memory_space<vmem>>, vector<1x256xf32>
    %4 = vector.broadcast %3 : vector<1x256xf32> to vector<2x256xf32>
    %5 = arith.addf %2, %4 : vector<2x256xf32>
    %c0_5 = arith.constant 0 : index
    %c0_6 = arith.constant 0 : index
    %6 = vector.load %arg4[%c0_5, %c0_6] : memref<1x1xf32, #tpu.memory_space<vmem>>, vector<1x1xf32>
    %cst_7 = arith.constant 0.000000e+00 : f32
    %7 = vector.broadcast %cst_7 : f32 to vector<2x256xf32>
    %8 = arith.cmpf oge, %5, %7 : vector<2x256xf32>
    %9 = vector.broadcast %6 : vector<1x1xf32> to vector<2x256xf32>
    %10 = arith.mulf %5, %9 : vector<2x256xf32>
    %11 = arith.select %8, %5, %10 : vector<2x256xi1>, vector<2x256xf32>
    %c0_8 = arith.constant 0 : index
    %c0_9 = arith.constant 0 : index
    %12 = vector.load %arg5[%c0_8, %c0_9] : memref<256x256xf32, #tpu.memory_space<vmem>>, vector<256x256xf32>
    %cst_10 = arith.constant dense<0.000000e+00> : vector<2x256xf32>
    %13 = tpu.matmul %11, %12, %cst_10 {dimension_numbers = #tpu.dot_dimension_numbers<[1], [0], [0], [1], [0, 0, 1, 1], [], []>} : vector<2x256xf32>, vector<256x256xf32>, vector<2x256xf32> -> vector<2x256xf32>
    %c0_11 = arith.constant 0 : index
    %c0_12 = arith.constant 0 : index
    %14 = vector.load %arg6[%c0_11, %c0_12] : memref<1x256xf32, #tpu.memory_space<vmem>>, vector<1x256xf32>
    %15 = vector.broadcast %14 : vector<1x256xf32> to vector<2x256xf32>
    %16 = arith.addf %13, %15 : vector<2x256xf32>
    %c0_13 = arith.constant 0 : index
    %c0_14 = arith.constant 0 : index
    %17 = vector.load %arg7[%c0_13, %c0_14] : memref<1x1xf32, #tpu.memory_space<vmem>>, vector<1x1xf32>
    %cst_15 = arith.constant 0.000000e+00 : f32
    %18 = vector.broadcast %cst_15 : f32 to vector<2x256xf32>
    %19 = arith.cmpf oge, %16, %18 : vector<2x256xf32>
    %20 = vector.broadcast %17 : vector<1x1xf32> to vector<2x256xf32>
    %21 = arith.mulf %16, %20 : vector<2x256xf32>
    %22 = arith.select %19, %16, %21 : vector<2x256xi1>, vector<2x256xf32>
    %c0_16 = arith.constant 0 : index
    %c0_17 = arith.constant 0 : index
    %23 = vector.load %arg8[%c0_16, %c0_17] : memref<256x2xf32, #tpu.memory_space<vmem>>, vector<256x2xf32>
    %cst_18 = arith.constant dense<0.000000e+00> : vector<2x2xf32>
    %24 = tpu.matmul %22, %23, %cst_18 {dimension_numbers = #tpu.dot_dimension_numbers<[1], [0], [0], [1], [0, 0, 1, 1], [], []>} : vector<2x256xf32>, vector<256x2xf32>, vector<2x2xf32> -> vector<2x2xf32>
    %c0_19 = arith.constant 0 : index
    %c0_20 = arith.constant 0 : index
    %25 = vector.load %arg9[%c0_19, %c0_20] : memref<1x2xf32, #tpu.memory_space<vmem>>, vector<1x2xf32>
    %26 = vector.broadcast %25 : vector<1x2xf32> to vector<2x2xf32>
    %27 = arith.addf %24, %26 : vector<2x2xf32>
    %28 = arith.mulf %27, %27 : vector<2x2xf32>
    %cst_21 = arith.constant dense<0.000000e+00> : vector<2xf32>
    %29 = vector.multi_reduction <add>, %28, %cst_21 [1] : vector<2x2xf32> to vector<2xf32>
    %30 = vector.shape_cast %29 : vector<2xf32> to vector<2x1xf32>
    %31 = math.sqrt %30 : vector<2x1xf32>
    %32 = vector.broadcast %31 : vector<2x1xf32> to vector<2x2xf32>
    %33 = arith.divf %27, %32 : vector<2x2xf32>
    %c0_22 = arith.constant 0 : index
    %c0_23 = arith.constant 0 : index
    %34 = vector.load %arg10[%c0_22, %c0_23] : memref<2x2xf32, #tpu.memory_space<vmem>>, vector<2x2xf32>
    tpu.vector_store %arg10[%c0_22, %c0_23], %33 {strides = array<i32>} : memref<2x2xf32, #tpu.memory_space<vmem>>, vector<2x2xf32>,
    return
  }
  func.func @transform_0(%arg0: i32) -> (i32, i32) {
    %c0_i32 = arith.constant 0 : i32
    %c0_i32_0 = arith.constant 0 : i32
    return %arg0, %c0_i32 : i32, i32
  }
  func.func @transform_1(%arg0: i32) -> (i32, i32) {
    %c0_i32 = arith.constant 0 : i32
    %c0_i32_0 = arith.constant 0 : i32
    %c0_i32_1 = arith.constant 0 : i32
    return %c0_i32, %c0_i32_0 : i32, i32
  }
  func.func @transform_2(%arg0: i32) -> (i32, i32) {
    %c0_i32 = arith.constant 0 : i32
    %c0_i32_0 = arith.constant 0 : i32
    %c0_i32_1 = arith.constant 0 : i32
    return %c0_i32, %c0_i32_0 : i32, i32
  }
  func.func @transform_3(%arg0: i32) -> (i32, i32) {
    %c0_i32 = arith.constant 0 : i32
    %c0_i32_0 = arith.constant 0 : i32
    %c0_i32_1 = arith.constant 0 : i32
    return %c0_i32, %c0_i32_0 : i32, i32
  }
  func.func @transform_4(%arg0: i32) -> (i32, i32) {
    %c0_i32 = arith.constant 0 : i32
    %c0_i32_0 = arith.constant 0 : i32
    %c0_i32_1 = arith.constant 0 : i32
    return %c0_i32, %c0_i32_0 : i32, i32
  }
  func.func @transform_5(%arg0: i32) -> (i32, i32) {
    %c0_i32 = arith.constant 0 : i32
    %c0_i32_0 = arith.constant 0 : i32
    %c0_i32_1 = arith.constant 0 : i32
    return %c0_i32, %c0_i32_0 : i32, i32
  }
  func.func @transform_6(%arg0: i32) -> (i32, i32) {
    %c0_i32 = arith.constant 0 : i32
    %c0_i32_0 = arith.constant 0 : i32
    %c0_i32_1 = arith.constant 0 : i32
    return %c0_i32, %c0_i32_0 : i32, i32
  }
  func.func @transform_7(%arg0: i32) -> (i32, i32) {
    %c0_i32 = arith.constant 0 : i32
    %c0_i32_0 = arith.constant 0 : i32
    %c0_i32_1 = arith.constant 0 : i32
    return %c0_i32, %c0_i32_0 : i32, i32
  }
  func.func @transform_8(%arg0: i32) -> (i32, i32) {
    %c0_i32 = arith.constant 0 : i32
    %c0_i32_0 = arith.constant 0 : i32
    %c0_i32_1 = arith.constant 0 : i32
    return %c0_i32, %c0_i32_0 : i32, i32
  }
  func.func @transform_9(%arg0: i32) -> (i32, i32) {
    %c0_i32 = arith.constant 0 : i32
    %c0_i32_0 = arith.constant 0 : i32
    return %arg0, %c0_i32 : i32, i32
  }
}

</mosaic_0001>

<llo_original>
// kernel: embedding_net_l2_forward.3
$region0: #{embedding_net_l2_forward.3}
  #allocation0 [shape = 'u32[]', space=smem, size = 0x4, offset = 0x4, fixed_abs, tag = 'smem constant byte address 0x4 - core index']
  #allocation1 [shape = 'u32[72,128]{1,0:T(1,128)}', space=vmem, size = 0x9000, scoped, tag = 'internal scratch']
  #allocation2 [shape = 'f32[1,1]{1,0:T(1,128)S(1)}', space=vmem, size = 0x200, scoped, tag = 'scoped memory for embedding_net_l2_forward.3']
  %s0 = inlined_call_operand.vmem [shape: f32[288,25], index: 0, kind: input, shape index: {}]
  %s1 = inlined_call_operand.vmem [shape: f32[288,25], index: 1, kind: input, shape index: {}]
  %s2 = inlined_call_operand.vmem [shape: f32[288,25], index: 2, kind: input, shape index: {}]
  %s3 = inlined_call_operand.vmem [shape: f32[288,25], index: 3, kind: input, shape index: {}]
  %s4 = inlined_call_operand.vmem [shape: f32[25,32], index: 4, kind: input, shape index: {}]
  %s5 = inlined_call_operand.vmem [shape: f32[1,32], index: 5, kind: input, shape index: {}]
  %s6 = inlined_call_operand.<no memory space> [shape: f32[1,1], index: 6, kind: input, shape index: {}]
  %s7 = inlined_call_operand.vmem [shape: f32[288,32], index: 7, kind: output, shape index: {}]
  %s8 = sld [smem:[#allocation0]]
  $region38: #{embedding_net_l2_forward.3} parent=0
    _
  %s10 = ssub.s32 1, %s8
  %s11 = scalar_select 0, %s10, %s8
  %v12 = vstv %s6
  %13 = vst [vmem:[#allocation2] sm:$0x1] %v12
  // Predicated region
  $region2: #{embedding_net_l2_forward.3} parent=0 // pred_check
    _
  $region3: #{embedding_net_l2_forward.3} parent=0 // pred_check_branch
    %15 = sbr.rel (0) target = $region5
  $region4: #{embedding_net_l2_forward.3} parent=0 // pred_region
    _
  $region5: #{embedding_net_l2_forward.3} parent=0 // pred_fallthru
    _
  // Predicated region
  $region6: #{embedding_net_l2_forward.3} parent=0 // pred_check
    _
  $region7: #{embedding_net_l2_forward.3} parent=0 // pred_check_branch
    %17 = sbr.rel (0) target = $region9
  $region8: #{embedding_net_l2_forward.3} parent=0 // pred_region
    _
  $region9: #{embedding_net_l2_forward.3} parent=0 // pred_fallthru
    _
  // Predicated region
  $region10: #{embedding_net_l2_forward.3} parent=0 // pred_check
    _
  $region11: #{embedding_net_l2_forward.3} parent=0 // pred_check_branch
    %19 = sbr.rel (0) target = $region13
  $region12: #{embedding_net_l2_forward.3} parent=0 // pred_region
    _
  $region13: #{embedding_net_l2_forward.3} parent=0 // pred_fallthru
    _
  // Predicated region
  $region14: #{embedding_net_l2_forward.3} parent=0 // pred_check
    _
  $region15: #{embedding_net_l2_forward.3} parent=0 // pred_check_branch
    %21 = sbr.rel (0) target = $region17
  $region16: #{embedding_net_l2_forward.3} parent=0 // pred_region
    _
  $region17: #{embedding_net_l2_forward.3} parent=0 // pred_fallthru
    _
  // Predicated region
  $region18: #{embedding_net_l2_forward.3} parent=0 // pred_check
    _
  $region19: #{embedding_net_l2_forward.3} parent=0 // pred_check_branch
    %23 = sbr.rel (0) target = $region21
  $region20: #{embedding_net_l2_forward.3} parent=0 // pred_region
    _
  $region21: #{embedding_net_l2_forward.3} parent=0 // pred_fallthru
    _
  // Predicated region
  $region22: #{embedding_net_l2_forward.3} parent=0 // pred_check
    _
  $region23: #{embedding_net_l2_forward.3} parent=0 // pred_check_branch
    %25 = sbr.rel (0) target = $region25
  $region24: #{embedding_net_l2_forward.3} parent=0 // pred_region
    _
  $region25: #{embedding_net_l2_forward.3} parent=0 // pred_fallthru
    _
  // Predicated region
  $region26: #{embedding_net_l2_forward.3} parent=0 // pred_check
    _
  $region27: #{embedding_net_l2_forward.3} parent=0 // pred_check_branch
    %27 = sbr.rel (0) target = $region29
  $region28: #{embedding_net_l2_forward.3} parent=0 // pred_region
    _
  $region29: #{embedding_net_l2_forward.3} parent=0 // pred_fallthru
    _
  %v28 = vld [vmem:[%s4] sm:$0xff]
  %v29 = vld [vmem:[%s4 + $0x8] sm:$0xff]
  %v30 = vld [vmem:[%s4 + $0x10] sm:$0xff]
  %v31 = vld [vmem:[%s4 + $0x18] sm:$0x1]
  %v32 = vld [vmem:[%s5] sm:$0x1]
  %v33 = vld [vmem:[#allocation2] sm:$0x1]
  %v34 = vld [vmem:[%s0] sm:$0xff]
  %v35 = vld [vmem:[%s0 + $0x8] sm:$0xff]
  %v36 = vld [vmem:[%s0 + $0x10] sm:$0xff]
  %v37 = vld [vmem:[%s0 + $0x18] sm:$0xff]
  %v38 = vld [vmem:[%s0 + $0x20] sm:$0xff]
  %v39 = vld [vmem:[%s0 + $0x28] sm:$0xff]
  %v40 = vld [vmem:[%s0 + $0x30] sm:$0xff]
  %v41 = vld [vmem:[%s0 + $0x38] sm:$0xff]
  %v42 = vld [vmem:[%s0 + $0x40] sm:$0xff]
  %v43 = vld [vmem:[%s0 + $0x48] sm:$0xff]
  %v44 = vld [vmem:[%s0 + $0x50] sm:$0xff]
  %v45 = vld [vmem:[%s0 + $0x58] sm:$0xff]
  %v46 = vld [vmem:[%s0 + $0x60] sm:$0xff]
  %v47 = vld [vmem:[%s0 + $0x68] sm:$0xff]
  %v48 = vld [vmem:[%s0 + $0x70] sm:$0xff]
  %v49 = vld [vmem:[%s0 + $0x78] sm:$0xff]
  %v50 = vld [vmem:[%s0 + $0x80] sm:$0xff]
  %v51 = vld [vmem:[%s0 + $0x88] sm:$0xff]
  %v52 = vld [vmem:[%s0 + $0x90] sm:$0xff]
  %v53 = vld [vmem:[%s0 + $0x98] sm:$0xff]
  %v54 = vld [vmem:[%s0 + $0xa0] sm:$0xff]
  %v55 = vld [vmem:[%s0 + $0xa8] sm:$0xff]
  %v56 = vld [vmem:[%s0 + $0xb0] sm:$0xff]
  %v57 = vld [vmem:[%s0 + $0xb8] sm:$0xff]
  %v58 = vld [vmem:[%s0 + $0xc0] sm:$0xff]
  %v59 = vld [vmem:[%s0 + $0xc8] sm:$0xff]
  %v60 = vld [vmem:[%s0 + $0xd0] sm:$0xff]
  %v61 = vld [vmem:[%s0 + $0xd8] sm:$0xff]
  %v62 = vld [vmem:[%s0 + $0xe0] sm:$0xff]
  %v63 = vld [vmem:[%s0 + $0xe8] sm:$0xff]
  %v64 = vld [vmem:[%s0 + $0xf0] sm:$0xff]
  %v65 = vld [vmem:[%s0 + $0xf8] sm:$0xff]
  %v66 = vld [vmem:[%s0 + $0x100] sm:$0xff]
  %v67 = vld [vmem:[%s0 + $0x108] sm:$0xff]
  %v68 = vld [vmem:[%s0 + $0x110] sm:$0xff]
  %v69 = vld [vmem:[%s0 + $0x118] sm:$0xff]
  %v71 = vperm.slane %v32, 0
  %vm73 = vcmask 203776
  %v75 = vsel %vm73, %v34, 0
  %v78 = vsel %vm73, %v35, 0
  %v81 = vsel %vm73, %v36, 0
  %v84 = vsel %vm73, %v37, 0
  %v87 = vsel %vm73, %v38, 0
  %v90 = vsel %vm73, %v39, 0
  %v93 = vsel %vm73, %v40, 0
  %v96 = vsel %vm73, %v41, 0
  %v99 = vsel %vm73, %v42, 0
  %v102 = vsel %vm73, %v43, 0
  %v105 = vsel %vm73, %v44, 0
  %v108 = vsel %vm73, %v45, 0
  %v111 = vsel %vm73, %v46, 0
  %v114 = vsel %vm73, %v47, 0
  %v117 = vsel %vm73, %v48, 0
  %v120 = vsel %vm73, %v49, 0
  %v123 = vsel %vm73, %v50, 0
  %v126 = vsel %vm73, %v51, 0
  %v129 = vsel %vm73, %v52, 0
  %v132 = vsel %vm73, %v53, 0
  %v135 = vsel %vm73, %v54, 0
  %v138 = vsel %vm73, %v55, 0
  %v141 = vsel %vm73, %v56, 0
  %v144 = vsel %vm73, %v57, 0
  %v147 = vsel %vm73, %v58, 0
  %v150 = vsel %vm73, %v59, 0
  %v153 = vsel %vm73, %v60, 0
  %v156 = vsel %vm73, %v61, 0
  %v159 = vsel %vm73, %v62, 0
  %v162 = vsel %vm73, %v63, 0
  %v165 = vsel %vm73, %v64, 0
  %v168 = vsel %vm73, %v65, 0
  %v171 = vsel %vm73, %v66, 0
  %v174 = vsel %vm73, %v67, 0
  %v177 = vsel %vm73, %v68, 0
  %v180 = vsel %vm73, %v69, 0
  %vm182 = vcmask 1040384
  %v184 = vsel %vm182, %v31, 0
  %186 = vmatpush.msra.mxu0 0.0
  %187 = vmatpush.msra.mxu0 0.0
  %188 = vmatpush.msra.mxu0 0.0
  %189 = vmatpush.msra.mxu0 0.0
  %190 = vmatpush.msra.mxu0 0.0
  %191 = vmatpush.msra.mxu0 0.0
  %192 = vmatpush.msra.mxu0 0.0
  %193 = vmatpush.msra.mxu0 0.0
  %194 = vmatpush.msra.mxu0 0.0
  %195 = vmatpush.msra.mxu0 0.0
  %196 = vmatpush.msra.mxu0 0.0
  %197 = vmatpush.msra.mxu0 0.0
  %198 = vmatpush.msra.mxu0 %v184
  %199 = vmatpush.msra.mxu0 %v30
  %200 = vmatpush.msra.mxu0 %v29
  %201 = vmatpush.msra.mxu0 %v28
  %202 = vmatmul.f32.gmra.mxu0 %v75
  %v203 = vpop.f32.mrf.mxu0
  %v204 = vadd.f32 %v71, %v203
  %205 = vmatmul.f32.gmra.mxu0 %v78
  %v206 = vpop.f32.mrf.mxu0
  %v207 = vadd.f32 %v71, %v206
  %208 = vmatmul.f32.gmra.mxu0 %v81
  %v209 = vpop.f32.mrf.mxu0
  %v210 = vadd.f32 %v71, %v209
  %211 = vmatmul.f32.gmra.mxu0 %v84
  %v212 = vpop.f32.mrf.mxu0
  %v213 = vadd.f32 %v71, %v212
  %214 = vmatmul.f32.gmra.mxu0 %v87
  %v215 = vpop.f32.mrf.mxu0
  %v216 = vadd.f32 %v71, %v215
  %217 = vmatmul.f32.gmra.mxu0 %v90
  %v218 = vpop.f32.mrf.mxu0
  %v219 = vadd.f32 %v71, %v218
  %220 = vmatmul.f32.gmra.mxu0 %v93
  %v221 = vpop.f32.mrf.mxu0
  %v222 = vadd.f32 %v71, %v221
  %223 = vmatmul.f32.gmra.mxu0 %v96
  %v224 = vpop.f32.mrf.mxu0
  %v225 = vadd.f32 %v71, %v224
  %226 = vmatmul.f32.gmra.mxu0 %v99
  %v227 = vpop.f32.mrf.mxu0
  %v228 = vadd.f32 %v71, %v227
  %229 = vmatmul.f32.gmra.mxu0 %v102
  %v230 = vpop.f32.mrf.mxu0
  %v231 = vadd.f32 %v71, %v230
  %232 = vmatmul.f32.gmra.mxu0 %v105
  %v233 = vpop.f32.mrf.mxu0
  %v234 = vadd.f32 %v71, %v233
  %235 = vmatmul.f32.gmra.mxu0 %v108
  %v236 = vpop.f32.mrf.mxu0
  %v237 = vadd.f32 %v71, %v236
  %238 = vmatmul.f32.gmra.mxu0 %v111
  %v239 = vpop.f32.mrf.mxu0
  %v240 = vadd.f32 %v71, %v239
  %241 = vmatmul.f32.gmra.mxu0 %v114
  %v242 = vpop.f32.mrf.mxu0
  %v243 = vadd.f32 %v71, %v242
  %244 = vmatmul.f32.gmra.mxu0 %v117
  %v245 = vpop.f32.mrf.mxu0
  %v246 = vadd.f32 %v71, %v245
  %247 = vmatmul.f32.gmra.mxu0 %v120
  %v248 = vpop.f32.mrf.mxu0
  %v249 = vadd.f32 %v71, %v248
  %250 = vmatmul.f32.gmra.mxu0 %v123
  %v251 = vpop.f32.mrf.mxu0
  %v252 = vadd.f32 %v71, %v251
  %253 = vmatmul.f32.gmra.mxu0 %v126
  %v254 = vpop.f32.mrf.mxu0
  %v255 = vadd.f32 %v71, %v254
  %256 = vmatmul.f32.gmra.mxu0 %v129
  %v257 = vpop.f32.mrf.mxu0
  %v258 = vadd.f32 %v71, %v257
  %259 = vmatmul.f32.gmra.mxu0 %v132
  %v260 = vpop.f32.mrf.mxu0
  %v261 = vadd.f32 %v71, %v260
  %262 = vmatmul.f32.gmra.mxu0 %v135
  %v263 = vpop.f32.mrf.mxu0
  %v264 = vadd.f32 %v71, %v263
  %265 = vmatmul.f32.gmra.mxu0 %v138
  %v266 = vpop.f32.mrf.mxu0
  %v267 = vadd.f32 %v71, %v266
  %268 = vmatmul.f32.gmra.mxu0 %v141
  %v269 = vpop.f32.mrf.mxu0
  %v270 = vadd.f32 %v71, %v269
  %271 = vmatmul.f32.gmra.mxu0 %v144
  %v272 = vpop.f32.mrf.mxu0
  %v273 = vadd.f32 %v71, %v272
  %274 = vmatmul.f32.gmra.mxu0 %v147
  %v275 = vpop.f32.mrf.mxu0
  %v276 = vadd.f32 %v71, %v275
  %277 = vmatmul.f32.gmra.mxu0 %v150
  %v278 = vpop.f32.mrf.mxu0
  %v279 = vadd.f32 %v71, %v278
  %280 = vmatmul.f32.gmra.mxu0 %v153
  %v281 = vpop.f32.mrf.mxu0
  %v282 = vadd.f32 %v71, %v281
  %283 = vmatmul.f32.gmra.mxu0 %v156
  %v284 = vpop.f32.mrf.mxu0
  %v285 = vadd.f32 %v71, %v284
  %286 = vmatmul.f32.gmra.mxu0 %v159
  %v287 = vpop.f32.mrf.mxu0
  %v288 = vadd.f32 %v71, %v287
  %289 = vmatmul.f32.gmra.mxu0 %v162
  %v290 = vpop.f32.mrf.mxu0
  %v291 = vadd.f32 %v71, %v290
  %292 = vmatmul.f32.gmra.mxu0 %v165
  %v293 = vpop.f32.mrf.mxu0
  %v294 = vadd.f32 %v71, %v293
  %295 = vmatmul.f32.gmra.mxu0 %v168
  %v296 = vpop.f32.mrf.mxu0
  %v297 = vadd.f32 %v71, %v296
  %298 = vmatmul.f32.gmra.mxu0 %v171
  %v299 = vpop.f32.mrf.mxu0
  %v300 = vadd.f32 %v71, %v299
  %301 = vmatmul.f32.gmra.mxu0 %v174
  %v302 = vpop.f32.mrf.mxu0
  %v303 = vadd.f32 %v71, %v302
  %304 = vmatmul.f32.gmra.mxu0 %v177
  %v305 = vpop.f32.mrf.mxu0
  %v306 = vadd.f32 %v71, %v305
  %307 = vmatmul.f32.gmra.mxu0 %v180
  %v308 = vpop.f32.mrf.mxu0
  %v309 = vadd.f32 %v71, %v308
  %310 = vdwg.mxu0
  %vm311 = vcmp.ge.f32.partialorder %v204, 0.0
  %vm312 = vcmp.ge.f32.partialorder %v207, 0.0
  %vm313 = vcmp.ge.f32.partialorder %v210, 0.0
  %vm314 = vcmp.ge.f32.partialorder %v213, 0.0
  %vm315 = vcmp.ge.f32.partialorder %v216, 0.0
  %vm316 = vcmp.ge.f32.partialorder %v219, 0.0
  %vm317 = vcmp.ge.f32.partialorder %v222, 0.0
  %vm318 = vcmp.ge.f32.partialorder %v225, 0.0
  %vm319 = vcmp.ge.f32.partialorder %v228, 0.0
  %vm320 = vcmp.ge.f32.partialorder %v231, 0.0
  %vm321 = vcmp.ge.f32.partialorder %v234, 0.0
  %vm322 = vcmp.ge.f32.partialorder %v237, 0.0
  %vm323 = vcmp.ge.f32.partialorder %v240, 0.0
  %vm324 = vcmp.ge.f32.partialorder %v243, 0.0
  %vm325 = vcmp.ge.f32.partialorder %v246, 0.0
  %vm326 = vcmp.ge.f32.partialorder %v249, 0.0
  %vm327 = vcmp.ge.f32.partialorder %v252, 0.0
  %vm328 = vcmp.ge.f32.partialorder %v255, 0.0
  %vm329 = vcmp.ge.f32.partialorder %v258, 0.0
  %vm330 = vcmp.ge.f32.partialorder %v261, 0.0
  %vm331 = vcmp.ge.f32.partialorder %v264, 0.0
  %vm332 = vcmp.ge.f32.partialorder %v267, 0.0
  %vm333 = vcmp.ge.f32.partialorder %v270, 0.0
  %vm334 = vcmp.ge.f32.partialorder %v273, 0.0
  %vm335 = vcmp.ge.f32.partialorder %v276, 0.0
  %vm336 = vcmp.ge.f32.partialorder %v279, 0.0
  %vm337 = vcmp.ge.f32.partialorder %v282, 0.0
  %vm338 = vcmp.ge.f32.partialorder %v285, 0.0
  %vm339 = vcmp.ge.f32.partialorder %v288, 0.0
  %vm340 = vcmp.ge.f32.partialorder %v291, 0.0
  %vm341 = vcmp.ge.f32.partialorder %v294, 0.0
  %vm342 = vcmp.ge.f32.partialorder %v297, 0.0
  %vm343 = vcmp.ge.f32.partialorder %v300, 0.0
  %vm344 = vcmp.ge.f32.partialorder %v303, 0.0
  %vm345 = vcmp.ge.f32.partialorder %v306, 0.0
  %vm346 = vcmp.ge.f32.partialorder %v309, 0.0
  %v348 = vperm.slane %v33, 0
  %349 = vset.pattern.permute.xlu0 0
  %350 = vperm.xlu0 %349, %v348
  %v351 = vpop.permute.xlu0 %350
  %v353 = vmul.f32 %v204, %v351
  %v354 = vmul.f32 %v207, %v351
  %v355 = vmul.f32 %v210, %v351
  %v356 = vmul.f32 %v213, %v351
  %v357 = vmul.f32 %v216, %v351
  %v358 = vmul.f32 %v219, %v351
  %v359 = vmul.f32 %v222, %v351
  %v360 = vmul.f32 %v225, %v351
  %v361 = vmul.f32 %v228, %v351
  %v362 = vmul.f32 %v231, %v351
  %v363 = vmul.f32 %v234, %v351
  %v364 = vmul.f32 %v237, %v351
  %v365 = vmul.f32 %v240, %v351
  %v366 = vmul.f32 %v243, %v351
  %v367 = vmul.f32 %v246, %v351
  %v368 = vmul.f32 %v249, %v351
  %v369 = vmul.f32 %v252, %v351
  %v370 = vmul.f32 %v255, %v351
  %v371 = vmul.f32 %v258, %v351
  %v372 = vmul.f32 %v261, %v351
  %v373 = vmul.f32 %v264, %v351
  %v374 = vmul.f32 %v267, %v351
  %v375 = vmul.f32 %v270, %v351
  %v376 = vmul.f32 %v273, %v351
  %v377 = vmul.f32 %v276, %v351
  %v378 = vmul.f32 %v279, %v351
  %v379 = vmul.f32 %v282, %v351
  %v380 = vmul.f32 %v285, %v351
  %v381 = vmul.f32 %v288, %v351
  %v382 = vmul.f32 %v291, %v351
  %v383 = vmul.f32 %v294, %v351
  %v384 = vmul.f32 %v297, %v351
  %v385 = vmul.f32 %v300, %v351
  %v386 = vmul.f32 %v303, %v351
  %v387 = vmul.f32 %v306, %v351
  %v388 = vmul.f32 %v309, %v351
  %v389 = vsel %vm311, %v204, %v353
  %v390 = vsel %vm312, %v207, %v354
  %v391 = vsel %vm313, %v210, %v355
  %v392 = vsel %vm314, %v213, %v356
  %v393 = vsel %vm315, %v216, %v357
  %v394 = vsel %vm316, %v219, %v358
  %v395 = vsel %vm317, %v222, %v359
  %v396 = vsel %vm318, %v225, %v360
  %v397 = vsel %vm319, %v228, %v361
  %v398 = vsel %vm320, %v231, %v362
  %v399 = vsel %vm321, %v234, %v363
  %v400 = vsel %vm322, %v237, %v364
  %v401 = vsel %vm323, %v240, %v365
  %v402 = vsel %vm324, %v243, %v366
  %v403 = vsel %vm325, %v246, %v367
  %v404 = vsel %vm326, %v249, %v368
  %v405 = vsel %vm327, %v252, %v369
  %v406 = vsel %vm328, %v255, %v370
  %v407 = vsel %vm329, %v258, %v371
  %v408 = vsel %vm330, %v261, %v372
  %v409 = vsel %vm331, %v264, %v373
  %v410 = vsel %vm332, %v267, %v374
  %v411 = vsel %vm333, %v270, %v375
  %v412 = vsel %vm334, %v273, %v376
  %v413 = vsel %vm335, %v276, %v377
  %v414 = vsel %vm336, %v279, %v378
  %v415 = vsel %vm337, %v282, %v379
  %v416 = vsel %vm338, %v285, %v380
  %v417 = vsel %vm339, %v288, %v381
  %v418 = vsel %vm340, %v291, %v382
  %v419 = vsel %vm341, %v294, %v383
  %v420 = vsel %vm342, %v297, %v384
  %v421 = vsel %vm343, %v300, %v385
  %v422 = vsel %vm344, %v303, %v386
  %v423 = vsel %vm345, %v306, %v387
  %v424 = vsel %vm346, %v309, %v388
  %v425 = vld [vmem:[%s1] sm:$0xff]
  %v426 = vld [vmem:[%s1 + $0x8] sm:$0xff]
  %v427 = vld [vmem:[%s1 + $0x10] sm:$0xff]
  %v428 = vld [vmem:[%s1 + $0x18] sm:$0xff]
  %v429 = vld [vmem:[%s1 + $0x20] sm:$0xff]
  %v430 = vld [vmem:[%s1 + $0x28] sm:$0xff]
  %v431 = vld [vmem:[%s1 + $0x30] sm:$0xff]
  %v432 = vld [vmem:[%s1 + $0x38] sm:$0xff]
  %v433 = vld [vmem:[%s1 + $0x40] sm:$0xff]
  %v434 = vld [vmem:[%s1 + $0x48] sm:$0xff]
  %v435 = vld [vmem:[%s1 + $0x50] sm:$0xff]
  %v436 = vld [vmem:[%s1 + $0x58] sm:$0xff]
  %v437 = vld [vmem:[%s1 + $0x60] sm:$0xff]
  %v438 = vld [vmem:[%s1 + $0x68] sm:$0xff]
  %v439 = vld [vmem:[%s1 + $0x70] sm:$0xff]
  %v440 = vld [vmem:[%s1 + $0x78] sm:$0xff]
  %v441 = vld [vmem:[%s1 + $0x80] sm:$0xff]
  %v442 = vld [vmem:[%s1 + $0x88] sm:$0xff]
  %v443 = vld [vmem:[%s1 + $0x90] sm:$0xff]
  %v444 = vld [vmem:[%s1 + $0x98] sm:$0xff]
  %v445 = vld [vmem:[%s1 + $0xa0] sm:$0xff]
  %v446 = vld [vmem:[%s1 + $0xa8] sm:$0xff]
  %v447 = vld [vmem:[%s1 + $0xb0] sm:$0xff]
  %v448 = vld [vmem:[%s1 + $0xb8] sm:$0xff]
  %v449 = vld [vmem:[%s1 + $0xc0] sm:$0xff]
  %v450 = vld [vmem:[%s1 + $0xc8] sm:$0xff]
  %v451 = vld [vmem:[%s1 + $0xd0] sm:$0xff]
  %v452 = vld [vmem:[%s1 + $0xd8] sm:$0xff]
  %v453 = vld [vmem:[%s1 + $0xe0] sm:$0xff]
  %v454 = vld [vmem:[%s1 + $0xe8] sm:$0xff]
  %v455 = vld [vmem:[%s1 + $0xf0] sm:$0xff]
  %v456 = vld [vmem:[%s1 + $0xf8] sm:$0xff]
  %v457 = vld [vmem:[%s1 + $0x100] sm:$0xff]
  %v458 = vld [vmem:[%s1 + $0x108] sm:$0xff]
  %v459 = vld [vmem:[%s1 + $0x110] sm:$0xff]
  %v460 = vld [vmem:[%s1 + $0x118] sm:$0xff]
  %v462 = vsel %vm73, %v425, 0
  %v465 = vsel %vm73, %v426, 0
  %v468 = vsel %vm73, %v427, 0
  %v471 = vsel %vm73, %v428, 0
  %v474 = vsel %vm73, %v429, 0
  %v477 = vsel %vm73, %v430, 0
  %v480 = vsel %vm73, %v431, 0
  %v483 = vsel %vm73, %v432, 0
  %v486 = vsel %vm73, %v433, 0
  %v489 = vsel %vm73, %v434, 0
  %v492 = vsel %vm73, %v435, 0
  %v495 = vsel %vm73, %v436, 0
  %v498 = vsel %vm73, %v437, 0
  %v501 = vsel %vm73, %v438, 0
  %v504 = vsel %vm73, %v439, 0
  %v507 = vsel %vm73, %v440, 0
  %v510 = vsel %vm73, %v441, 0
  %v513 = vsel %vm73, %v442, 0
  %v516 = vsel %vm73, %v443, 0
  %v519 = vsel %vm73, %v444, 0
  %v522 = vsel %vm73, %v445, 0
  %v525 = vsel %vm73, %v446, 0
  %v528 = vsel %vm73, %v447, 0
  %v531 = vsel %vm73, %v448, 0
  %v534 = vsel %vm73, %v449, 0
  %v537 = vsel %vm73, %v450, 0
  %v540 = vsel %vm73, %v451, 0
  %v543 = vsel %vm73, %v452, 0
  %v546 = vsel %vm73, %v453, 0
  %v549 = vsel %vm73, %v454, 0
  %v552 = vsel %vm73, %v455, 0
  %v555 = vsel %vm73, %v456, 0
  %v558 = vsel %vm73, %v457, 0
  %v561 = vsel %vm73, %v458, 0
  %v564 = vsel %vm73, %v459, 0
  %v567 = vsel %vm73, %v460, 0
  %569 = vmatpush.msra.mxu0 0.0
  %570 = vmatpush.msra.mxu0 0.0
  %571 = vmatpush.msra.mxu0 0.0
  %572 = vmatpush.msra.mxu0 0.0
  %573 = vmatpush.msra.mxu0 0.0
  %574 = vmatpush.msra.mxu0 0.0
  %575 = vmatpush.msra.mxu0 0.0
  %576 = vmatpush.msra.mxu0 0.0
  %577 = vmatpush.msra.mxu0 0.0
  %578 = vmatpush.msra.mxu0 0.0
  %579 = vmatpush.msra.mxu0 0.0
  %580 = vmatpush.msra.mxu0 0.0
  %581 = vmatpush.msra.mxu0 %v184
  %582 = vmatpush.msra.mxu0 %v30
  %583 = vmatpush.msra.mxu0 %v29
  %584 = vmatpush.msra.mxu0 %v28
  %585 = vmatmul.f32.gmra.mxu0 %v462
  %v586 = vpop.f32.mrf.mxu0
  %v587 = vadd.f32 %v71, %v586
  %588 = vmatmul.f32.gmra.mxu0 %v465
  %v589 = vpop.f32.mrf.mxu0
  %v590 = vadd.f32 %v71, %v589
  %591 = vmatmul.f32.gmra.mxu0 %v468
  %v592 = vpop.f32.mrf.mxu0
  %v593 = vadd.f32 %v71, %v592
  %594 = vmatmul.f32.gmra.mxu0 %v471
  %v595 = vpop.f32.mrf.mxu0
  %v596 = vadd.f32 %v71, %v595
  %597 = vmatmul.f32.gmra.mxu0 %v474
  %v598 = vpop.f32.mrf.mxu0
  %v599 = vadd.f32 %v71, %v598
  %600 = vmatmul.f32.gmra.mxu0 %v477
  %v601 = vpop.f32.mrf.mxu0
  %v602 = vadd.f32 %v71, %v601
  %603 = vmatmul.f32.gmra.mxu0 %v480
  %v604 = vpop.f32.mrf.mxu0
  %v605 = vadd.f32 %v71, %v604
  %606 = vmatmul.f32.gmra.mxu0 %v483
  %v607 = vpop.f32.mrf.mxu0
  %v608 = vadd.f32 %v71, %v607
  %609 = vmatmul.f32.gmra.mxu0 %v486
  %v610 = vpop.f32.mrf.mxu0
  %v611 = vadd.f32 %v71, %v610
  %612 = vmatmul.f32.gmra.mxu0 %v489
  %v613 = vpop.f32.mrf.mxu0
  %v614 = vadd.f32 %v71, %v613
  %615 = vmatmul.f32.gmra.mxu0 %v492
  %v616 = vpop.f32.mrf.mxu0
  %v617 = vadd.f32 %v71, %v616
  %618 = vmatmul.f32.gmra.mxu0 %v495
  %v619 = vpop.f32.mrf.mxu0
  %v620 = vadd.f32 %v71, %v619
  %621 = vmatmul.f32.gmra.mxu0 %v498
  %v622 = vpop.f32.mrf.mxu0
  %v623 = vadd.f32 %v71, %v622
  %624 = vmatmul.f32.gmra.mxu0 %v501
  %v625 = vpop.f32.mrf.mxu0
  %v626 = vadd.f32 %v71, %v625
  %627 = vmatmul.f32.gmra.mxu0 %v504
  %v628 = vpop.f32.mrf.mxu0
  %v629 = vadd.f32 %v71, %v628
  %630 = vmatmul.f32.gmra.mxu0 %v507
  %v631 = vpop.f32.mrf.mxu0
  %v632 = vadd.f32 %v71, %v631
  %633 = vmatmul.f32.gmra.mxu0 %v510
  %v634 = vpop.f32.mrf.mxu0
  %v635 = vadd.f32 %v71, %v634
  %636 = vmatmul.f32.gmra.mxu0 %v513
  %v637 = vpop.f32.mrf.mxu0
  %v638 = vadd.f32 %v71, %v637
  %639 = vmatmul.f32.gmra.mxu0 %v516
  %v640 = vpop.f32.mrf.mxu0
  %v641 = vadd.f32 %v71, %v640
  %642 = vmatmul.f32.gmra.mxu0 %v519
  %v643 = vpop.f32.mrf.mxu0
  %v644 = vadd.f32 %v71, %v643
  %645 = vmatmul.f32.gmra.mxu0 %v522
  %v646 = vpop.f32.mrf.mxu0
  %v647 = vadd.f32 %v71, %v646
  %648 = vmatmul.f32.gmra.mxu0 %v525
  %v649 = vpop.f32.mrf.mxu0
  %v650 = vadd.f32 %v71, %v649
  %651 = vmatmul.f32.gmra.mxu0 %v528
  %v652 = vpop.f32.mrf.mxu0
  %v653 = vadd.f32 %v71, %v652
  %654 = vmatmul.f32.gmra.mxu0 %v531
  %v655 = vpop.f32.mrf.mxu0
  %v656 = vadd.f32 %v71, %v655
  %657 = vmatmul.f32.gmra.mxu0 %v534
  %v658 = vpop.f32.mrf.mxu0
  %v659 = vadd.f32 %v71, %v658
  %660 = vmatmul.f32.gmra.mxu0 %v537
  %v661 = vpop.f32.mrf.mxu0
  %v662 = vadd.f32 %v71, %v661
  %663 = vmatmul.f32.gmra.mxu0 %v540
  %v664 = vpop.f32.mrf.mxu0
  %v665 = vadd.f32 %v71, %v664
  %666 = vmatmul.f32.gmra.mxu0 %v543
  %v667 = vpop.f32.mrf.mxu0
  %v668 = vadd.f32 %v71, %v667
  %669 = vmatmul.f32.gmra.mxu0 %v546
  %v670 = vpop.f32.mrf.mxu0
  %v671 = vadd.f32 %v71, %v670
  %672 = vmatmul.f32.gmra.mxu0 %v549
  %v673 = vpop.f32.mrf.mxu0
  %v674 = vadd.f32 %v71, %v673
  %675 = vmatmul.f32.gmra.mxu0 %v552
  %v676 = vpop.f32.mrf.mxu0
  %v677 = vadd.f32 %v71, %v676
  %678 = vmatmul.f32.gmra.mxu0 %v555
  %v679 = vpop.f32.mrf.mxu0
  %v680 = vadd.f32 %v71, %v679
  %681 = vmatmul.f32.gmra.mxu0 %v558
  %v682 = vpop.f32.mrf.mxu0
  %v683 = vadd.f32 %v71, %v682
  %684 = vmatmul.f32.gmra.mxu0 %v561
  %v685 = vpop.f32.mrf.mxu0
  %v686 = vadd.f32 %v71, %v685
  %687 = vmatmul.f32.gmra.mxu0 %v564
  %v688 = vpop.f32.mrf.mxu0
  %v689 = vadd.f32 %v71, %v688
  %690 = vmatmul.f32.gmra.mxu0 %v567
  %v691 = vpop.f32.mrf.mxu0
  %v692 = vadd.f32 %v71, %v691
  %693 = vdwg.mxu0
  %vm694 = vcmp.ge.f32.partialorder %v587, 0.0
  %vm695 = vcmp.ge.f32.partialorder %v590, 0.0
  %vm696 = vcmp.ge.f32.partialorder %v593, 0.0
  %vm697 = vcmp.ge.f32.partialorder %v596, 0.0
  %vm698 = vcmp.ge.f32.partialorder %v599, 0.0
  %vm699 = vcmp.ge.f32.partialorder %v602, 0.0
  %vm700 = vcmp.ge.f32.partialorder %v605, 0.0
  %vm701 = vcmp.ge.f32.partialorder %v608, 0.0
  %vm702 = vcmp.ge.f32.partialorder %v611, 0.0
  %vm703 = vcmp.ge.f32.partialorder %v614, 0.0
  %vm704 = vcmp.ge.f32.partialorder %v617, 0.0
  %vm705 = vcmp.ge.f32.partialorder %v620, 0.0
  %vm706 = vcmp.ge.f32.partialorder %v623, 0.0
  %vm707 = vcmp.ge.f32.partialorder %v626, 0.0
  %vm708 = vcmp.ge.f32.partialorder %v629, 0.0
  %vm709 = vcmp.ge.f32.partialorder %v632, 0.0
  %vm710 = vcmp.ge.f32.partialorder %v635, 0.0
  %vm711 = vcmp.ge.f32.partialorder %v638, 0.0
  %vm712 = vcmp.ge.f32.partialorder %v641, 0.0
  %vm713 = vcmp.ge.f32.partialorder %v644, 0.0
  %vm714 = vcmp.ge.f32.partialorder %v647, 0.0
  %vm715 = vcmp.ge.f32.partialorder %v650, 0.0
  %vm716 = vcmp.ge.f32.partialorder %v653, 0.0
  %vm717 = vcmp.ge.f32.partialorder %v656, 0.0
  %vm718 = vcmp.ge.f32.partialorder %v659, 0.0
  %vm719 = vcmp.ge.f32.partialorder %v662, 0.0
  %vm720 = vcmp.ge.f32.partialorder %v665, 0.0
  %vm721 = vcmp.ge.f32.partialorder %v668, 0.0
  %vm722 = vcmp.ge.f32.partialorder %v671, 0.0
  %vm723 = vcmp.ge.f32.partialorder %v674, 0.0
  %vm724 = vcmp.ge.f32.partialorder %v677, 0.0
  %vm725 = vcmp.ge.f32.partialorder %v680, 0.0
  %vm726 = vcmp.ge.f32.partialorder %v683, 0.0
  %vm727 = vcmp.ge.f32.partialorder %v686, 0.0
  %vm728 = vcmp.ge.f32.partialorder %v689, 0.0
  %vm729 = vcmp.ge.f32.partialorder %v692, 0.0
  %v730 = vmul.f32 %v587, %v351
  %v731 = vmul.f32 %v590, %v351
  %v732 = vmul.f32 %v593, %v351
  %v733 = vmul.f32 %v596, %v351
  %v734 = vmul.f32 %v599, %v351
  %v735 = vmul.f32 %v602, %v351
  %v736 = vmul.f32 %v605, %v351
  %v737 = vmul.f32 %v608, %v351
  %v738 = vmul.f32 %v611, %v351
  %v739 = vmul.f32 %v614, %v351
  %v740 = vmul.f32 %v617, %v351
  %v741 = vmul.f32 %v620, %v351
  %v742 = vmul.f32 %v623, %v351
  %v743 = vmul.f32 %v626, %v351
  %v744 = vmul.f32 %v629, %v351
  %v745 = vmul.f32 %v632, %v351
  %v746 = vmul.f32 %v635, %v351
  %v747 = vmul.f32 %v638, %v351
  %v748 = vmul.f32 %v641, %v351
  %v749 = vmul.f32 %v644, %v351
  %v750 = vmul.f32 %v647, %v351
  %v751 = vmul.f32 %v650, %v351
  %v752 = vmul.f32 %v653, %v351
  %v753 = vmul.f32 %v656, %v351
  %v754 = vmul.f32 %v659, %v351
  %v755 = vmul.f32 %v662, %v351
  %v756 = vmul.f32 %v665, %v351
  %v757 = vmul.f32 %v668, %v351
  %v758 = vmul.f32 %v671, %v351
  %v759 = vmul.f32 %v674, %v351
  %v760 = vmul.f32 %v677, %v351
  %v761 = vmul.f32 %v680, %v351
  %v762 = vmul.f32 %v683, %v351
  %v763 = vmul.f32 %v686, %v351
  %v764 = vmul.f32 %v689, %v351
  %v765 = vmul.f32 %v692, %v351
  %v766 = vsel %vm694, %v587, %v730
  %v767 = vsel %vm695, %v590, %v731
  %v768 = vsel %vm696, %v593, %v732
  %v769 = vsel %vm697, %v596, %v733
  %v770 = vsel %vm698, %v599, %v734
  %v771 = vsel %vm699, %v602, %v735
  %v772 = vsel %vm700, %v605, %v736
  %v773 = vsel %vm701, %v608, %v737
  %v774 = vsel %vm702, %v611, %v738
  %v775 = vsel %vm703, %v614, %v739
  %v776 = vsel %vm704, %v617, %v740
  %v777 = vsel %vm705, %v620, %v741
  %v778 = vsel %vm706, %v623, %v742
  %v779 = vsel %vm707, %v626, %v743
  %v780 = vsel %vm708, %v629, %v744
  %v781 = vsel %vm709, %v632, %v745
  %v782 = vsel %vm710, %v635, %v746
  %v783 = vsel %vm711, %v638, %v747
  %v784 = vsel %vm712, %v641, %v748
  %v785 = vsel %vm713, %v644, %v749
  %v786 = vsel %vm714, %v647, %v750
  %v787 = vsel %vm715, %v650, %v751
  %v788 = vsel %vm716, %v653, %v752
  %v789 = vsel %vm717, %v656, %v753
  %v790 = vsel %vm718, %v659, %v754
  %v791 = vsel %vm719, %v662, %v755
  %v792 = vsel %vm720, %v665, %v756
  %v793 = vsel %vm721, %v668, %v757
  %v794 = vsel %vm722, %v671, %v758
  %v795 = vsel %vm723, %v674, %v759
  %v796 = vsel %vm724, %v677, %v760
  %v797 = vsel %vm725, %v680, %v761
  %v798 = vsel %vm726, %v683, %v762
  %v799 = vsel %vm727, %v686, %v763
  %v800 = vsel %vm728, %v689, %v764
  %v801 = vsel %vm729, %v692, %v765
  %v802 = vmax.f32 %v389, %v766
  %v803 = vmax.f32 %v390, %v767
  %v804 = vmax.f32 %v391, %v768
  %v805 = vmax.f32 %v392, %v769
  %v806 = vmax.f32 %v393, %v770
  %v807 = vmax.f32 %v394, %v771
  %v808 = vmax.f32 %v395, %v772
  %v809 = vmax.f32 %v396, %v773
  %v810 = vmax.f32 %v397, %v774
  %v811 = vmax.f32 %v398, %v775
  %v812 = vmax.f32 %v399, %v776
  %v813 = vmax.f32 %v400, %v777
  %v814 = vmax.f32 %v401, %v778
  %v815 = vmax.f32 %v402, %v779
  %v816 = vmax.f32 %v403, %v780
  %v817 = vmax.f32 %v404, %v781
  %v818 = vmax.f32 %v405, %v782
  %v819 = vmax.f32 %v406, %v783
  %v820 = vmax.f32 %v407, %v784
  %v821 = vmax.f32 %v408, %v785
  %v822 = vmax.f32 %v409, %v786
  %v823 = vmax.f32 %v410, %v787
  %v824 = vmax.f32 %v411, %v788
  %v825 = vmax.f32 %v412, %v789
  %v826 = vmax.f32 %v413, %v790
  %v827 = vmax.f32 %v414, %v791
  %v828 = vmax.f32 %v415, %v792
  %v829 = vmax.f32 %v416, %v793
  %v830 = vmax.f32 %v417, %v794
  %v831 = vmax.f32 %v418, %v795
  %v832 = vmax.f32 %v419, %v796
  %v833 = vmax.f32 %v420, %v797
  %v834 = vmax.f32 %v421, %v798
  %v835 = vmax.f32 %v422, %v799
  %v836 = vmax.f32 %v423, %v800
  %v837 = vmax.f32 %v424, %v801
  %v838 = vld [vmem:[%s2] sm:$0xff]
  %v839 = vld [vmem:[%s2 + $0x8] sm:$0xff]
  %v840 = vld [vmem:[%s2 + $0x10] sm:$0xff]
  %v841 = vld [vmem:[%s2 + $0x18] sm:$0xff]
  %v842 = vld [vmem:[%s2 + $0x20] sm:$0xff]
  %v843 = vld [vmem:[%s2 + $0x28] sm:$0xff]
  %v844 = vld [vmem:[%s2 + $0x30] sm:$0xff]
  %v845 = vld [vmem:[%s2 + $0x38] sm:$0xff]
  %v846 = vld [vmem:[%s2 + $0x40] sm:$0xff]
  %v847 = vld [vmem:[%s2 + $0x48] sm:$0xff]
  %v848 = vld [vmem:[%s2 + $0x50] sm:$0xff]
  %v849 = vld [vmem:[%s2 + $0x58] sm:$0xff]
  %v850 = vld [vmem:[%s2 + $0x60] sm:$0xff]
  %v851 = vld [vmem:[%s2 + $0x68] sm:$0xff]
  %v852 = vld [vmem:[%s2 + $0x70] sm:$0xff]
  %v853 = vld [vmem:[%s2 + $0x78] sm:$0xff]
  %v854 = vld [vmem:[%s2 + $0x80] sm:$0xff]
  %v855 = vld [vmem:[%s2 + $0x88] sm:$0xff]
  %v856 = vld [vmem:[%s2 + $0x90] sm:$0xff]
  %v857 = vld [vmem:[%s2 + $0x98] sm:$0xff]
  %v858 = vld [vmem:[%s2 + $0xa0] sm:$0xff]
  %v859 = vld [vmem:[%s2 + $0xa8] sm:$0xff]
  %v860 = vld [vmem:[%s2 + $0xb0] sm:$0xff]
  %v861 = vld [vmem:[%s2 + $0xb8] sm:$0xff]
  %v862 = vld [vmem:[%s2 + $0xc0] sm:$0xff]
  %v863 = vld [vmem:[%s2 + $0xc8] sm:$0xff]
  %v864 = vld [vmem:[%s2 + $0xd0] sm:$0xff]
  %v865 = vld [vmem:[%s2 + $0xd8] sm:$0xff]
  %v866 = vld [vmem:[%s2 + $0xe0] sm:$0xff]
  %v867 = vld [vmem:[%s2 + $0xe8] sm:$0xff]
  %v868 = vld [vmem:[%s2 + $0xf0] sm:$0xff]
  %v869 = vld [vmem:[%s2 + $0xf8] sm:$0xff]
  %v870 = vld [vmem:[%s2 + $0x100] sm:$0xff]
  %v871 = vld [vmem:[%s2 + $0x108] sm:$0xff]
  %v872 = vld [vmem:[%s2 + $0x110] sm:$0xff]
  %v873 = vld [vmem:[%s2 + $0x118] sm:$0xff]
  %v875 = vsel %vm73, %v838, 0
  %v878 = vsel %vm73, %v839, 0
  %v881 = vsel %vm73, %v840, 0
  %v884 = vsel %vm73, %v841, 0
  %v887 = vsel %vm73, %v842, 0
  %v890 = vsel %vm73, %v843, 0
  %v893 = vsel %vm73, %v844, 0
  %v896 = vsel %vm73, %v845, 0
  %v899 = vsel %vm73, %v846, 0
  %v902 = vsel %vm73, %v847, 0
  %v905 = vsel %vm73, %v848, 0
  %v908 = vsel %vm73, %v849, 0
  %v911 = vsel %vm73, %v850, 0
  %v914 = vsel %vm73, %v851, 0
  %v917 = vsel %vm73, %v852, 0
  %v920 = vsel %vm73, %v853, 0
  %v923 = vsel %vm73, %v854, 0
  %v926 = vsel %vm73, %v855, 0
  %v929 = vsel %vm73, %v856, 0
  %v932 = vsel %vm73, %v857, 0
  %v935 = vsel %vm73, %v858, 0
  %v938 = vsel %vm73, %v859, 0
  %v941 = vsel %vm73, %v860, 0
  %v944 = vsel %vm73, %v861, 0
  %v947 = vsel %vm73, %v862, 0
  %v950 = vsel %vm73, %v863, 0
  %v953 = vsel %vm73, %v864, 0
  %v956 = vsel %vm73, %v865, 0
  %v959 = vsel %vm73, %v866, 0
  %v962 = vsel %vm73, %v867, 0
  %v965 = vsel %vm73, %v868, 0
  %v968 = vsel %vm73, %v869, 0
  %v971 = vsel %vm73, %v870, 0
  %v974 = vsel %vm73, %v871, 0
  %v977 = vsel %vm73, %v872, 0
  %v980 = vsel %vm73, %v873, 0
  %982 = vmatpush.msra.mxu0 0.0
  %983 = vmatpush.msra.mxu0 0.0
  %984 = vmatpush.msra.mxu0 0.0
  %985 = vmatpush.msra.mxu0 0.0
  %986 = vmatpush.msra.mxu0 0.0
  %987 = vmatpush.msra.mxu0 0.0
  %988 = vmatpush.msra.mxu0 0.0
  %989 = vmatpush.msra.mxu0 0.0
  %990 = vmatpush.msra.mxu0 0.0
  %991 = vmatpush.msra.mxu0 0.0
  %992 = vmatpush.msra.mxu0 0.0
  %993 = vmatpush.msra.mxu0 0.0
  %994 = vmatpush.msra.mxu0 %v184
  %995 = vmatpush.msra.mxu0 %v30
  %996 = vmatpush.msra.mxu0 %v29
  %997 = vmatpush.msra.mxu0 %v28
  %998 = vmatmul.f32.gmra.mxu0 %v875
  %v999 = vpop.f32.mrf.mxu0
  %v1000 = vadd.f32 %v71, %v999
  %1001 = vmatmul.f32.gmra.mxu0 %v878
  %v1002 = vpop.f32.mrf.mxu0
  %v1003 = vadd.f32 %v71, %v1002
  %1004 = vmatmul.f32.gmra.mxu0 %v881
  %v1005 = vpop.f32.mrf.mxu0
  %v1006 = vadd.f32 %v71, %v1005
  %1007 = vmatmul.f32.gmra.mxu0 %v884
  %v1008 = vpop.f32.mrf.mxu0
  %v1009 = vadd.f32 %v71, %v1008
  %1010 = vmatmul.f32.gmra.mxu0 %v887
  %v1011 = vpop.f32.mrf.mxu0
  %v1012 = vadd.f32 %v71, %v1011
  %1013 = vmatmul.f32.gmra.mxu0 %v890
  %v1014 = vpop.f32.mrf.mxu0
  %v1015 = vadd.f32 %v71, %v1014
  %1016 = vmatmul.f32.gmra.mxu0 %v893
  %v1017 = vpop.f32.mrf.mxu0
  %v1018 = vadd.f32 %v71, %v1017
  %1019 = vmatmul.f32.gmra.mxu0 %v896
  %v1020 = vpop.f32.mrf.mxu0
  %v1021 = vadd.f32 %v71, %v1020
  %1022 = vmatmul.f32.gmra.mxu0 %v899
  %v1023 = vpop.f32.mrf.mxu0
  %v1024 = vadd.f32 %v71, %v1023
  %1025 = vmatmul.f32.gmra.mxu0 %v902
  %v1026 = vpop.f32.mrf.mxu0
  %v1027 = vadd.f32 %v71, %v1026
  %1028 = vmatmul.f32.gmra.mxu0 %v905
  %v1029 = vpop.f32.mrf.mxu0
  %v1030 = vadd.f32 %v71, %v1029
  %1031 = vmatmul.f32.gmra.mxu0 %v908
  %v1032 = vpop.f32.mrf.mxu0
  %v1033 = vadd.f32 %v71, %v1032
  %1034 = vmatmul.f32.gmra.mxu0 %v911
  %v1035 = vpop.f32.mrf.mxu0
  %v1036 = vadd.f32 %v71, %v1035
  %1037 = vmatmul.f32.gmra.mxu0 %v914
  %v1038 = vpop.f32.mrf.mxu0
  %v1039 = vadd.f32 %v71, %v1038
  %1040 = vmatmul.f32.gmra.mxu0 %v917
  %v1041 = vpop.f32.mrf.mxu0
  %v1042 = vadd.f32 %v71, %v1041
  %1043 = vmatmul.f32.gmra.mxu0 %v920
  %v1044 = vpop.f32.mrf.mxu0
  %v1045 = vadd.f32 %v71, %v1044
  %1046 = vmatmul.f32.gmra.mxu0 %v923
  %v1047 = vpop.f32.mrf.mxu0
  %v1048 = vadd.f32 %v71, %v1047
  %1049 = vmatmul.f32.gmra.mxu0 %v926
  %v1050 = vpop.f32.mrf.mxu0
  %v1051 = vadd.f32 %v71, %v1050
  %1052 = vmatmul.f32.gmra.mxu0 %v929
  %v1053 = vpop.f32.mrf.mxu0
  %v1054 = vadd.f32 %v71, %v1053
  %1055 = vmatmul.f32.gmra.mxu0 %v932
  %v1056 = vpop.f32.mrf.mxu0
  %v1057 = vadd.f32 %v71, %v1056
  %1058 = vmatmul.f32.gmra.mxu0 %v935
  %v1059 = vpop.f32.mrf.mxu0
  %v1060 = vadd.f32 %v71, %v1059
  %1061 = vmatmul.f32.gmra.mxu0 %v938
  %v1062 = vpop.f32.mrf.mxu0
  %v1063 = vadd.f32 %v71, %v1062
  %1064 = vmatmul.f32.gmra.mxu0 %v941
  %v1065 = vpop.f32.mrf.mxu0
  %v1066 = vadd.f32 %v71, %v1065
  %1067 = vmatmul.f32.gmra.mxu0 %v944
  %v1068 = vpop.f32.mrf.mxu0
  %v1069 = vadd.f32 %v71, %v1068
  %1070 = vmatmul.f32.gmra.mxu0 %v947
  %v1071 = vpop.f32.mrf.mxu0
  %v1072 = vadd.f32 %v71, %v1071
  %1073 = vmatmul.f32.gmra.mxu0 %v950
  %v1074 = vpop.f32.mrf.mxu0
  %v1075 = vadd.f32 %v71, %v1074
  %1076 = vmatmul.f32.gmra.mxu0 %v953
  %v1077 = vpop.f32.mrf.mxu0
  %v1078 = vadd.f32 %v71, %v1077
  %1079 = vmatmul.f32.gmra.mxu0 %v956
  %v1080 = vpop.f32.mrf.mxu0
  %v1081 = vadd.f32 %v71, %v1080
  %1082 = vmatmul.f32.gmra.mxu0 %v959
  %v1083 = vpop.f32.mrf.mxu0
  %v1084 = vadd.f32 %v71, %v1083
  %1085 = vmatmul.f32.gmra.mxu0 %v962
  %v1086 = vpop.f32.mrf.mxu0
  %v1087 = vadd.f32 %v71, %v1086
  %1088 = vmatmul.f32.gmra.mxu0 %v965
  %v1089 = vpop.f32.mrf.mxu0
  %v1090 = vadd.f32 %v71, %v1089
  %1091 = vmatmul.f32.gmra.mxu0 %v968
  %v1092 = vpop.f32.mrf.mxu0
  %v1093 = vadd.f32 %v71, %v1092
  %1094 = vmatmul.f32.gmra.mxu0 %v971
  %v1095 = vpop.f32.mrf.mxu0
  %v1096 = vadd.f32 %v71, %v1095
  %1097 = vmatmul.f32.gmra.mxu0 %v974
  %v1098 = vpop.f32.mrf.mxu0
  %v1099 = vadd.f32 %v71, %v1098
  %1100 = vmatmul.f32.gmra.mxu0 %v977
  %v1101 = vpop.f32.mrf.mxu0
  %v1102 = vadd.f32 %v71, %v1101
  %1103 = vmatmul.f32.gmra.mxu0 %v980
  %v1104 = vpop.f32.mrf.mxu0
  %v1105 = vadd.f32 %v71, %v1104
  %1106 = vdwg.mxu0
  %vm1107 = vcmp.ge.f32.partialorder %v1000, 0.0
  %vm1108 = vcmp.ge.f32.partialorder %v1003, 0.0
  %vm1109 = vcmp.ge.f32.partialorder %v1006, 0.0
  %vm1110 = vcmp.ge.f32.partialorder %v1009, 0.0
  %vm1111 = vcmp.ge.f32.partialorder %v1012, 0.0
  %vm1112 = vcmp.ge.f32.partialorder %v1015, 0.0
  %vm1113 = vcmp.ge.f32.partialorder %v1018, 0.0
  %vm1114 = vcmp.ge.f32.partialorder %v1021, 0.0
  %vm1115 = vcmp.ge.f32.partialorder %v1024, 0.0
  %vm1116 = vcmp.ge.f32.partialorder %v1027, 0.0
  %vm1117 = vcmp.ge.f32.partialorder %v1030, 0.0
  %vm1118 = vcmp.ge.f32.partialorder %v1033, 0.0
  %vm1119 = vcmp.ge.f32.partialorder %v1036, 0.0
  %vm1120 = vcmp.ge.f32.partialorder %v1039, 0.0
  %vm1121 = vcmp.ge.f32.partialorder %v1042, 0.0
  %vm1122 = vcmp.ge.f32.partialorder %v1045, 0.0
  %vm1123 = vcmp.ge.f32.partialorder %v1048, 0.0
  %vm1124 = vcmp.ge.f32.partialorder %v1051, 0.0
  %vm1125 = vcmp.ge.f32.partialorder %v1054, 0.0
  %vm1126 = vcmp.ge.f32.partialorder %v1057, 0.0
  %vm1127 = vcmp.ge.f32.partialorder %v1060, 0.0
  %vm1128 = vcmp.ge.f32.partialorder %v1063, 0.0
  %vm1129 = vcmp.ge.f32.partialorder %v1066, 0.0
  %vm1130 = vcmp.ge.f32.partialorder %v1069, 0.0
  %vm1131 = vcmp.ge.f32.partialorder %v1072, 0.0
  %vm1132 = vcmp.ge.f32.partialorder %v1075, 0.0
  %vm1133 = vcmp.ge.f32.partialorder %v1078, 0.0
  %vm1134 = vcmp.ge.f32.partialorder %v1081, 0.0
  %vm1135 = vcmp.ge.f32.partialorder %v1084, 0.0
  %vm1136 = vcmp.ge.f32.partialorder %v1087, 0.0
  %vm1137 = vcmp.ge.f32.partialorder %v1090, 0.0
  %vm1138 = vcmp.ge.f32.partialorder %v1093, 0.0
  %vm1139 = vcmp.ge.f32.partialorder %v1096, 0.0
  %vm1140 = vcmp.ge.f32.partialorder %v1099, 0.0
  %vm1141 = vcmp.ge.f32.partialorder %v1102, 0.0
  %vm1142 = vcmp.ge.f32.partialorder %v1105, 0.0
  %v1143 = vmul.f32 %v1000, %v351
  %v1144 = vmul.f32 %v1003, %v351
  %v1145 = vmul.f32 %v1006, %v351
  %v1146 = vmul.f32 %v1009, %v351
  %v1147 = vmul.f32 %v1012, %v351
  %v1148 = vmul.f32 %v1015, %v351
  %v1149 = vmul.f32 %v1018, %v351
  %v1150 = vmul.f32 %v1021, %v351
  %v1151 = vmul.f32 %v1024, %v351
  %v1152 = vmul.f32 %v1027, %v351
  %v1153 = vmul.f32 %v1030, %v351
  %v1154 = vmul.f32 %v1033, %v351
  %v1155 = vmul.f32 %v1036, %v351
  %v1156 = vmul.f32 %v1039, %v351
  %v1157 = vmul.f32 %v1042, %v351
  %v1158 = vmul.f32 %v1045, %v351
  %v1159 = vmul.f32 %v1048, %v351
  %v1160 = vmul.f32 %v1051, %v351
  %v1161 = vmul.f32 %v1054, %v351
  %v1162 = vmul.f32 %v1057, %v351
  %v1163 = vmul.f32 %v1060, %v351
  %v1164 = vmul.f32 %v1063, %v351
  %v1165 = vmul.f32 %v1066, %v351
  %v1166 = vmul.f32 %v1069, %v351
  %v1167 = vmul.f32 %v1072, %v351
  %v1168 = vmul.f32 %v1075, %v351
  %v1169 = vmul.f32 %v1078, %v351
  %v1170 = vmul.f32 %v1081, %v351
  %v1171 = vmul.f32 %v1084, %v351
  %v1172 = vmul.f32 %v1087, %v351
  %v1173 = vmul.f32 %v1090, %v351
  %v1174 = vmul.f32 %v1093, %v351
  %v1175 = vmul.f32 %v1096, %v351
  %v1176 = vmul.f32 %v1099, %v351
  %v1177 = vmul.f32 %v1102, %v351
  %v1178 = vmul.f32 %v1105, %v351
  %v1179 = vsel %vm1107, %v1000, %v1143
  %v1180 = vsel %vm1108, %v1003, %v1144
  %v1181 = vsel %vm1109, %v1006, %v1145
  %v1182 = vsel %vm1110, %v1009, %v1146
  %v1183 = vsel %vm1111, %v1012, %v1147
  %v1184 = vsel %vm1112, %v1015, %v1148
  %v1185 = vsel %vm1113, %v1018, %v1149
  %v1186 = vsel %vm1114, %v1021, %v1150
  %v1187 = vsel %vm1115, %v1024, %v1151
  %v1188 = vsel %vm1116, %v1027, %v1152
  %v1189 = vsel %vm1117, %v1030, %v1153
  %v1190 = vsel %vm1118, %v1033, %v1154
  %v1191 = vsel %vm1119, %v1036, %v1155
  %v1192 = vsel %vm1120, %v1039, %v1156
  %v1193 = vsel %vm1121, %v1042, %v1157
  %v1194 = vsel %vm1122, %v1045, %v1158
  %v1195 = vsel %vm1123, %v1048, %v1159
  %v1196 = vsel %vm1124, %v1051, %v1160
  %v1197 = vsel %vm1125, %v1054, %v1161
  %v1198 = vsel %vm1126, %v1057, %v1162
  %v1199 = vsel %vm1127, %v1060, %v1163
  %v1200 = vsel %vm1128, %v1063, %v1164
  %v1201 = vsel %vm1129, %v1066, %v1165
  %v1202 = vsel %vm1130, %v1069, %v1166
  %v1203 = vsel %vm1131, %v1072, %v1167
  %v1204 = vsel %vm1132, %v1075, %v1168
  %v1205 = vsel %vm1133, %v1078, %v1169
  %v1206 = vsel %vm1134, %v1081, %v1170
  %v1207 = vsel %vm1135, %v1084, %v1171
  %v1208 = vsel %vm1136, %v1087, %v1172
  %v1209 = vsel %vm1137, %v1090, %v1173
  %v1210 = vsel %vm1138, %v1093, %v1174
  %v1211 = vsel %vm1139, %v1096, %v1175
  %v1212 = vsel %vm1140, %v1099, %v1176
  %v1213 = vsel %vm1141, %v1102, %v1177
  %v1214 = vsel %vm1142, %v1105, %v1178
  %v1215 = vld [vmem:[%s3] sm:$0xff]
  %v1216 = vld [vmem:[%s3 + $0x8] sm:$0xff]
  %v1217 = vld [vmem:[%s3 + $0x10] sm:$0xff]
  %v1218 = vld [vmem:[%s3 + $0x18] sm:$0xff]
  %v1219 = vld [vmem:[%s3 + $0x20] sm:$0xff]
  %v1220 = vld [vmem:[%s3 + $0x28] sm:$0xff]
  %v1221 = vld [vmem:[%s3 + $0x30] sm:$0xff]
  %v1222 = vld [vmem:[%s3 + $0x38] sm:$0xff]
  %v1223 = vld [vmem:[%s3 + $0x40] sm:$0xff]
  %v1224 = vld [vmem:[%s3 + $0x48] sm:$0xff]
  %v1225 = vld [vmem:[%s3 + $0x50] sm:$0xff]
  %v1226 = vld [vmem:[%s3 + $0x58] sm:$0xff]
  %v1227 = vld [vmem:[%s3 + $0x60] sm:$0xff]
  %v1228 = vld [vmem:[%s3 + $0x68] sm:$0xff]
  %v1229 = vld [vmem:[%s3 + $0x70] sm:$0xff]
  %v1230 = vld [vmem:[%s3 + $0x78] sm:$0xff]
  %v1231 = vld [vmem:[%s3 + $0x80] sm:$0xff]
  %v1232 = vld [vmem:[%s3 + $0x88] sm:$0xff]
  %v1233 = vld [vmem:[%s3 + $0x90] sm:$0xff]
  %v1234 = vld [vmem:[%s3 + $0x98] sm:$0xff]
  %v1235 = vld [vmem:[%s3 + $0xa0] sm:$0xff]
  %v1236 = vld [vmem:[%s3 + $0xa8] sm:$0xff]
  %v1237 = vld [vmem:[%s3 + $0xb0] sm:$0xff]
  %v1238 = vld [vmem:[%s3 + $0xb8] sm:$0xff]
  %v1239 = vld [vmem:[%s3 + $0xc0] sm:$0xff]
  %v1240 = vld [vmem:[%s3 + $0xc8] sm:$0xff]
  %v1241 = vld [vmem:[%s3 + $0xd0] sm:$0xff]
  %v1242 = vld [vmem:[%s3 + $0xd8] sm:$0xff]
  %v1243 = vld [vmem:[%s3 + $0xe0] sm:$0xff]
  %v1244 = vld [vmem:[%s3 + $0xe8] sm:$0xff]
  %v1245 = vld [vmem:[%s3 + $0xf0] sm:$0xff]
  %v1246 = vld [vmem:[%s3 + $0xf8] sm:$0xff]
  %v1247 = vld [vmem:[%s3 + $0x100] sm:$0xff]
  %v1248 = vld [vmem:[%s3 + $0x108] sm:$0xff]
  %v1249 = vld [vmem:[%s3 + $0x110] sm:$0xff]
  %v1250 = vld [vmem:[%s3 + $0x118] sm:$0xff]
  %v1252 = vsel %vm73, %v1215, 0
  %v1255 = vsel %vm73, %v1216, 0
  %v1258 = vsel %vm73, %v1217, 0
  %v1261 = vsel %vm73, %v1218, 0
  %v1264 = vsel %vm73, %v1219, 0
  %v1267 = vsel %vm73, %v1220, 0
  %v1270 = vsel %vm73, %v1221, 0
  %v1273 = vsel %vm73, %v1222, 0
  %v1276 = vsel %vm73, %v1223, 0
  %v1279 = vsel %vm73, %v1224, 0
  %v1282 = vsel %vm73, %v1225, 0
  %v1285 = vsel %vm73, %v1226, 0
  %v1288 = vsel %vm73, %v1227, 0
  %v1291 = vsel %vm73, %v1228, 0
  %v1294 = vsel %vm73, %v1229, 0
  %v1297 = vsel %vm73, %v1230, 0
  %v1300 = vsel %vm73, %v1231, 0
  %v1303 = vsel %vm73, %v1232, 0
  %v1306 = vsel %vm73, %v1233, 0
  %v1309 = vsel %vm73, %v1234, 0
  %v1312 = vsel %vm73, %v1235, 0
  %v1315 = vsel %vm73, %v1236, 0
  %v1318 = vsel %vm73, %v1237, 0
  %v1321 = vsel %vm73, %v1238, 0
  %v1324 = vsel %vm73, %v1239, 0
  %v1327 = vsel %vm73, %v1240, 0
  %v1330 = vsel %vm73, %v1241, 0
  %v1333 = vsel %vm73, %v1242, 0
  %v1336 = vsel %vm73, %v1243, 0
  %v1339 = vsel %vm73, %v1244, 0
  %v1342 = vsel %vm73, %v1245, 0
  %v1345 = vsel %vm73, %v1246, 0
  %v1348 = vsel %vm73, %v1247, 0
  %v1351 = vsel %vm73, %v1248, 0
  %v1354 = vsel %vm73, %v1249, 0
  %v1357 = vsel %vm73, %v1250, 0
  %1359 = vmatpush.msra.mxu0 0.0
  %1360 = vmatpush.msra.mxu0 0.0
  %1361 = vmatpush.msra.mxu0 0.0
  %1362 = vmatpush.msra.mxu0 0.0
  %1363 = vmatpush.msra.mxu0 0.0
  %1364 = vmatpush.msra.mxu0 0.0
  %1365 = vmatpush.msra.mxu0 0.0
  %1366 = vmatpush.msra.mxu0 0.0
  %1367 = vmatpush.msra.mxu0 0.0
  %1368 = vmatpush.msra.mxu0 0.0
  %1369 = vmatpush.msra.mxu0 0.0
  %1370 = vmatpush.msra.mxu0 0.0
  %1371 = vmatpush.msra.mxu0 %v184
  %1372 = vmatpush.msra.mxu0 %v30
  %1373 = vmatpush.msra.mxu0 %v29
  %1374 = vmatpush.msra.mxu0 %v28
  %1375 = vmatmul.f32.gmra.mxu0 %v1252
  %v1376 = vpop.f32.mrf.mxu0
  %v1377 = vadd.f32 %v71, %v1376
  %1378 = vmatmul.f32.gmra.mxu0 %v1255
  %v1379 = vpop.f32.mrf.mxu0
  %v1380 = vadd.f32 %v71, %v1379
  %1381 = vmatmul.f32.gmra.mxu0 %v1258
  %v1382 = vpop.f32.mrf.mxu0
  %v1383 = vadd.f32 %v71, %v1382
  %1384 = vmatmul.f32.gmra.mxu0 %v1261
  %v1385 = vpop.f32.mrf.mxu0
  %v1386 = vadd.f32 %v71, %v1385
  %1387 = vmatmul.f32.gmra.mxu0 %v1264
  %v1388 = vpop.f32.mrf.mxu0
  %v1389 = vadd.f32 %v71, %v1388
  %1390 = vmatmul.f32.gmra.mxu0 %v1267
  %v1391 = vpop.f32.mrf.mxu0
  %v1392 = vadd.f32 %v71, %v1391
  %1393 = vmatmul.f32.gmra.mxu0 %v1270
  %v1394 = vpop.f32.mrf.mxu0
  %v1395 = vadd.f32 %v71, %v1394
  %1396 = vmatmul.f32.gmra.mxu0 %v1273
  %v1397 = vpop.f32.mrf.mxu0
  %v1398 = vadd.f32 %v71, %v1397
  %1399 = vmatmul.f32.gmra.mxu0 %v1276
  %v1400 = vpop.f32.mrf.mxu0
  %v1401 = vadd.f32 %v71, %v1400
  %1402 = vmatmul.f32.gmra.mxu0 %v1279
  %v1403 = vpop.f32.mrf.mxu0
  %v1404 = vadd.f32 %v71, %v1403
  %1405 = vmatmul.f32.gmra.mxu0 %v1282
  %v1406 = vpop.f32.mrf.mxu0
  %v1407 = vadd.f32 %v71, %v1406
  %1408 = vmatmul.f32.gmra.mxu0 %v1285
  %v1409 = vpop.f32.mrf.mxu0
  %v1410 = vadd.f32 %v71, %v1409
  %1411 = vmatmul.f32.gmra.mxu0 %v1288
  %v1412 = vpop.f32.mrf.mxu0
  %v1413 = vadd.f32 %v71, %v1412
  %1414 = vmatmul.f32.gmra.mxu0 %v1291
  %v1415 = vpop.f32.mrf.mxu0
  %v1416 = vadd.f32 %v71, %v1415
  %1417 = vmatmul.f32.gmra.mxu0 %v1294
  %v1418 = vpop.f32.mrf.mxu0
  %v1419 = vadd.f32 %v71, %v1418
  %1420 = vmatmul.f32.gmra.mxu0 %v1297
  %v1421 = vpop.f32.mrf.mxu0
  %v1422 = vadd.f32 %v71, %v1421
  %1423 = vmatmul.f32.gmra.mxu0 %v1300
  %v1424 = vpop.f32.mrf.mxu0
  %v1425 = vadd.f32 %v71, %v1424
  %1426 = vmatmul.f32.gmra.mxu0 %v1303
  %v1427 = vpop.f32.mrf.mxu0
  %v1428 = vadd.f32 %v71, %v1427
  %1429 = vmatmul.f32.gmra.mxu0 %v1306
  %v1430 = vpop.f32.mrf.mxu0
  %v1431 = vadd.f32 %v71, %v1430
  %1432 = vmatmul.f32.gmra.mxu0 %v1309
  %v1433 = vpop.f32.mrf.mxu0
  %v1434 = vadd.f32 %v71, %v1433
  %1435 = vmatmul.f32.gmra.mxu0 %v1312
  %v1436 = vpop.f32.mrf.mxu0
  %v1437 = vadd.f32 %v71, %v1436
  %1438 = vmatmul.f32.gmra.mxu0 %v1315
  %v1439 = vpop.f32.mrf.mxu0
  %v1440 = vadd.f32 %v71, %v1439
  %1441 = vmatmul.f32.gmra.mxu0 %v1318
  %v1442 = vpop.f32.mrf.mxu0
  %v1443 = vadd.f32 %v71, %v1442
  %1444 = vmatmul.f32.gmra.mxu0 %v1321
  %v1445 = vpop.f32.mrf.mxu0
  %v1446 = vadd.f32 %v71, %v1445
  %1447 = vmatmul.f32.gmra.mxu0 %v1324
  %v1448 = vpop.f32.mrf.mxu0
  %v1449 = vadd.f32 %v71, %v1448
  %1450 = vmatmul.f32.gmra.mxu0 %v1327
  %v1451 = vpop.f32.mrf.mxu0
  %v1452 = vadd.f32 %v71, %v1451
  %1453 = vmatmul.f32.gmra.mxu0 %v1330
  %v1454 = vpop.f32.mrf.mxu0
  %v1455 = vadd.f32 %v71, %v1454
  %1456 = vmatmul.f32.gmra.mxu0 %v1333
  %v1457 = vpop.f32.mrf.mxu0
  %v1458 = vadd.f32 %v71, %v1457
  %1459 = vmatmul.f32.gmra.mxu0 %v1336
  %v1460 = vpop.f32.mrf.mxu0
  %v1461 = vadd.f32 %v71, %v1460
  %1462 = vmatmul.f32.gmra.mxu0 %v1339
  %v1463 = vpop.f32.mrf.mxu0
  %v1464 = vadd.f32 %v71, %v1463
  %1465 = vmatmul.f32.gmra.mxu0 %v1342
  %v1466 = vpop.f32.mrf.mxu0
  %v1467 = vadd.f32 %v71, %v1466
  %1468 = vmatmul.f32.gmra.mxu0 %v1345
  %v1469 = vpop.f32.mrf.mxu0
  %v1470 = vadd.f32 %v71, %v1469
  %1471 = vmatmul.f32.gmra.mxu0 %v1348
  %v1472 = vpop.f32.mrf.mxu0
  %v1473 = vadd.f32 %v71, %v1472
  %1474 = vmatmul.f32.gmra.mxu0 %v1351
  %v1475 = vpop.f32.mrf.mxu0
  %v1476 = vadd.f32 %v71, %v1475
  %1477 = vmatmul.f32.gmra.mxu0 %v1354
  %v1478 = vpop.f32.mrf.mxu0
  %v1479 = vadd.f32 %v71, %v1478
  %1480 = vmatmul.f32.gmra.mxu0 %v1357
  %v1481 = vpop.f32.mrf.mxu0
  %v1482 = vadd.f32 %v71, %v1481
  %1483 = vdwg.mxu0
  %vm1484 = vcmp.ge.f32.partialorder %v1377, 0.0
  %vm1485 = vcmp.ge.f32.partialorder %v1380, 0.0
  %vm1486 = vcmp.ge.f32.partialorder %v1383, 0.0
  %vm1487 = vcmp.ge.f32.partialorder %v1386, 0.0
  %vm1488 = vcmp.ge.f32.partialorder %v1389, 0.0
  %vm1489 = vcmp.ge.f32.partialorder %v1392, 0.0
  %vm1490 = vcmp.ge.f32.partialorder %v1395, 0.0
  %vm1491 = vcmp.ge.f32.partialorder %v1398, 0.0
  %vm1492 = vcmp.ge.f32.partialorder %v1401, 0.0
  %vm1493 = vcmp.ge.f32.partialorder %v1404, 0.0
  %vm1494 = vcmp.ge.f32.partialorder %v1407, 0.0
  %vm1495 = vcmp.ge.f32.partialorder %v1410, 0.0
  %vm1496 = vcmp.ge.f32.partialorder %v1413, 0.0
  %vm1497 = vcmp.ge.f32.partialorder %v1416, 0.0
  %vm1498 = vcmp.ge.f32.partialorder %v1419, 0.0
  %vm1499 = vcmp.ge.f32.partialorder %v1422, 0.0
  %vm1500 = vcmp.ge.f32.partialorder %v1425, 0.0
  %vm1501 = vcmp.ge.f32.partialorder %v1428, 0.0
  %vm1502 = vcmp.ge.f32.partialorder %v1431, 0.0
  %vm1503 = vcmp.ge.f32.partialorder %v1434, 0.0
  %vm1504 = vcmp.ge.f32.partialorder %v1437, 0.0
  %vm1505 = vcmp.ge.f32.partialorder %v1440, 0.0
  %vm1506 = vcmp.ge.f32.partialorder %v1443, 0.0
  %vm1507 = vcmp.ge.f32.partialorder %v1446, 0.0
  %vm1508 = vcmp.ge.f32.partialorder %v1449, 0.0
  %vm1509 = vcmp.ge.f32.partialorder %v1452, 0.0
  %vm1510 = vcmp.ge.f32.partialorder %v1455, 0.0
  %vm1511 = vcmp.ge.f32.partialorder %v1458, 0.0
  %vm1512 = vcmp.ge.f32.partialorder %v1461, 0.0
  %vm1513 = vcmp.ge.f32.partialorder %v1464, 0.0
  %vm1514 = vcmp.ge.f32.partialorder %v1467, 0.0
  %vm1515 = vcmp.ge.f32.partialorder %v1470, 0.0
  %vm1516 = vcmp.ge.f32.partialorder %v1473, 0.0
  %vm1517 = vcmp.ge.f32.partialorder %v1476, 0.0
  %vm1518 = vcmp.ge.f32.partialorder %v1479, 0.0
  %vm1519 = vcmp.ge.f32.partialorder %v1482, 0.0
  %v1520 = vmul.f32 %v1377, %v351
  %v1521 = vmul.f32 %v1380, %v351
  %v1522 = vmul.f32 %v1383, %v351
  %v1523 = vmul.f32 %v1386, %v351
  %v1524 = vmul.f32 %v1389, %v351
  %v1525 = vmul.f32 %v1392, %v351
  %v1526 = vmul.f32 %v1395, %v351
  %v1527 = vmul.f32 %v1398, %v351
  %v1528 = vmul.f32 %v1401, %v351
  %v1529 = vmul.f32 %v1404, %v351
  %v1530 = vmul.f32 %v1407, %v351
  %v1531 = vmul.f32 %v1410, %v351
  %v1532 = vmul.f32 %v1413, %v351
  %v1533 = vmul.f32 %v1416, %v351
  %v1534 = vmul.f32 %v1419, %v351
  %v1535 = vmul.f32 %v1422, %v351
  %v1536 = vmul.f32 %v1425, %v351
  %v1537 = vmul.f32 %v1428, %v351
  %v1538 = vmul.f32 %v1431, %v351
  %v1539 = vmul.f32 %v1434, %v351
  %v1540 = vmul.f32 %v1437, %v351
  %v1541 = vmul.f32 %v1440, %v351
  %v1542 = vmul.f32 %v1443, %v351
  %v1543 = vmul.f32 %v1446, %v351
  %v1544 = vmul.f32 %v1449, %v351
  %v1545 = vmul.f32 %v1452, %v351
  %v1546 = vmul.f32 %v1455, %v351
  %v1547 = vmul.f32 %v1458, %v351
  %v1548 = vmul.f32 %v1461, %v351
  %v1549 = vmul.f32 %v1464, %v351
  %v1550 = vmul.f32 %v1467, %v351
  %v1551 = vmul.f32 %v1470, %v351
  %v1552 = vmul.f32 %v1473, %v351
  %v1553 = vmul.f32 %v1476, %v351
  %v1554 = vmul.f32 %v1479, %v351
  %v1555 = vmul.f32 %v1482, %v351
  %v1556 = vsel %vm1484, %v1377, %v1520
  %v1557 = vsel %vm1485, %v1380, %v1521
  %v1558 = vsel %vm1486, %v1383, %v1522
  %v1559 = vsel %vm1487, %v1386, %v1523
  %v1560 = vsel %vm1488, %v1389, %v1524
  %v1561 = vsel %vm1489, %v1392, %v1525
  %v1562 = vsel %vm1490, %v1395, %v1526
  %v1563 = vsel %vm1491, %v1398, %v1527
  %v1564 = vsel %vm1492, %v1401, %v1528
  %v1565 = vsel %vm1493, %v1404, %v1529
  %v1566 = vsel %vm1494, %v1407, %v1530
  %v1567 = vsel %vm1495, %v1410, %v1531
  %v1568 = vsel %vm1496, %v1413, %v1532
  %v1569 = vsel %vm1497, %v1416, %v1533
  %v1570 = vsel %vm1498, %v1419, %v1534
  %v1571 = vsel %vm1499, %v1422, %v1535
  %v1572 = vsel %vm1500, %v1425, %v1536
  %v1573 = vsel %vm1501, %v1428, %v1537
  %v1574 = vsel %vm1502, %v1431, %v1538
  %v1575 = vsel %vm1503, %v1434, %v1539
  %v1576 = vsel %vm1504, %v1437, %v1540
  %v1577 = vsel %vm1505, %v1440, %v1541
  %v1578 = vsel %vm1506, %v1443, %v1542
  %v1579 = vsel %vm1507, %v1446, %v1543
  %v1580 = vsel %vm1508, %v1449, %v1544
  %v1581 = vsel %vm1509, %v1452, %v1545
  %v1582 = vsel %vm1510, %v1455, %v1546
  %v1583 = vsel %vm1511, %v1458, %v1547
  %v1584 = vsel %vm1512, %v1461, %v1548
  %v1585 = vsel %vm1513, %v1464, %v1549
  %v1586 = vsel %vm1514, %v1467, %v1550
  %v1587 = vsel %vm1515, %v1470, %v1551
  %v1588 = vsel %vm1516, %v1473, %v1552
  %v1589 = vsel %vm1517, %v1476, %v1553
  %v1590 = vsel %vm1518, %v1479, %v1554
  %v1591 = vsel %vm1519, %v1482, %v1555
  %v1592 = vmax.f32 %v1179, %v1556
  %v1593 = vmax.f32 %v1180, %v1557
  %v1594 = vmax.f32 %v1181, %v1558
  %v1595 = vmax.f32 %v1182, %v1559
  %v1596 = vmax.f32 %v1183, %v1560
  %v1597 = vmax.f32 %v1184, %v1561
  %v1598 = vmax.f32 %v1185, %v1562
  %v1599 = vmax.f32 %v1186, %v1563
  %v1600 = vmax.f32 %v1187, %v1564
  %v1601 = vmax.f32 %v1188, %v1565
  %v1602 = vmax.f32 %v1189, %v1566
  %v1603 = vmax.f32 %v1190, %v1567
  %v1604 = vmax.f32 %v1191, %v1568
  %v1605 = vmax.f32 %v1192, %v1569
  %v1606 = vmax.f32 %v1193, %v1570
  %v1607 = vmax.f32 %v1194, %v1571
  %v1608 = vmax.f32 %v1195, %v1572
  %v1609 = vmax.f32 %v1196, %v1573
  %v1610 = vmax.f32 %v1197, %v1574
  %v1611 = vmax.f32 %v1198, %v1575
  %v1612 = vmax.f32 %v1199, %v1576
  %v1613 = vmax.f32 %v1200, %v1577
  %v1614 = vmax.f32 %v1201, %v1578
  %v1615 = vmax.f32 %v1202, %v1579
  %v1616 = vmax.f32 %v1203, %v1580
  %v1617 = vmax.f32 %v1204, %v1581
  %v1618 = vmax.f32 %v1205, %v1582
  %v1619 = vmax.f32 %v1206, %v1583
  %v1620 = vmax.f32 %v1207, %v1584
  %v1621 = vmax.f32 %v1208, %v1585
  %v1622 = vmax.f32 %v1209, %v1586
  %v1623 = vmax.f32 %v1210, %v1587
  %v1624 = vmax.f32 %v1211, %v1588
  %v1625 = vmax.f32 %v1212, %v1589
  %v1626 = vmax.f32 %v1213, %v1590
  %v1627 = vmax.f32 %v1214, %v1591
  %v1628 = vmax.f32 %v802, %v1592
  %v1629 = vmax.f32 %v803, %v1593
  %v1630 = vmax.f32 %v804, %v1594
  %v1631 = vmax.f32 %v805, %v1595
  %v1632 = vmax.f32 %v806, %v1596
  %v1633 = vmax.f32 %v807, %v1597
  %v1634 = vmax.f32 %v808, %v1598
  %v1635 = vmax.f32 %v809, %v1599
  %v1636 = vmax.f32 %v810, %v1600
  %v1637 = vmax.f32 %v811, %v1601
  %v1638 = vmax.f32 %v812, %v1602
  %v1639 = vmax.f32 %v813, %v1603
  %v1640 = vmax.f32 %v814, %v1604
  %v1641 = vmax.f32 %v815, %v1605
  %v1642 = vmax.f32 %v816, %v1606
  %v1643 = vmax.f32 %v817, %v1607
  %v1644 = vmax.f32 %v818, %v1608
  %v1645 = vmax.f32 %v819, %v1609
  %v1646 = vmax.f32 %v820, %v1610
  %v1647 = vmax.f32 %v821, %v1611
  %v1648 = vmax.f32 %v822, %v1612
  %v1649 = vmax.f32 %v823, %v1613
  %v1650 = vmax.f32 %v824, %v1614
  %v1651 = vmax.f32 %v825, %v1615
  %v1652 = vmax.f32 %v826, %v1616
  %v1653 = vmax.f32 %v827, %v1617
  %v1654 = vmax.f32 %v828, %v1618
  %v1655 = vmax.f32 %v829, %v1619
  %v1656 = vmax.f32 %v830, %v1620
  %v1657 = vmax.f32 %v831, %v1621
  %v1658 = vmax.f32 %v832, %v1622
  %v1659 = vmax.f32 %v833, %v1623
  %v1660 = vmax.f32 %v834, %v1624
  %v1661 = vmax.f32 %v835, %v1625
  %v1662 = vmax.f32 %v836, %v1626
  %v1663 = vmax.f32 %v837, %v1627
  %vm1664 = vcmask 261120
  %1665 = vst.msk [vmem:[%s7] sm:$0xff] %vm1664, %v1628
  %1666 = vst.msk [vmem:[%s7 + $0x8] sm:$0xff] %vm1664, %v1629
  %1667 = vst.msk [vmem:[%s7 + $0x10] sm:$0xff] %vm1664, %v1630
  %1668 = vst.msk [vmem:[%s7 + $0x18] sm:$0xff] %vm1664, %v1631
  %1669 = vst.msk [vmem:[%s7 + $0x20] sm:$0xff] %vm1664, %v1632
  %1670 = vst.msk [vmem:[%s7 + $0x28] sm:$0xff] %vm1664, %v1633
  %1671 = vst.msk [vmem:[%s7 + $0x30] sm:$0xff] %vm1664, %v1634
  %1672 = vst.msk [vmem:[%s7 + $0x38] sm:$0xff] %vm1664, %v1635
  %1673 = vst.msk [vmem:[%s7 + $0x40] sm:$0xff] %vm1664, %v1636
  %1674 = vst.msk [vmem:[%s7 + $0x48] sm:$0xff] %vm1664, %v1637
  %1675 = vst.msk [vmem:[%s7 + $0x50] sm:$0xff] %vm1664, %v1638
  %1676 = vst.msk [vmem:[%s7 + $0x58] sm:$0xff] %vm1664, %v1639
  %1677 = vst.msk [vmem:[%s7 + $0x60] sm:$0xff] %vm1664, %v1640
  %1678 = vst.msk [vmem:[%s7 + $0x68] sm:$0xff] %vm1664, %v1641
  %1679 = vst.msk [vmem:[%s7 + $0x70] sm:$0xff] %vm1664, %v1642
  %1680 = vst.msk [vmem:[%s7 + $0x78] sm:$0xff] %vm1664, %v1643
  %1681 = vst.msk [vmem:[%s7 + $0x80] sm:$0xff] %vm1664, %v1644
  %1682 = vst.msk [vmem:[%s7 + $0x88] sm:$0xff] %vm1664, %v1645
  %1683 = vst.msk [vmem:[%s7 + $0x90] sm:$0xff] %vm1664, %v1646
  %1684 = vst.msk [vmem:[%s7 + $0x98] sm:$0xff] %vm1664, %v1647
  %1685 = vst.msk [vmem:[%s7 + $0xa0] sm:$0xff] %vm1664, %v1648
  %1686 = vst.msk [vmem:[%s7 + $0xa8] sm:$0xff] %vm1664, %v1649
  %1687 = vst.msk [vmem:[%s7 + $0xb0] sm:$0xff] %vm1664, %v1650
  %1688 = vst.msk [vmem:[%s7 + $0xb8] sm:$0xff] %vm1664, %v1651
  %1689 = vst.msk [vmem:[%s7 + $0xc0] sm:$0xff] %vm1664, %v1652
  %1690 = vst.msk [vmem:[%s7 + $0xc8] sm:$0xff] %vm1664, %v1653
  %1691 = vst.msk [vmem:[%s7 + $0xd0] sm:$0xff] %vm1664, %v1654
  %1692 = vst.msk [vmem:[%s7 + $0xd8] sm:$0xff] %vm1664, %v1655
  %1693 = vst.msk [vmem:[%s7 + $0xe0] sm:$0xff] %vm1664, %v1656
  %1694 = vst.msk [vmem:[%s7 + $0xe8] sm:$0xff] %vm1664, %v1657
  %1695 = vst.msk [vmem:[%s7 + $0xf0] sm:$0xff] %vm1664, %v1658
  %1696 = vst.msk [vmem:[%s7 + $0xf8] sm:$0xff] %vm1664, %v1659
  %1697 = vst.msk [vmem:[%s7 + $0x100] sm:$0xff] %vm1664, %v1660
  %1698 = vst.msk [vmem:[%s7 + $0x108] sm:$0xff] %vm1664, %v1661
  %1699 = vst.msk [vmem:[%s7 + $0x110] sm:$0xff] %vm1664, %v1662
  %1700 = vst.msk [vmem:[%s7 + $0x118] sm:$0xff] %vm1664, %v1663
  // Predicated region
  $region30: #{embedding_net_l2_forward.3} parent=0 // pred_check
    _
  $region31: #{embedding_net_l2_forward.3} parent=0 // pred_check_branch
    %1702 = sbr.rel (0) target = $region33
  $region32: #{embedding_net_l2_forward.3} parent=0 // pred_region
    _
  $region33: #{embedding_net_l2_forward.3} parent=0 // pred_fallthru
    _
  // Predicated region
  $region34: #{embedding_net_l2_forward.3} parent=0 // pred_check
    _
  $region35: #{embedding_net_l2_forward.3} parent=0 // pred_check_branch
    %1704 = sbr.rel (0) target = $region37
  $region36: #{embedding_net_l2_forward.3} parent=0 // pred_region
    _
  $region37: #{embedding_net_l2_forward.3} parent=0 // pred_fallthru
    _

// kernel: embedding_net_l2_forward.4
$region0: #{embedding_net_l2_forward.4}
  #allocation0 [shape = 'u32[]', space=smem, size = 0x4, offset = 0x4, fixed_abs, tag = 'smem constant byte address 0x4 - core index']
  #allocation1 [shape = 'u32[72,128]{1,0:T(1,128)}', space=vmem, size = 0x9000, scoped, tag = 'internal scratch']
  #allocation2 [shape = 'f32[1,1]{1,0:T(1,128)S(1)}', space=vmem, size = 0x200, scoped, tag = 'scoped memory for embedding_net_l2_forward.4']
  %s0 = inlined_call_operand.vmem [shape: f32[32,800], index: 0, kind: input, shape index: {}]
  %s1 = inlined_call_operand.vmem [shape: f32[32,800], index: 1, kind: input, shape index: {}]
  %s2 = inlined_call_operand.vmem [shape: f32[32,800], index: 2, kind: input, shape index: {}]
  %s3 = inlined_call_operand.vmem [shape: f32[32,800], index: 3, kind: input, shape index: {}]
  %s4 = inlined_call_operand.vmem [shape: f32[800,64], index: 4, kind: input, shape index: {}]
  %s5 = inlined_call_operand.vmem [shape: f32[1,64], index: 5, kind: input, shape index: {}]
  %s6 = inlined_call_operand.<no memory space> [shape: f32[1,1], index: 6, kind: input, shape index: {}]
  %s7 = inlined_call_operand.vmem [shape: f32[32,64], index: 7, kind: output, shape index: {}]
  %s8 = sld [smem:[#allocation0]]
  $region38: #{embedding_net_l2_forward.4} parent=0
    _
  %s10 = ssub.s32 1, %s8
  %s11 = scalar_select 0, %s10, %s8
  %v12 = vstv %s6
  %13 = vst [vmem:[#allocation2] sm:$0x1] %v12
  // Predicated region
  $region2: #{embedding_net_l2_forward.4} parent=0 // pred_check
    _
  $region3: #{embedding_net_l2_forward.4} parent=0 // pred_check_branch
    %15 = sbr.rel (0) target = $region5
  $region4: #{embedding_net_l2_forward.4} parent=0 // pred_region
    _
  $region5: #{embedding_net_l2_forward.4} parent=0 // pred_fallthru
    _
  // Predicated region
  $region6: #{embedding_net_l2_forward.4} parent=0 // pred_check
    _
  $region7: #{embedding_net_l2_forward.4} parent=0 // pred_check_branch
    %17 = sbr.rel (0) target = $region9
  $region8: #{embedding_net_l2_forward.4} parent=0 // pred_region
    _
  $region9: #{embedding_net_l2_forward.4} parent=0 // pred_fallthru
    _
  // Predicated region
  $region10: #{embedding_net_l2_forward.4} parent=0 // pred_check
    _
  $region11: #{embedding_net_l2_forward.4} parent=0 // pred_check_branch
    %19 = sbr.rel (0) target = $region13
  $region12: #{embedding_net_l2_forward.4} parent=0 // pred_region
    _
  $region13: #{embedding_net_l2_forward.4} parent=0 // pred_fallthru
    _
  // Predicated region
  $region14: #{embedding_net_l2_forward.4} parent=0 // pred_check
    _
  $region15: #{embedding_net_l2_forward.4} parent=0 // pred_check_branch
    %21 = sbr.rel (0) target = $region17
  $region16: #{embedding_net_l2_forward.4} parent=0 // pred_region
    _
  $region17: #{embedding_net_l2_forward.4} parent=0 // pred_fallthru
    _
  // Predicated region
  $region18: #{embedding_net_l2_forward.4} parent=0 // pred_check
    _
  $region19: #{embedding_net_l2_forward.4} parent=0 // pred_check_branch
    %23 = sbr.rel (0) target = $region21
  $region20: #{embedding_net_l2_forward.4} parent=0 // pred_region
    _
  $region21: #{embedding_net_l2_forward.4} parent=0 // pred_fallthru
    _
  // Predicated region
  $region22: #{embedding_net_l2_forward.4} parent=0 // pred_check
    _
  $region23: #{embedding_net_l2_forward.4} parent=0 // pred_check_branch
    %25 = sbr.rel (0) target = $region25
  $region24: #{embedding_net_l2_forward.4} parent=0 // pred_region
    _
  $region25: #{embedding_net_l2_forward.4} parent=0 // pred_fallthru
    _
  // Predicated region
  $region26: #{embedding_net_l2_forward.4} parent=0 // pred_check
    _
  $region27: #{embedding_net_l2_forward.4} parent=0 // pred_check_branch
    %27 = sbr.rel (0) target = $region29
  $region28: #{embedding_net_l2_forward.4} parent=0 // pred_region
    _
  $region29: #{embedding_net_l2_forward.4} parent=0 // pred_fallthru
    _
  %v28 = vld [vmem:[%s4] sm:$0xff]
  %v29 = vld [vmem:[%s4 + $0x8] sm:$0xff]
  %v30 = vld [vmem:[%s4 + $0x10] sm:$0xff]
  %v31 = vld [vmem:[%s4 + $0x18] sm:$0xff]
  %v32 = vld [vmem:[%s4 + $0x20] sm:$0xff]
  %v33 = vld [vmem:[%s4 + $0x28] sm:$0xff]
  %v34 = vld [vmem:[%s4 + $0x30] sm:$0xff]
  %v35 = vld [vmem:[%s4 + $0x38] sm:$0xff]
  %v36 = vld [vmem:[%s4 + $0x40] sm:$0xff]
  %v37 = vld [vmem:[%s4 + $0x48] sm:$0xff]
  %v38 = vld [vmem:[%s4 + $0x50] sm:$0xff]
  %v39 = vld [vmem:[%s4 + $0x58] sm:$0xff]
  %v40 = vld [vmem:[%s4 + $0x60] sm:$0xff]
  %v41 = vld [vmem:[%s4 + $0x68] sm:$0xff]
  %v42 = vld [vmem:[%s4 + $0x70] sm:$0xff]
  %v43 = vld [vmem:[%s4 + $0x78] sm:$0xff]
  %v44 = vld [vmem:[%s4 + $0x80] sm:$0xff]
  %v45 = vld [vmem:[%s4 + $0x88] sm:$0xff]
  %v46 = vld [vmem:[%s4 + $0x90] sm:$0xff]
  %v47 = vld [vmem:[%s4 + $0x98] sm:$0xff]
  %v48 = vld [vmem:[%s4 + $0xa0] sm:$0xff]
  %v49 = vld [vmem:[%s4 + $0xa8] sm:$0xff]
  %v50 = vld [vmem:[%s4 + $0xb0] sm:$0xff]
  %v51 = vld [vmem:[%s4 + $0xb8] sm:$0xff]
  %v52 = vld [vmem:[%s4 + $0xc0] sm:$0xff]
  %v53 = vld [vmem:[%s4 + $0xc8] sm:$0xff]
  %v54 = vld [vmem:[%s4 + $0xd0] sm:$0xff]
  %v55 = vld [vmem:[%s4 + $0xd8] sm:$0xff]
  %v56 = vld [vmem:[%s4 + $0xe0] sm:$0xff]
  %v57 = vld [vmem:[%s4 + $0xe8] sm:$0xff]
  %v58 = vld [vmem:[%s4 + $0xf0] sm:$0xff]
  %v59 = vld [vmem:[%s4 + $0xf8] sm:$0xff]
  %v60 = vld [vmem:[%s4 + $0x100] sm:$0xff]
  %v61 = vld [vmem:[%s4 + $0x108] sm:$0xff]
  %v62 = vld [vmem:[%s4 + $0x110] sm:$0xff]
  %v63 = vld [vmem:[%s4 + $0x118] sm:$0xff]
  %v64 = vld [vmem:[%s4 + $0x120] sm:$0xff]
  %v65 = vld [vmem:[%s4 + $0x128] sm:$0xff]
  %v66 = vld [vmem:[%s4 + $0x130] sm:$0xff]
  %v67 = vld [vmem:[%s4 + $0x138] sm:$0xff]
  %v68 = vld [vmem:[%s4 + $0x140] sm:$0xff]
  %v69 = vld [vmem:[%s4 + $0x148] sm:$0xff]
  %v70 = vld [vmem:[%s4 + $0x150] sm:$0xff]
  %v71 = vld [vmem:[%s4 + $0x158] sm:$0xff]
  %v72 = vld [vmem:[%s4 + $0x160] sm:$0xff]
  %v73 = vld [vmem:[%s4 + $0x168] sm:$0xff]
  %v74 = vld [vmem:[%s4 + $0x170] sm:$0xff]
  %v75 = vld [vmem:[%s4 + $0x178] sm:$0xff]
  %v76 = vld [vmem:[%s4 + $0x180] sm:$0xff]
  %v77 = vld [vmem:[%s4 + $0x188] sm:$0xff]
  %v78 = vld [vmem:[%s4 + $0x190] sm:$0xff]
  %v79 = vld [vmem:[%s4 + $0x198] sm:$0xff]
  %v80 = vld [vmem:[%s4 + $0x1a0] sm:$0xff]
  %v81 = vld [vmem:[%s4 + $0x1a8] sm:$0xff]
  %v82 = vld [vmem:[%s4 + $0x1b0] sm:$0xff]
  %v83 = vld [vmem:[%s4 + $0x1b8] sm:$0xff]
  %v84 = vld [vmem:[%s4 + $0x1c0] sm:$0xff]
  %v85 = vld [vmem:[%s4 + $0x1c8] sm:$0xff]
  %v86 = vld [vmem:[%s4 + $0x1d0] sm:$0xff]
  %v87 = vld [vmem:[%s4 + $0x1d8] sm:$0xff]
  %v88 = vld [vmem:[%s4 + $0x1e0] sm:$0xff]
  %v89 = vld [vmem:[%s4 + $0x1e8] sm:$0xff]
  %v90 = vld [vmem:[%s4 + $0x1f0] sm:$0xff]
  %v91 = vld [vmem:[%s4 + $0x1f8] sm:$0xff]
  %v92 = vld [vmem:[%s4 + $0x200] sm:$0xff]
  %v93 = vld [vmem:[%s4 + $0x208] sm:$0xff]
  %v94 = vld [vmem:[%s4 + $0x210] sm:$0xff]
  %v95 = vld [vmem:[%s4 + $0x218] sm:$0xff]
  %v96 = vld [vmem:[%s4 + $0x220] sm:$0xff]
  %v97 = vld [vmem:[%s4 + $0x228] sm:$0xff]
  %v98 = vld [vmem:[%s4 + $0x230] sm:$0xff]
  %v99 = vld [vmem:[%s4 + $0x238] sm:$0xff]
  %v100 = vld [vmem:[%s4 + $0x240] sm:$0xff]
  %v101 = vld [vmem:[%s4 + $0x248] sm:$0xff]
  %v102 = vld [vmem:[%s4 + $0x250] sm:$0xff]
  %v103 = vld [vmem:[%s4 + $0x258] sm:$0xff]
  %v104 = vld [vmem:[%s4 + $0x260] sm:$0xff]
  %v105 = vld [vmem:[%s4 + $0x268] sm:$0xff]
  %v106 = vld [vmem:[%s4 + $0x270] sm:$0xff]
  %v107 = vld [vmem:[%s4 + $0x278] sm:$0xff]
  %v108 = vld [vmem:[%s4 + $0x280] sm:$0xff]
  %v109 = vld [vmem:[%s4 + $0x288] sm:$0xff]
  %v110 = vld [vmem:[%s4 + $0x290] sm:$0xff]
  %v111 = vld [vmem:[%s4 + $0x298] sm:$0xff]
  %v112 = vld [vmem:[%s4 + $0x2a0] sm:$0xff]
  %v113 = vld [vmem:[%s4 + $0x2a8] sm:$0xff]
  %v114 = vld [vmem:[%s4 + $0x2b0] sm:$0xff]
  %v115 = vld [vmem:[%s4 + $0x2b8] sm:$0xff]
  %v116 = vld [vmem:[%s4 + $0x2c0] sm:$0xff]
  %v117 = vld [vmem:[%s4 + $0x2c8] sm:$0xff]
  %v118 = vld [vmem:[%s4 + $0x2d0] sm:$0xff]
  %v119 = vld [vmem:[%s4 + $0x2d8] sm:$0xff]
  %v120 = vld [vmem:[%s4 + $0x2e0] sm:$0xff]
  %v121 = vld [vmem:[%s4 + $0x2e8] sm:$0xff]
  %v122 = vld [vmem:[%s4 + $0x2f0] sm:$0xff]
  %v123 = vld [vmem:[%s4 + $0x2f8] sm:$0xff]
  %v124 = vld [vmem:[%s4 + $0x300] sm:$0xff]
  %v125 = vld [vmem:[%s4 + $0x308] sm:$0xff]
  %v126 = vld [vmem:[%s4 + $0x310] sm:$0xff]
  %v127 = vld [vmem:[%s4 + $0x318] sm:$0xff]
  %v128 = vld [vmem:[%s5] sm:$0x1]
  %v129 = vld [vmem:[#allocation2] sm:$0x1]
  %v130 = vld [vmem:[%s0] sm:$0xff]
  %v131 = vld [vmem:[%s0 + $0x8] sm:$0xff]
  %v132 = vld [vmem:[%s0 + $0x10] sm:$0xff]
  %v133 = vld [vmem:[%s0 + $0x18] sm:$0xff]
  %v134 = vld [vmem:[%s0 + $0x20] sm:$0xff]
  %v135 = vld [vmem:[%s0 + $0x28] sm:$0xff]
  %v136 = vld [vmem:[%s0 + $0x30] sm:$0xff]
  %v137 = vld [vmem:[%s0 + $0x38] sm:$0xff]
  %v138 = vld [vmem:[%s0 + $0x40] sm:$0xff]
  %v139 = vld [vmem:[%s0 + $0x48] sm:$0xff]
  %v140 = vld [vmem:[%s0 + $0x50] sm:$0xff]
  %v141 = vld [vmem:[%s0 + $0x58] sm:$0xff]
  %v142 = vld [vmem:[%s0 + $0x60] sm:$0xff]
  %v143 = vld [vmem:[%s0 + $0x68] sm:$0xff]
  %v144 = vld [vmem:[%s0 + $0x70] sm:$0xff]
  %v145 = vld [vmem:[%s0 + $0x78] sm:$0xff]
  %v146 = vld [vmem:[%s0 + $0x80] sm:$0xff]
  %v147 = vld [vmem:[%s0 + $0x88] sm:$0xff]
  %v148 = vld [vmem:[%s0 + $0x90] sm:$0xff]
  %v149 = vld [vmem:[%s0 + $0x98] sm:$0xff]
  %v150 = vld [vmem:[%s0 + $0xa0] sm:$0xff]
  %v151 = vld [vmem:[%s0 + $0xa8] sm:$0xff]
  %v152 = vld [vmem:[%s0 + $0xb0] sm:$0xff]
  %v153 = vld [vmem:[%s0 + $0xb8] sm:$0xff]
  %v154 = vld [vmem:[%s0 + $0xc0] sm:$0xff]
  %v155 = vld [vmem:[%s0 + $0xc8] sm:$0xff]
  %v156 = vld [vmem:[%s0 + $0xd0] sm:$0xff]
  %v157 = vld [vmem:[%s0 + $0xd8] sm:$0xff]
  %v159 = vperm.slane %v128, 0
  %vm161 = vcmask 261120
  %v163 = vsel %vm161, %v136, 0
  %v166 = vsel %vm161, %v143, 0
  %v169 = vsel %vm161, %v150, 0
  %v172 = vsel %vm161, %v157, 0
  %174 = vmatpush.msra.mxu0 %v43
  %175 = vmatpush.msra.mxu0 %v42
  %176 = vmatpush.msra.mxu0 %v41
  %177 = vmatpush.msra.mxu0 %v40
  %178 = vmatpush.msra.mxu0 %v39
  %179 = vmatpush.msra.mxu0 %v38
  %180 = vmatpush.msra.mxu0 %v37
  %181 = vmatpush.msra.mxu0 %v36
  %182 = vmatpush.msra.mxu0 %v35
  %183 = vmatpush.msra.mxu0 %v34
  %184 = vmatpush.msra.mxu0 %v33
  %185 = vmatpush.msra.mxu0 %v32
  %186 = vmatpush.msra.mxu0 %v31
  %187 = vmatpush.msra.mxu0 %v30
  %188 = vmatpush.msra.mxu0 %v29
  %189 = vmatpush.msra.mxu0 %v28
  %190 = vmatmul.f32.gmra.mxu0 %v130
  %v191 = vpop.f32.mrf.mxu0
  %v192 = vadd.f32 %v159, %v191
  %193 = vmatmul.f32.gmra.mxu0 %v137
  %v194 = vpop.f32.mrf.mxu0
  %v195 = vadd.f32 %v159, %v194
  %196 = vmatmul.f32.gmra.mxu0 %v144
  %v197 = vpop.f32.mrf.mxu0
  %v198 = vadd.f32 %v159, %v197
  %199 = vmatmul.f32.gmra.mxu0 %v151
  %v200 = vpop.f32.mrf.mxu0
  %v201 = vadd.f32 %v159, %v200
  %202 = vdwg.mxu0
  %203 = vmatpush.msra.mxu0 %v59
  %204 = vmatpush.msra.mxu0 %v58
  %205 = vmatpush.msra.mxu0 %v57
  %206 = vmatpush.msra.mxu0 %v56
  %207 = vmatpush.msra.mxu0 %v55
  %208 = vmatpush.msra.mxu0 %v54
  %209 = vmatpush.msra.mxu0 %v53
  %210 = vmatpush.msra.mxu0 %v52
  %211 = vmatpush.msra.mxu0 %v51
  %212 = vmatpush.msra.mxu0 %v50
  %213 = vmatpush.msra.mxu0 %v49
  %214 = vmatpush.msra.mxu0 %v48
  %215 = vmatpush.msra.mxu0 %v47
  %216 = vmatpush.msra.mxu0 %v46
  %217 = vmatpush.msra.mxu0 %v45
  %218 = vmatpush.msra.mxu0 %v44
  %219 = vmatmul.f32.gmra.mxu0 %v131
  %v220 = vpop.f32.mrf.mxu0
  %v221 = vadd.f32 %v192, %v220
  %222 = vmatmul.f32.gmra.mxu0 %v138
  %v223 = vpop.f32.mrf.mxu0
  %v224 = vadd.f32 %v195, %v223
  %225 = vmatmul.f32.gmra.mxu0 %v145
  %v226 = vpop.f32.mrf.mxu0
  %v227 = vadd.f32 %v198, %v226
  %228 = vmatmul.f32.gmra.mxu0 %v152
  %v229 = vpop.f32.mrf.mxu0
  %v230 = vadd.f32 %v201, %v229
  %231 = vdwg.mxu0
  %232 = vmatpush.msra.mxu0 %v75
  %233 = vmatpush.msra.mxu0 %v74
  %234 = vmatpush.msra.mxu0 %v73
  %235 = vmatpush.msra.mxu0 %v72
  %236 = vmatpush.msra.mxu0 %v71
  %237 = vmatpush.msra.mxu0 %v70
  %238 = vmatpush.msra.mxu0 %v69
  %239 = vmatpush.msra.mxu0 %v68
  %240 = vmatpush.msra.mxu0 %v67
  %241 = vmatpush.msra.mxu0 %v66
  %242 = vmatpush.msra.mxu0 %v65
  %243 = vmatpush.msra.mxu0 %v64
  %244 = vmatpush.msra.mxu0 %v63
  %245 = vmatpush.msra.mxu0 %v62
  %246 = vmatpush.msra.mxu0 %v61
  %247 = vmatpush.msra.mxu0 %v60
  %248 = vmatmul.f32.gmra.mxu0 %v132
  %v249 = vpop.f32.mrf.mxu0
  %v250 = vadd.f32 %v221, %v249
  %251 = vmatmul.f32.gmra.mxu0 %v139
  %v252 = vpop.f32.mrf.mxu0
  %v253 = vadd.f32 %v224, %v252
  %254 = vmatmul.f32.gmra.mxu0 %v146
  %v255 = vpop.f32.mrf.mxu0
  %v256 = vadd.f32 %v227, %v255
  %257 = vmatmul.f32.gmra.mxu0 %v153
  %v258 = vpop.f32.mrf.mxu0
  %v259 = vadd.f32 %v230, %v258
  %260 = vdwg.mxu0
  %261 = vmatpush.msra.mxu0 %v91
  %262 = vmatpush.msra.mxu0 %v90
  %263 = vmatpush.msra.mxu0 %v89
  %264 = vmatpush.msra.mxu0 %v88
  %265 = vmatpush.msra.mxu0 %v87
  %266 = vmatpush.msra.mxu0 %v86
  %267 = vmatpush.msra.mxu0 %v85
  %268 = vmatpush.msra.mxu0 %v84
  %269 = vmatpush.msra.mxu0 %v83
  %270 = vmatpush.msra.mxu0 %v82
  %271 = vmatpush.msra.mxu0 %v81
  %272 = vmatpush.msra.mxu0 %v80
  %273 = vmatpush.msra.mxu0 %v79
  %274 = vmatpush.msra.mxu0 %v78
  %275 = vmatpush.msra.mxu0 %v77
  %276 = vmatpush.msra.mxu0 %v76
  %277 = vmatmul.f32.gmra.mxu0 %v133
  %v278 = vpop.f32.mrf.mxu0
  %v279 = vadd.f32 %v250, %v278
  %280 = vmatmul.f32.gmra.mxu0 %v140
  %v281 = vpop.f32.mrf.mxu0
  %v282 = vadd.f32 %v253, %v281
  %283 = vmatmul.f32.gmra.mxu0 %v147
  %v284 = vpop.f32.mrf.mxu0
  %v285 = vadd.f32 %v256, %v284
  %286 = vmatmul.f32.gmra.mxu0 %v154
  %v287 = vpop.f32.mrf.mxu0
  %v288 = vadd.f32 %v259, %v287
  %289 = vdwg.mxu0
  %290 = vmatpush.msra.mxu0 %v107
  %291 = vmatpush.msra.mxu0 %v106
  %292 = vmatpush.msra.mxu0 %v105
  %293 = vmatpush.msra.mxu0 %v104
  %294 = vmatpush.msra.mxu0 %v103
  %295 = vmatpush.msra.mxu0 %v102
  %296 = vmatpush.msra.mxu0 %v101
  %297 = vmatpush.msra.mxu0 %v100
  %298 = vmatpush.msra.mxu0 %v99
  %299 = vmatpush.msra.mxu0 %v98
  %300 = vmatpush.msra.mxu0 %v97
  %301 = vmatpush.msra.mxu0 %v96
  %302 = vmatpush.msra.mxu0 %v95
  %303 = vmatpush.msra.mxu0 %v94
  %304 = vmatpush.msra.mxu0 %v93
  %305 = vmatpush.msra.mxu0 %v92
  %306 = vmatmul.f32.gmra.mxu0 %v134
  %v307 = vpop.f32.mrf.mxu0
  %v308 = vadd.f32 %v279, %v307
  %309 = vmatmul.f32.gmra.mxu0 %v141
  %v310 = vpop.f32.mrf.mxu0
  %v311 = vadd.f32 %v282, %v310
  %312 = vmatmul.f32.gmra.mxu0 %v148
  %v313 = vpop.f32.mrf.mxu0
  %v314 = vadd.f32 %v285, %v313
  %315 = vmatmul.f32.gmra.mxu0 %v155
  %v316 = vpop.f32.mrf.mxu0
  %v317 = vadd.f32 %v288, %v316
  %318 = vdwg.mxu0
  %319 = vmatpush.msra.mxu0 %v123
  %320 = vmatpush.msra.mxu0 %v122
  %321 = vmatpush.msra.mxu0 %v121
  %322 = vmatpush.msra.mxu0 %v120
  %323 = vmatpush.msra.mxu0 %v119
  %324 = vmatpush.msra.mxu0 %v118
  %325 = vmatpush.msra.mxu0 %v117
  %326 = vmatpush.msra.mxu0 %v116
  %327 = vmatpush.msra.mxu0 %v115
  %328 = vmatpush.msra.mxu0 %v114
  %329 = vmatpush.msra.mxu0 %v113
  %330 = vmatpush.msra.mxu0 %v112
  %331 = vmatpush.msra.mxu0 %v111
  %332 = vmatpush.msra.mxu0 %v110
  %333 = vmatpush.msra.mxu0 %v109
  %334 = vmatpush.msra.mxu0 %v108
  %335 = vmatmul.f32.gmra.mxu0 %v135
  %v336 = vpop.f32.mrf.mxu0
  %v337 = vadd.f32 %v308, %v336
  %338 = vmatmul.f32.gmra.mxu0 %v142
  %v339 = vpop.f32.mrf.mxu0
  %v340 = vadd.f32 %v311, %v339
  %341 = vmatmul.f32.gmra.mxu0 %v149
  %v342 = vpop.f32.mrf.mxu0
  %v343 = vadd.f32 %v314, %v342
  %344 = vmatmul.f32.gmra.mxu0 %v156
  %v345 = vpop.f32.mrf.mxu0
  %v346 = vadd.f32 %v317, %v345
  %347 = vdwg.mxu0
  %348 = vmatpush.msra.mxu0 0.0
  %349 = vmatpush.msra.mxu0 0.0
  %350 = vmatpush.msra.mxu0 0.0
  %351 = vmatpush.msra.mxu0 0.0
  %352 = vmatpush.msra.mxu0 0.0
  %353 = vmatpush.msra.mxu0 0.0
  %354 = vmatpush.msra.mxu0 0.0
  %355 = vmatpush.msra.mxu0 0.0
  %356 = vmatpush.msra.mxu0 0.0
  %357 = vmatpush.msra.mxu0 0.0
  %358 = vmatpush.msra.mxu0 0.0
  %359 = vmatpush.msra.mxu0 0.0
  %360 = vmatpush.msra.mxu0 %v127
  %361 = vmatpush.msra.mxu0 %v126
  %362 = vmatpush.msra.mxu0 %v125
  %363 = vmatpush.msra.mxu0 %v124
  %364 = vmatmul.f32.gmra.mxu0 %v163
  %v365 = vpop.f32.mrf.mxu0
  %v366 = vadd.f32 %v337, %v365
  %367 = vmatmul.f32.gmra.mxu0 %v166
  %v368 = vpop.f32.mrf.mxu0
  %v369 = vadd.f32 %v340, %v368
  %370 = vmatmul.f32.gmra.mxu0 %v169
  %v371 = vpop.f32.mrf.mxu0
  %v372 = vadd.f32 %v343, %v371
  %373 = vmatmul.f32.gmra.mxu0 %v172
  %v374 = vpop.f32.mrf.mxu0
  %v375 = vadd.f32 %v346, %v374
  %376 = vdwg.mxu0
  %vm377 = vcmp.ge.f32.partialorder %v366, 0.0
  %vm378 = vcmp.ge.f32.partialorder %v369, 0.0
  %vm379 = vcmp.ge.f32.partialorder %v372, 0.0
  %vm380 = vcmp.ge.f32.partialorder %v375, 0.0
  %v382 = vperm.slane %v129, 0
  %383 = vset.pattern.permute.xlu0 0
  %384 = vperm.xlu0 %383, %v382
  %v385 = vpop.permute.xlu0 %384
  %v387 = vmul.f32 %v366, %v385
  %v388 = vmul.f32 %v369, %v385
  %v389 = vmul.f32 %v372, %v385
  %v390 = vmul.f32 %v375, %v385
  %v391 = vsel %vm377, %v366, %v387
  %v392 = vsel %vm378, %v369, %v388
  %v393 = vsel %vm379, %v372, %v389
  %v394 = vsel %vm380, %v375, %v390
  %v395 = vld [vmem:[%s1] sm:$0xff]
  %v396 = vld [vmem:[%s1 + $0x8] sm:$0xff]
  %v397 = vld [vmem:[%s1 + $0x10] sm:$0xff]
  %v398 = vld [vmem:[%s1 + $0x18] sm:$0xff]
  %v399 = vld [vmem:[%s1 + $0x20] sm:$0xff]
  %v400 = vld [vmem:[%s1 + $0x28] sm:$0xff]
  %v401 = vld [vmem:[%s1 + $0x30] sm:$0xff]
  %v402 = vld [vmem:[%s1 + $0x38] sm:$0xff]
  %v403 = vld [vmem:[%s1 + $0x40] sm:$0xff]
  %v404 = vld [vmem:[%s1 + $0x48] sm:$0xff]
  %v405 = vld [vmem:[%s1 + $0x50] sm:$0xff]
  %v406 = vld [vmem:[%s1 + $0x58] sm:$0xff]
  %v407 = vld [vmem:[%s1 + $0x60] sm:$0xff]
  %v408 = vld [vmem:[%s1 + $0x68] sm:$0xff]
  %v409 = vld [vmem:[%s1 + $0x70] sm:$0xff]
  %v410 = vld [vmem:[%s1 + $0x78] sm:$0xff]
  %v411 = vld [vmem:[%s1 + $0x80] sm:$0xff]
  %v412 = vld [vmem:[%s1 + $0x88] sm:$0xff]
  %v413 = vld [vmem:[%s1 + $0x90] sm:$0xff]
  %v414 = vld [vmem:[%s1 + $0x98] sm:$0xff]
  %v415 = vld [vmem:[%s1 + $0xa0] sm:$0xff]
  %v416 = vld [vmem:[%s1 + $0xa8] sm:$0xff]
  %v417 = vld [vmem:[%s1 + $0xb0] sm:$0xff]
  %v418 = vld [vmem:[%s1 + $0xb8] sm:$0xff]
  %v419 = vld [vmem:[%s1 + $0xc0] sm:$0xff]
  %v420 = vld [vmem:[%s1 + $0xc8] sm:$0xff]
  %v421 = vld [vmem:[%s1 + $0xd0] sm:$0xff]
  %v422 = vld [vmem:[%s1 + $0xd8] sm:$0xff]
  %v424 = vsel %vm161, %v401, 0
  %v427 = vsel %vm161, %v408, 0
  %v430 = vsel %vm161, %v415, 0
  %v433 = vsel %vm161, %v422, 0
  %435 = vmatpush.msra.mxu0 %v43
  %436 = vmatpush.msra.mxu0 %v42
  %437 = vmatpush.msra.mxu0 %v41
  %438 = vmatpush.msra.mxu0 %v40
  %439 = vmatpush.msra.mxu0 %v39
  %440 = vmatpush.msra.mxu0 %v38
  %441 = vmatpush.msra.mxu0 %v37
  %442 = vmatpush.msra.mxu0 %v36
  %443 = vmatpush.msra.mxu0 %v35
  %444 = vmatpush.msra.mxu0 %v34
  %445 = vmatpush.msra.mxu0 %v33
  %446 = vmatpush.msra.mxu0 %v32
  %447 = vmatpush.msra.mxu0 %v31
  %448 = vmatpush.msra.mxu0 %v30
  %449 = vmatpush.msra.mxu0 %v29
  %450 = vmatpush.msra.mxu0 %v28
  %451 = vmatmul.f32.gmra.mxu0 %v395
  %v452 = vpop.f32.mrf.mxu0
  %v453 = vadd.f32 %v159, %v452
  %454 = vmatmul.f32.gmra.mxu0 %v402
  %v455 = vpop.f32.mrf.mxu0
  %v456 = vadd.f32 %v159, %v455
  %457 = vmatmul.f32.gmra.mxu0 %v409
  %v458 = vpop.f32.mrf.mxu0
  %v459 = vadd.f32 %v159, %v458
  %460 = vmatmul.f32.gmra.mxu0 %v416
  %v461 = vpop.f32.mrf.mxu0
  %v462 = vadd.f32 %v159, %v461
  %463 = vdwg.mxu0
  %464 = vmatpush.msra.mxu0 %v59
  %465 = vmatpush.msra.mxu0 %v58
  %466 = vmatpush.msra.mxu0 %v57
  %467 = vmatpush.msra.mxu0 %v56
  %468 = vmatpush.msra.mxu0 %v55
  %469 = vmatpush.msra.mxu0 %v54
  %470 = vmatpush.msra.mxu0 %v53
  %471 = vmatpush.msra.mxu0 %v52
  %472 = vmatpush.msra.mxu0 %v51
  %473 = vmatpush.msra.mxu0 %v50
  %474 = vmatpush.msra.mxu0 %v49
  %475 = vmatpush.msra.mxu0 %v48
  %476 = vmatpush.msra.mxu0 %v47
  %477 = vmatpush.msra.mxu0 %v46
  %478 = vmatpush.msra.mxu0 %v45
  %479 = vmatpush.msra.mxu0 %v44
  %480 = vmatmul.f32.gmra.mxu0 %v396
  %v481 = vpop.f32.mrf.mxu0
  %v482 = vadd.f32 %v453, %v481
  %483 = vmatmul.f32.gmra.mxu0 %v403
  %v484 = vpop.f32.mrf.mxu0
  %v485 = vadd.f32 %v456, %v484
  %486 = vmatmul.f32.gmra.mxu0 %v410
  %v487 = vpop.f32.mrf.mxu0
  %v488 = vadd.f32 %v459, %v487
  %489 = vmatmul.f32.gmra.mxu0 %v417
  %v490 = vpop.f32.mrf.mxu0
  %v491 = vadd.f32 %v462, %v490
  %492 = vdwg.mxu0
  %493 = vmatpush.msra.mxu0 %v75
  %494 = vmatpush.msra.mxu0 %v74
  %495 = vmatpush.msra.mxu0 %v73
  %496 = vmatpush.msra.mxu0 %v72
  %497 = vmatpush.msra.mxu0 %v71
  %498 = vmatpush.msra.mxu0 %v70
  %499 = vmatpush.msra.mxu0 %v69
  %500 = vmatpush.msra.mxu0 %v68
  %501 = vmatpush.msra.mxu0 %v67
  %502 = vmatpush.msra.mxu0 %v66
  %503 = vmatpush.msra.mxu0 %v65
  %504 = vmatpush.msra.mxu0 %v64
  %505 = vmatpush.msra.mxu0 %v63
  %506 = vmatpush.msra.mxu0 %v62
  %507 = vmatpush.msra.mxu0 %v61
  %508 = vmatpush.msra.mxu0 %v60
  %509 = vmatmul.f32.gmra.mxu0 %v397
  %v510 = vpop.f32.mrf.mxu0
  %v511 = vadd.f32 %v482, %v510
  %512 = vmatmul.f32.gmra.mxu0 %v404
  %v513 = vpop.f32.mrf.mxu0
  %v514 = vadd.f32 %v485, %v513
  %515 = vmatmul.f32.gmra.mxu0 %v411
  %v516 = vpop.f32.mrf.mxu0
  %v517 = vadd.f32 %v488, %v516
  %518 = vmatmul.f32.gmra.mxu0 %v418
  %v519 = vpop.f32.mrf.mxu0
  %v520 = vadd.f32 %v491, %v519
  %521 = vdwg.mxu0
  %522 = vmatpush.msra.mxu0 %v91
  %523 = vmatpush.msra.mxu0 %v90
  %524 = vmatpush.msra.mxu0 %v89
  %525 = vmatpush.msra.mxu0 %v88
  %526 = vmatpush.msra.mxu0 %v87
  %527 = vmatpush.msra.mxu0 %v86
  %528 = vmatpush.msra.mxu0 %v85
  %529 = vmatpush.msra.mxu0 %v84
  %530 = vmatpush.msra.mxu0 %v83
  %531 = vmatpush.msra.mxu0 %v82
  %532 = vmatpush.msra.mxu0 %v81
  %533 = vmatpush.msra.mxu0 %v80
  %534 = vmatpush.msra.mxu0 %v79
  %535 = vmatpush.msra.mxu0 %v78
  %536 = vmatpush.msra.mxu0 %v77
  %537 = vmatpush.msra.mxu0 %v76
  %538 = vmatmul.f32.gmra.mxu0 %v398
  %v539 = vpop.f32.mrf.mxu0
  %v540 = vadd.f32 %v511, %v539
  %541 = vmatmul.f32.gmra.mxu0 %v405
  %v542 = vpop.f32.mrf.mxu0
  %v543 = vadd.f32 %v514, %v542
  %544 = vmatmul.f32.gmra.mxu0 %v412
  %v545 = vpop.f32.mrf.mxu0
  %v546 = vadd.f32 %v517, %v545
  %547 = vmatmul.f32.gmra.mxu0 %v419
  %v548 = vpop.f32.mrf.mxu0
  %v549 = vadd.f32 %v520, %v548
  %550 = vdwg.mxu0
  %551 = vmatpush.msra.mxu0 %v107
  %552 = vmatpush.msra.mxu0 %v106
  %553 = vmatpush.msra.mxu0 %v105
  %554 = vmatpush.msra.mxu0 %v104
  %555 = vmatpush.msra.mxu0 %v103
  %556 = vmatpush.msra.mxu0 %v102
  %557 = vmatpush.msra.mxu0 %v101
  %558 = vmatpush.msra.mxu0 %v100
  %559 = vmatpush.msra.mxu0 %v99
  %560 = vmatpush.msra.mxu0 %v98
  %561 = vmatpush.msra.mxu0 %v97
  %562 = vmatpush.msra.mxu0 %v96
  %563 = vmatpush.msra.mxu0 %v95
  %564 = vmatpush.msra.mxu0 %v94
  %565 = vmatpush.msra.mxu0 %v93
  %566 = vmatpush.msra.mxu0 %v92
  %567 = vmatmul.f32.gmra.mxu0 %v399
  %v568 = vpop.f32.mrf.mxu0
  %v569 = vadd.f32 %v540, %v568
  %570 = vmatmul.f32.gmra.mxu0 %v406
  %v571 = vpop.f32.mrf.mxu0
  %v572 = vadd.f32 %v543, %v571
  %573 = vmatmul.f32.gmra.mxu0 %v413
  %v574 = vpop.f32.mrf.mxu0
  %v575 = vadd.f32 %v546, %v574
  %576 = vmatmul.f32.gmra.mxu0 %v420
  %v577 = vpop.f32.mrf.mxu0
  %v578 = vadd.f32 %v549, %v577
  %579 = vdwg.mxu0
  %580 = vmatpush.msra.mxu0 %v123
  %581 = vmatpush.msra.mxu0 %v122
  %582 = vmatpush.msra.mxu0 %v121
  %583 = vmatpush.msra.mxu0 %v120
  %584 = vmatpush.msra.mxu0 %v119
  %585 = vmatpush.msra.mxu0 %v118
  %586 = vmatpush.msra.mxu0 %v117
  %587 = vmatpush.msra.mxu0 %v116
  %588 = vmatpush.msra.mxu0 %v115
  %589 = vmatpush.msra.mxu0 %v114
  %590 = vmatpush.msra.mxu0 %v113
  %591 = vmatpush.msra.mxu0 %v112
  %592 = vmatpush.msra.mxu0 %v111
  %593 = vmatpush.msra.mxu0 %v110
  %594 = vmatpush.msra.mxu0 %v109
  %595 = vmatpush.msra.mxu0 %v108
  %596 = vmatmul.f32.gmra.mxu0 %v400
  %v597 = vpop.f32.mrf.mxu0
  %v598 = vadd.f32 %v569, %v597
  %599 = vmatmul.f32.gmra.mxu0 %v407
  %v600 = vpop.f32.mrf.mxu0
  %v601 = vadd.f32 %v572, %v600
  %602 = vmatmul.f32.gmra.mxu0 %v414
  %v603 = vpop.f32.mrf.mxu0
  %v604 = vadd.f32 %v575, %v603
  %605 = vmatmul.f32.gmra.mxu0 %v421
  %v606 = vpop.f32.mrf.mxu0
  %v607 = vadd.f32 %v578, %v606
  %608 = vdwg.mxu0
  %609 = vmatpush.msra.mxu0 0.0
  %610 = vmatpush.msra.mxu0 0.0
  %611 = vmatpush.msra.mxu0 0.0
  %612 = vmatpush.msra.mxu0 0.0
  %613 = vmatpush.msra.mxu0 0.0
  %614 = vmatpush.msra.mxu0 0.0
  %615 = vmatpush.msra.mxu0 0.0
  %616 = vmatpush.msra.mxu0 0.0
  %617 = vmatpush.msra.mxu0 0.0
  %618 = vmatpush.msra.mxu0 0.0
  %619 = vmatpush.msra.mxu0 0.0
  %620 = vmatpush.msra.mxu0 0.0
  %621 = vmatpush.msra.mxu0 %v127
  %622 = vmatpush.msra.mxu0 %v126
  %623 = vmatpush.msra.mxu0 %v125
  %624 = vmatpush.msra.mxu0 %v124
  %625 = vmatmul.f32.gmra.mxu0 %v424
  %v626 = vpop.f32.mrf.mxu0
  %v627 = vadd.f32 %v598, %v626
  %628 = vmatmul.f32.gmra.mxu0 %v427
  %v629 = vpop.f32.mrf.mxu0
  %v630 = vadd.f32 %v601, %v629
  %631 = vmatmul.f32.gmra.mxu0 %v430
  %v632 = vpop.f32.mrf.mxu0
  %v633 = vadd.f32 %v604, %v632
  %634 = vmatmul.f32.gmra.mxu0 %v433
  %v635 = vpop.f32.mrf.mxu0
  %v636 = vadd.f32 %v607, %v635
  %637 = vdwg.mxu0
  %vm638 = vcmp.ge.f32.partialorder %v627, 0.0
  %vm639 = vcmp.ge.f32.partialorder %v630, 0.0
  %vm640 = vcmp.ge.f32.partialorder %v633, 0.0
  %vm641 = vcmp.ge.f32.partialorder %v636, 0.0
  %v642 = vmul.f32 %v627, %v385
  %v643 = vmul.f32 %v630, %v385
  %v644 = vmul.f32 %v633, %v385
  %v645 = vmul.f32 %v636, %v385
  %v646 = vsel %vm638, %v627, %v642
  %v647 = vsel %vm639, %v630, %v643
  %v648 = vsel %vm640, %v633, %v644
  %v649 = vsel %vm641, %v636, %v645
  %v650 = vmax.f32 %v391, %v646
  %v651 = vmax.f32 %v392, %v647
  %v652 = vmax.f32 %v393, %v648
  %v653 = vmax.f32 %v394, %v649
  %v654 = vld [vmem:[%s2] sm:$0xff]
  %v655 = vld [vmem:[%s2 + $0x8] sm:$0xff]
  %v656 = vld [vmem:[%s2 + $0x10] sm:$0xff]
  %v657 = vld [vmem:[%s2 + $0x18] sm:$0xff]
  %v658 = vld [vmem:[%s2 + $0x20] sm:$0xff]
  %v659 = vld [vmem:[%s2 + $0x28] sm:$0xff]
  %v660 = vld [vmem:[%s2 + $0x30] sm:$0xff]
  %v661 = vld [vmem:[%s2 + $0x38] sm:$0xff]
  %v662 = vld [vmem:[%s2 + $0x40] sm:$0xff]
  %v663 = vld [vmem:[%s2 + $0x48] sm:$0xff]
  %v664 = vld [vmem:[%s2 + $0x50] sm:$0xff]
  %v665 = vld [vmem:[%s2 + $0x58] sm:$0xff]
  %v666 = vld [vmem:[%s2 + $0x60] sm:$0xff]
  %v667 = vld [vmem:[%s2 + $0x68] sm:$0xff]
  %v668 = vld [vmem:[%s2 + $0x70] sm:$0xff]
  %v669 = vld [vmem:[%s2 + $0x78] sm:$0xff]
  %v670 = vld [vmem:[%s2 + $0x80] sm:$0xff]
  %v671 = vld [vmem:[%s2 + $0x88] sm:$0xff]
  %v672 = vld [vmem:[%s2 + $0x90] sm:$0xff]
  %v673 = vld [vmem:[%s2 + $0x98] sm:$0xff]
  %v674 = vld [vmem:[%s2 + $0xa0] sm:$0xff]
  %v675 = vld [vmem:[%s2 + $0xa8] sm:$0xff]
  %v676 = vld [vmem:[%s2 + $0xb0] sm:$0xff]
  %v677 = vld [vmem:[%s2 + $0xb8] sm:$0xff]
  %v678 = vld [vmem:[%s2 + $0xc0] sm:$0xff]
  %v679 = vld [vmem:[%s2 + $0xc8] sm:$0xff]
  %v680 = vld [vmem:[%s2 + $0xd0] sm:$0xff]
  %v681 = vld [vmem:[%s2 + $0xd8] sm:$0xff]
  %v683 = vsel %vm161, %v660, 0
  %v686 = vsel %vm161, %v667, 0
  %v689 = vsel %vm161, %v674, 0
  %v692 = vsel %vm161, %v681, 0
  %694 = vmatpush.msra.mxu0 %v43
  %695 = vmatpush.msra.mxu0 %v42
  %696 = vmatpush.msra.mxu0 %v41
  %697 = vmatpush.msra.mxu0 %v40
  %698 = vmatpush.msra.mxu0 %v39
  %699 = vmatpush.msra.mxu0 %v38
  %700 = vmatpush.msra.mxu0 %v37
  %701 = vmatpush.msra.mxu0 %v36
  %702 = vmatpush.msra.mxu0 %v35
  %703 = vmatpush.msra.mxu0 %v34
  %704 = vmatpush.msra.mxu0 %v33
  %705 = vmatpush.msra.mxu0 %v32
  %706 = vmatpush.msra.mxu0 %v31
  %707 = vmatpush.msra.mxu0 %v30
  %708 = vmatpush.msra.mxu0 %v29
  %709 = vmatpush.msra.mxu0 %v28
  %710 = vmatmul.f32.gmra.mxu0 %v654
  %v711 = vpop.f32.mrf.mxu0
  %v712 = vadd.f32 %v159, %v711
  %713 = vmatmul.f32.gmra.mxu0 %v661
  %v714 = vpop.f32.mrf.mxu0
  %v715 = vadd.f32 %v159, %v714
  %716 = vmatmul.f32.gmra.mxu0 %v668
  %v717 = vpop.f32.mrf.mxu0
  %v718 = vadd.f32 %v159, %v717
  %719 = vmatmul.f32.gmra.mxu0 %v675
  %v720 = vpop.f32.mrf.mxu0
  %v721 = vadd.f32 %v159, %v720
  %722 = vdwg.mxu0
  %723 = vmatpush.msra.mxu0 %v59
  %724 = vmatpush.msra.mxu0 %v58
  %725 = vmatpush.msra.mxu0 %v57
  %726 = vmatpush.msra.mxu0 %v56
  %727 = vmatpush.msra.mxu0 %v55
  %728 = vmatpush.msra.mxu0 %v54
  %729 = vmatpush.msra.mxu0 %v53
  %730 = vmatpush.msra.mxu0 %v52
  %731 = vmatpush.msra.mxu0 %v51
  %732 = vmatpush.msra.mxu0 %v50
  %733 = vmatpush.msra.mxu0 %v49
  %734 = vmatpush.msra.mxu0 %v48
  %735 = vmatpush.msra.mxu0 %v47
  %736 = vmatpush.msra.mxu0 %v46
  %737 = vmatpush.msra.mxu0 %v45
  %738 = vmatpush.msra.mxu0 %v44
  %739 = vmatmul.f32.gmra.mxu0 %v655
  %v740 = vpop.f32.mrf.mxu0
  %v741 = vadd.f32 %v712, %v740
  %742 = vmatmul.f32.gmra.mxu0 %v662
  %v743 = vpop.f32.mrf.mxu0
  %v744 = vadd.f32 %v715, %v743
  %745 = vmatmul.f32.gmra.mxu0 %v669
  %v746 = vpop.f32.mrf.mxu0
  %v747 = vadd.f32 %v718, %v746
  %748 = vmatmul.f32.gmra.mxu0 %v676
  %v749 = vpop.f32.mrf.mxu0
  %v750 = vadd.f32 %v721, %v749
  %751 = vdwg.mxu0
  %752 = vmatpush.msra.mxu0 %v75
  %753 = vmatpush.msra.mxu0 %v74
  %754 = vmatpush.msra.mxu0 %v73
  %755 = vmatpush.msra.mxu0 %v72
  %756 = vmatpush.msra.mxu0 %v71
  %757 = vmatpush.msra.mxu0 %v70
  %758 = vmatpush.msra.mxu0 %v69
  %759 = vmatpush.msra.mxu0 %v68
  %760 = vmatpush.msra.mxu0 %v67
  %761 = vmatpush.msra.mxu0 %v66
  %762 = vmatpush.msra.mxu0 %v65
  %763 = vmatpush.msra.mxu0 %v64
  %764 = vmatpush.msra.mxu0 %v63
  %765 = vmatpush.msra.mxu0 %v62
  %766 = vmatpush.msra.mxu0 %v61
  %767 = vmatpush.msra.mxu0 %v60
  %768 = vmatmul.f32.gmra.mxu0 %v656
  %v769 = vpop.f32.mrf.mxu0
  %v770 = vadd.f32 %v741, %v769
  %771 = vmatmul.f32.gmra.mxu0 %v663
  %v772 = vpop.f32.mrf.mxu0
  %v773 = vadd.f32 %v744, %v772
  %774 = vmatmul.f32.gmra.mxu0 %v670
  %v775 = vpop.f32.mrf.mxu0
  %v776 = vadd.f32 %v747, %v775
  %777 = vmatmul.f32.gmra.mxu0 %v677
  %v778 = vpop.f32.mrf.mxu0
  %v779 = vadd.f32 %v750, %v778
  %780 = vdwg.mxu0
  %781 = vmatpush.msra.mxu0 %v91
  %782 = vmatpush.msra.mxu0 %v90
  %783 = vmatpush.msra.mxu0 %v89
  %784 = vmatpush.msra.mxu0 %v88
  %785 = vmatpush.msra.mxu0 %v87
  %786 = vmatpush.msra.mxu0 %v86
  %787 = vmatpush.msra.mxu0 %v85
  %788 = vmatpush.msra.mxu0 %v84
  %789 = vmatpush.msra.mxu0 %v83
  %790 = vmatpush.msra.mxu0 %v82
  %791 = vmatpush.msra.mxu0 %v81
  %792 = vmatpush.msra.mxu0 %v80
  %793 = vmatpush.msra.mxu0 %v79
  %794 = vmatpush.msra.mxu0 %v78
  %795 = vmatpush.msra.mxu0 %v77
  %796 = vmatpush.msra.mxu0 %v76
  %797 = vmatmul.f32.gmra.mxu0 %v657
  %v798 = vpop.f32.mrf.mxu0
  %v799 = vadd.f32 %v770, %v798
  %800 = vmatmul.f32.gmra.mxu0 %v664
  %v801 = vpop.f32.mrf.mxu0
  %v802 = vadd.f32 %v773, %v801
  %803 = vmatmul.f32.gmra.mxu0 %v671
  %v804 = vpop.f32.mrf.mxu0
  %v805 = vadd.f32 %v776, %v804
  %806 = vmatmul.f32.gmra.mxu0 %v678
  %v807 = vpop.f32.mrf.mxu0
  %v808 = vadd.f32 %v779, %v807
  %809 = vdwg.mxu0
  %810 = vmatpush.msra.mxu0 %v107
  %811 = vmatpush.msra.mxu0 %v106
  %812 = vmatpush.msra.mxu0 %v105
  %813 = vmatpush.msra.mxu0 %v104
  %814 = vmatpush.msra.mxu0 %v103
  %815 = vmatpush.msra.mxu0 %v102
  %816 = vmatpush.msra.mxu0 %v101
  %817 = vmatpush.msra.mxu0 %v100
  %818 = vmatpush.msra.mxu0 %v99
  %819 = vmatpush.msra.mxu0 %v98
  %820 = vmatpush.msra.mxu0 %v97
  %821 = vmatpush.msra.mxu0 %v96
  %822 = vmatpush.msra.mxu0 %v95
  %823 = vmatpush.msra.mxu0 %v94
  %824 = vmatpush.msra.mxu0 %v93
  %825 = vmatpush.msra.mxu0 %v92
  %826 = vmatmul.f32.gmra.mxu0 %v658
  %v827 = vpop.f32.mrf.mxu0
  %v828 = vadd.f32 %v799, %v827
  %829 = vmatmul.f32.gmra.mxu0 %v665
  %v830 = vpop.f32.mrf.mxu0
  %v831 = vadd.f32 %v802, %v830
  %832 = vmatmul.f32.gmra.mxu0 %v672
  %v833 = vpop.f32.mrf.mxu0
  %v834 = vadd.f32 %v805, %v833
  %835 = vmatmul.f32.gmra.mxu0 %v679
  %v836 = vpop.f32.mrf.mxu0
  %v837 = vadd.f32 %v808, %v836
  %838 = vdwg.mxu0
  %839 = vmatpush.msra.mxu0 %v123
  %840 = vmatpush.msra.mxu0 %v122
  %841 = vmatpush.msra.mxu0 %v121
  %842 = vmatpush.msra.mxu0 %v120
  %843 = vmatpush.msra.mxu0 %v119
  %844 = vmatpush.msra.mxu0 %v118
  %845 = vmatpush.msra.mxu0 %v117
  %846 = vmatpush.msra.mxu0 %v116
  %847 = vmatpush.msra.mxu0 %v115
  %848 = vmatpush.msra.mxu0 %v114
  %849 = vmatpush.msra.mxu0 %v113
  %850 = vmatpush.msra.mxu0 %v112
  %851 = vmatpush.msra.mxu0 %v111
  %852 = vmatpush.msra.mxu0 %v110
  %853 = vmatpush.msra.mxu0 %v109
  %854 = vmatpush.msra.mxu0 %v108
  %855 = vmatmul.f32.gmra.mxu0 %v659
  %v856 = vpop.f32.mrf.mxu0
  %v857 = vadd.f32 %v828, %v856
  %858 = vmatmul.f32.gmra.mxu0 %v666
  %v859 = vpop.f32.mrf.mxu0
  %v860 = vadd.f32 %v831, %v859
  %861 = vmatmul.f32.gmra.mxu0 %v673
  %v862 = vpop.f32.mrf.mxu0
  %v863 = vadd.f32 %v834, %v862
  %864 = vmatmul.f32.gmra.mxu0 %v680
  %v865 = vpop.f32.mrf.mxu0
  %v866 = vadd.f32 %v837, %v865
  %867 = vdwg.mxu0
  %868 = vmatpush.msra.mxu0 0.0
  %869 = vmatpush.msra.mxu0 0.0
  %870 = vmatpush.msra.mxu0 0.0
  %871 = vmatpush.msra.mxu0 0.0
  %872 = vmatpush.msra.mxu0 0.0
  %873 = vmatpush.msra.mxu0 0.0
  %874 = vmatpush.msra.mxu0 0.0
  %875 = vmatpush.msra.mxu0 0.0
  %876 = vmatpush.msra.mxu0 0.0
  %877 = vmatpush.msra.mxu0 0.0
  %878 = vmatpush.msra.mxu0 0.0
  %879 = vmatpush.msra.mxu0 0.0
  %880 = vmatpush.msra.mxu0 %v127
  %881 = vmatpush.msra.mxu0 %v126
  %882 = vmatpush.msra.mxu0 %v125
  %883 = vmatpush.msra.mxu0 %v124
  %884 = vmatmul.f32.gmra.mxu0 %v683
  %v885 = vpop.f32.mrf.mxu0
  %v886 = vadd.f32 %v857, %v885
  %887 = vmatmul.f32.gmra.mxu0 %v686
  %v888 = vpop.f32.mrf.mxu0
  %v889 = vadd.f32 %v860, %v888
  %890 = vmatmul.f32.gmra.mxu0 %v689
  %v891 = vpop.f32.mrf.mxu0
  %v892 = vadd.f32 %v863, %v891
  %893 = vmatmul.f32.gmra.mxu0 %v692
  %v894 = vpop.f32.mrf.mxu0
  %v895 = vadd.f32 %v866, %v894
  %896 = vdwg.mxu0
  %vm897 = vcmp.ge.f32.partialorder %v886, 0.0
  %vm898 = vcmp.ge.f32.partialorder %v889, 0.0
  %vm899 = vcmp.ge.f32.partialorder %v892, 0.0
  %vm900 = vcmp.ge.f32.partialorder %v895, 0.0
  %v901 = vmul.f32 %v886, %v385
  %v902 = vmul.f32 %v889, %v385
  %v903 = vmul.f32 %v892, %v385
  %v904 = vmul.f32 %v895, %v385
  %v905 = vsel %vm897, %v886, %v901
  %v906 = vsel %vm898, %v889, %v902
  %v907 = vsel %vm899, %v892, %v903
  %v908 = vsel %vm900, %v895, %v904
  %v909 = vld [vmem:[%s3] sm:$0xff]
  %v910 = vld [vmem:[%s3 + $0x8] sm:$0xff]
  %v911 = vld [vmem:[%s3 + $0x10] sm:$0xff]
  %v912 = vld [vmem:[%s3 + $0x18] sm:$0xff]
  %v913 = vld [vmem:[%s3 + $0x20] sm:$0xff]
  %v914 = vld [vmem:[%s3 + $0x28] sm:$0xff]
  %v915 = vld [vmem:[%s3 + $0x30] sm:$0xff]
  %v916 = vld [vmem:[%s3 + $0x38] sm:$0xff]
  %v917 = vld [vmem:[%s3 + $0x40] sm:$0xff]
  %v918 = vld [vmem:[%s3 + $0x48] sm:$0xff]
  %v919 = vld [vmem:[%s3 + $0x50] sm:$0xff]
  %v920 = vld [vmem:[%s3 + $0x58] sm:$0xff]
  %v921 = vld [vmem:[%s3 + $0x60] sm:$0xff]
  %v922 = vld [vmem:[%s3 + $0x68] sm:$0xff]
  %v923 = vld [vmem:[%s3 + $0x70] sm:$0xff]
  %v924 = vld [vmem:[%s3 + $0x78] sm:$0xff]
  %v925 = vld [vmem:[%s3 + $0x80] sm:$0xff]
  %v926 = vld [vmem:[%s3 + $0x88] sm:$0xff]
  %v927 = vld [vmem:[%s3 + $0x90] sm:$0xff]
  %v928 = vld [vmem:[%s3 + $0x98] sm:$0xff]
  %v929 = vld [vmem:[%s3 + $0xa0] sm:$0xff]
  %v930 = vld [vmem:[%s3 + $0xa8] sm:$0xff]
  %v931 = vld [vmem:[%s3 + $0xb0] sm:$0xff]
  %v932 = vld [vmem:[%s3 + $0xb8] sm:$0xff]
  %v933 = vld [vmem:[%s3 + $0xc0] sm:$0xff]
  %v934 = vld [vmem:[%s3 + $0xc8] sm:$0xff]
  %v935 = vld [vmem:[%s3 + $0xd0] sm:$0xff]
  %v936 = vld [vmem:[%s3 + $0xd8] sm:$0xff]
  %v938 = vsel %vm161, %v915, 0
  %v941 = vsel %vm161, %v922, 0
  %v944 = vsel %vm161, %v929, 0
  %v947 = vsel %vm161, %v936, 0
  %949 = vmatpush.msra.mxu0 %v43
  %950 = vmatpush.msra.mxu0 %v42
  %951 = vmatpush.msra.mxu0 %v41
  %952 = vmatpush.msra.mxu0 %v40
  %953 = vmatpush.msra.mxu0 %v39
  %954 = vmatpush.msra.mxu0 %v38
  %955 = vmatpush.msra.mxu0 %v37
  %956 = vmatpush.msra.mxu0 %v36
  %957 = vmatpush.msra.mxu0 %v35
  %958 = vmatpush.msra.mxu0 %v34
  %959 = vmatpush.msra.mxu0 %v33
  %960 = vmatpush.msra.mxu0 %v32
  %961 = vmatpush.msra.mxu0 %v31
  %962 = vmatpush.msra.mxu0 %v30
  %963 = vmatpush.msra.mxu0 %v29
  %964 = vmatpush.msra.mxu0 %v28
  %965 = vmatmul.f32.gmra.mxu0 %v909
  %v966 = vpop.f32.mrf.mxu0
  %v967 = vadd.f32 %v159, %v966
  %968 = vmatmul.f32.gmra.mxu0 %v916
  %v969 = vpop.f32.mrf.mxu0
  %v970 = vadd.f32 %v159, %v969
  %971 = vmatmul.f32.gmra.mxu0 %v923
  %v972 = vpop.f32.mrf.mxu0
  %v973 = vadd.f32 %v159, %v972
  %974 = vmatmul.f32.gmra.mxu0 %v930
  %v975 = vpop.f32.mrf.mxu0
  %v976 = vadd.f32 %v159, %v975
  %977 = vdwg.mxu0
  %978 = vmatpush.msra.mxu0 %v59
  %979 = vmatpush.msra.mxu0 %v58
  %980 = vmatpush.msra.mxu0 %v57
  %981 = vmatpush.msra.mxu0 %v56
  %982 = vmatpush.msra.mxu0 %v55
  %983 = vmatpush.msra.mxu0 %v54
  %984 = vmatpush.msra.mxu0 %v53
  %985 = vmatpush.msra.mxu0 %v52
  %986 = vmatpush.msra.mxu0 %v51
  %987 = vmatpush.msra.mxu0 %v50
  %988 = vmatpush.msra.mxu0 %v49
  %989 = vmatpush.msra.mxu0 %v48
  %990 = vmatpush.msra.mxu0 %v47
  %991 = vmatpush.msra.mxu0 %v46
  %992 = vmatpush.msra.mxu0 %v45
  %993 = vmatpush.msra.mxu0 %v44
  %994 = vmatmul.f32.gmra.mxu0 %v910
  %v995 = vpop.f32.mrf.mxu0
  %v996 = vadd.f32 %v967, %v995
  %997 = vmatmul.f32.gmra.mxu0 %v917
  %v998 = vpop.f32.mrf.mxu0
  %v999 = vadd.f32 %v970, %v998
  %1000 = vmatmul.f32.gmra.mxu0 %v924
  %v1001 = vpop.f32.mrf.mxu0
  %v1002 = vadd.f32 %v973, %v1001
  %1003 = vmatmul.f32.gmra.mxu0 %v931
  %v1004 = vpop.f32.mrf.mxu0
  %v1005 = vadd.f32 %v976, %v1004
  %1006 = vdwg.mxu0
  %1007 = vmatpush.msra.mxu0 %v75
  %1008 = vmatpush.msra.mxu0 %v74
  %1009 = vmatpush.msra.mxu0 %v73
  %1010 = vmatpush.msra.mxu0 %v72
  %1011 = vmatpush.msra.mxu0 %v71
  %1012 = vmatpush.msra.mxu0 %v70
  %1013 = vmatpush.msra.mxu0 %v69
  %1014 = vmatpush.msra.mxu0 %v68
  %1015 = vmatpush.msra.mxu0 %v67
  %1016 = vmatpush.msra.mxu0 %v66
  %1017 = vmatpush.msra.mxu0 %v65
  %1018 = vmatpush.msra.mxu0 %v64
  %1019 = vmatpush.msra.mxu0 %v63
  %1020 = vmatpush.msra.mxu0 %v62
  %1021 = vmatpush.msra.mxu0 %v61
  %1022 = vmatpush.msra.mxu0 %v60
  %1023 = vmatmul.f32.gmra.mxu0 %v911
  %v1024 = vpop.f32.mrf.mxu0
  %v1025 = vadd.f32 %v996, %v1024
  %1026 = vmatmul.f32.gmra.mxu0 %v918
  %v1027 = vpop.f32.mrf.mxu0
  %v1028 = vadd.f32 %v999, %v1027
  %1029 = vmatmul.f32.gmra.mxu0 %v925
  %v1030 = vpop.f32.mrf.mxu0
  %v1031 = vadd.f32 %v1002, %v1030
  %1032 = vmatmul.f32.gmra.mxu0 %v932
  %v1033 = vpop.f32.mrf.mxu0
  %v1034 = vadd.f32 %v1005, %v1033
  %1035 = vdwg.mxu0
  %1036 = vmatpush.msra.mxu0 %v91
  %1037 = vmatpush.msra.mxu0 %v90
  %1038 = vmatpush.msra.mxu0 %v89
  %1039 = vmatpush.msra.mxu0 %v88
  %1040 = vmatpush.msra.mxu0 %v87
  %1041 = vmatpush.msra.mxu0 %v86
  %1042 = vmatpush.msra.mxu0 %v85
  %1043 = vmatpush.msra.mxu0 %v84
  %1044 = vmatpush.msra.mxu0 %v83
  %1045 = vmatpush.msra.mxu0 %v82
  %1046 = vmatpush.msra.mxu0 %v81
  %1047 = vmatpush.msra.mxu0 %v80
  %1048 = vmatpush.msra.mxu0 %v79
  %1049 = vmatpush.msra.mxu0 %v78
  %1050 = vmatpush.msra.mxu0 %v77
  %1051 = vmatpush.msra.mxu0 %v76
  %1052 = vmatmul.f32.gmra.mxu0 %v912
  %v1053 = vpop.f32.mrf.mxu0
  %v1054 = vadd.f32 %v1025, %v1053
  %1055 = vmatmul.f32.gmra.mxu0 %v919
  %v1056 = vpop.f32.mrf.mxu0
  %v1057 = vadd.f32 %v1028, %v1056
  %1058 = vmatmul.f32.gmra.mxu0 %v926
  %v1059 = vpop.f32.mrf.mxu0
  %v1060 = vadd.f32 %v1031, %v1059
  %1061 = vmatmul.f32.gmra.mxu0 %v933
  %v1062 = vpop.f32.mrf.mxu0
  %v1063 = vadd.f32 %v1034, %v1062
  %1064 = vdwg.mxu0
  %1065 = vmatpush.msra.mxu0 %v107
  %1066 = vmatpush.msra.mxu0 %v106
  %1067 = vmatpush.msra.mxu0 %v105
  %1068 = vmatpush.msra.mxu0 %v104
  %1069 = vmatpush.msra.mxu0 %v103
  %1070 = vmatpush.msra.mxu0 %v102
  %1071 = vmatpush.msra.mxu0 %v101
  %1072 = vmatpush.msra.mxu0 %v100
  %1073 = vmatpush.msra.mxu0 %v99
  %1074 = vmatpush.msra.mxu0 %v98
  %1075 = vmatpush.msra.mxu0 %v97
  %1076 = vmatpush.msra.mxu0 %v96
  %1077 = vmatpush.msra.mxu0 %v95
  %1078 = vmatpush.msra.mxu0 %v94
  %1079 = vmatpush.msra.mxu0 %v93
  %1080 = vmatpush.msra.mxu0 %v92
  %1081 = vmatmul.f32.gmra.mxu0 %v913
  %v1082 = vpop.f32.mrf.mxu0
  %v1083 = vadd.f32 %v1054, %v1082
  %1084 = vmatmul.f32.gmra.mxu0 %v920
  %v1085 = vpop.f32.mrf.mxu0
  %v1086 = vadd.f32 %v1057, %v1085
  %1087 = vmatmul.f32.gmra.mxu0 %v927
  %v1088 = vpop.f32.mrf.mxu0
  %v1089 = vadd.f32 %v1060, %v1088
  %1090 = vmatmul.f32.gmra.mxu0 %v934
  %v1091 = vpop.f32.mrf.mxu0
  %v1092 = vadd.f32 %v1063, %v1091
  %1093 = vdwg.mxu0
  %1094 = vmatpush.msra.mxu0 %v123
  %1095 = vmatpush.msra.mxu0 %v122
  %1096 = vmatpush.msra.mxu0 %v121
  %1097 = vmatpush.msra.mxu0 %v120
  %1098 = vmatpush.msra.mxu0 %v119
  %1099 = vmatpush.msra.mxu0 %v118
  %1100 = vmatpush.msra.mxu0 %v117
  %1101 = vmatpush.msra.mxu0 %v116
  %1102 = vmatpush.msra.mxu0 %v115
  %1103 = vmatpush.msra.mxu0 %v114
  %1104 = vmatpush.msra.mxu0 %v113
  %1105 = vmatpush.msra.mxu0 %v112
  %1106 = vmatpush.msra.mxu0 %v111
  %1107 = vmatpush.msra.mxu0 %v110
  %1108 = vmatpush.msra.mxu0 %v109
  %1109 = vmatpush.msra.mxu0 %v108
  %1110 = vmatmul.f32.gmra.mxu0 %v914
  %v1111 = vpop.f32.mrf.mxu0
  %v1112 = vadd.f32 %v1083, %v1111
  %1113 = vmatmul.f32.gmra.mxu0 %v921
  %v1114 = vpop.f32.mrf.mxu0
  %v1115 = vadd.f32 %v1086, %v1114
  %1116 = vmatmul.f32.gmra.mxu0 %v928
  %v1117 = vpop.f32.mrf.mxu0
  %v1118 = vadd.f32 %v1089, %v1117
  %1119 = vmatmul.f32.gmra.mxu0 %v935
  %v1120 = vpop.f32.mrf.mxu0
  %v1121 = vadd.f32 %v1092, %v1120
  %1122 = vdwg.mxu0
  %1123 = vmatpush.msra.mxu0 0.0
  %1124 = vmatpush.msra.mxu0 0.0
  %1125 = vmatpush.msra.mxu0 0.0
  %1126 = vmatpush.msra.mxu0 0.0
  %1127 = vmatpush.msra.mxu0 0.0
  %1128 = vmatpush.msra.mxu0 0.0
  %1129 = vmatpush.msra.mxu0 0.0
  %1130 = vmatpush.msra.mxu0 0.0
  %1131 = vmatpush.msra.mxu0 0.0
  %1132 = vmatpush.msra.mxu0 0.0
  %1133 = vmatpush.msra.mxu0 0.0
  %1134 = vmatpush.msra.mxu0 0.0
  %1135 = vmatpush.msra.mxu0 %v127
  %1136 = vmatpush.msra.mxu0 %v126
  %1137 = vmatpush.msra.mxu0 %v125
  %1138 = vmatpush.msra.mxu0 %v124
  %1139 = vmatmul.f32.gmra.mxu0 %v938
  %v1140 = vpop.f32.mrf.mxu0
  %v1141 = vadd.f32 %v1112, %v1140
  %1142 = vmatmul.f32.gmra.mxu0 %v941
  %v1143 = vpop.f32.mrf.mxu0
  %v1144 = vadd.f32 %v1115, %v1143
  %1145 = vmatmul.f32.gmra.mxu0 %v944
  %v1146 = vpop.f32.mrf.mxu0
  %v1147 = vadd.f32 %v1118, %v1146
  %1148 = vmatmul.f32.gmra.mxu0 %v947
  %v1149 = vpop.f32.mrf.mxu0
  %v1150 = vadd.f32 %v1121, %v1149
  %1151 = vdwg.mxu0
  %vm1152 = vcmp.ge.f32.partialorder %v1141, 0.0
  %vm1153 = vcmp.ge.f32.partialorder %v1144, 0.0
  %vm1154 = vcmp.ge.f32.partialorder %v1147, 0.0
  %vm1155 = vcmp.ge.f32.partialorder %v1150, 0.0
  %v1156 = vmul.f32 %v1141, %v385
  %v1157 = vmul.f32 %v1144, %v385
  %v1158 = vmul.f32 %v1147, %v385
  %v1159 = vmul.f32 %v1150, %v385
  %v1160 = vsel %vm1152, %v1141, %v1156
  %v1161 = vsel %vm1153, %v1144, %v1157
  %v1162 = vsel %vm1154, %v1147, %v1158
  %v1163 = vsel %vm1155, %v1150, %v1159
  %v1164 = vmax.f32 %v905, %v1160
  %v1165 = vmax.f32 %v906, %v1161
  %v1166 = vmax.f32 %v907, %v1162
  %v1167 = vmax.f32 %v908, %v1163
  %v1168 = vmax.f32 %v650, %v1164
  %v1169 = vmax.f32 %v651, %v1165
  %v1170 = vmax.f32 %v652, %v1166
  %v1171 = vmax.f32 %v653, %v1167
  %vm1172 = vcmask 523264
  %1173 = vst.msk [vmem:[%s7] sm:$0xff] %vm1172, %v1168
  %1174 = vst.msk [vmem:[%s7 + $0x8] sm:$0xff] %vm1172, %v1169
  %1175 = vst.msk [vmem:[%s7 + $0x10] sm:$0xff] %vm1172, %v1170
  %1176 = vst.msk [vmem:[%s7 + $0x18] sm:$0xff] %vm1172, %v1171
  // Predicated region
  $region30: #{embedding_net_l2_forward.4} parent=0 // pred_check
    _
  $region31: #{embedding_net_l2_forward.4} parent=0 // pred_check_branch
    %1178 = sbr.rel (0) target = $region33
  $region32: #{embedding_net_l2_forward.4} parent=0 // pred_region
    _
  $region33: #{embedding_net_l2_forward.4} parent=0 // pred_fallthru
    _
  // Predicated region
  $region34: #{embedding_net_l2_forward.4} parent=0 // pred_check
    _
  $region35: #{embedding_net_l2_forward.4} parent=0 // pred_check_branch
    %1180 = sbr.rel (0) target = $region37
  $region36: #{embedding_net_l2_forward.4} parent=0 // pred_region
    _
  $region37: #{embedding_net_l2_forward.4} parent=0 // pred_fallthru
    _

// kernel: embedding_net_l2_forward.5
$region0: #{embedding_net_l2_forward.5}
  #allocation0 [shape = 'u32[]', space=smem, size = 0x4, offset = 0x4, fixed_abs, tag = 'smem constant byte address 0x4 - core index']
  #allocation1 [shape = 'u32[72,128]{1,0:T(1,128)}', space=vmem, size = 0x9000, scoped, tag = 'internal scratch']
  #allocation2 [shape = 'f32[1,1]{1,0:T(1,128)S(1)}', space=vmem, size = 0x200, scoped, tag = 'scoped memory for embedding_net_l2_forward.5']
  #allocation3 [shape = 'f32[1,1]{1,0:T(1,128)S(1)}', space=vmem, size = 0x200, scoped, tag = 'scoped memory for embedding_net_l2_forward.5']
  %s0 = inlined_call_operand.vmem [shape: f32[2,1024], index: 0, kind: input, shape index: {}]
  %s1 = inlined_call_operand.vmem [shape: f32[1024,256], index: 1, kind: input, shape index: {}]
  %s2 = inlined_call_operand.vmem [shape: f32[1,256], index: 2, kind: input, shape index: {}]
  %s3 = inlined_call_operand.<no memory space> [shape: f32[1,1], index: 3, kind: input, shape index: {}]
  %s4 = inlined_call_operand.vmem [shape: f32[256,256], index: 4, kind: input, shape index: {}]
  %s5 = inlined_call_operand.vmem [shape: f32[1,256], index: 5, kind: input, shape index: {}]
  %s6 = inlined_call_operand.<no memory space> [shape: f32[1,1], index: 6, kind: input, shape index: {}]
  %s7 = inlined_call_operand.vmem [shape: f32[256,2], index: 7, kind: input, shape index: {}]
  %s8 = inlined_call_operand.vmem [shape: f32[1,2], index: 8, kind: input, shape index: {}]
  %s9 = inlined_call_operand.hbm [shape: f32[2,2], index: 9, kind: output, shape index: {}]
  %s10 = sld [smem:[#allocation0]]
  $region46: #{embedding_net_l2_forward.5} parent=0
    _
  %s12 = ssub.s32 1, %s10
  %s13 = scalar_select 0, %s12, %s10
  %v14 = vstv %s3
  %15 = vst [vmem:[#allocation2] sm:$0x1] %v14
  %v16 = vstv %s6
  %17 = vst [vmem:[#allocation3] sm:$0x1] %v16
  $region1: #{embedding_net_l2_forward.5} parent=0
    #allocation4 [shape = 'u8[1024]{0}', space=vmem, size = 0x400, scoped, tag = 'output window, operand 0, single buffered']
    #allocation5 [shape = 's32[1]{0}', space=sflag, size = 0x4, scoped, tag = 'scoped memory for embedding_net_l2_forward.5']
    %18 = vsyncpa [#allocation5], 0
    // Predicated region
    $region2: #{embedding_net_l2_forward.5} parent=1 // pred_check
      _
    $region3: #{embedding_net_l2_forward.5} parent=1 // pred_check_branch
      %20 = sbr.rel (0) target = $region5
    $region4: #{embedding_net_l2_forward.5} parent=1 // pred_region
      _
    $region5: #{embedding_net_l2_forward.5} parent=1 // pred_fallthru
      _
    // Predicated region
    $region6: #{embedding_net_l2_forward.5} parent=1 // pred_check
      _
    $region7: #{embedding_net_l2_forward.5} parent=1 // pred_check_branch
      %22 = sbr.rel (0) target = $region9
    $region8: #{embedding_net_l2_forward.5} parent=1 // pred_region
      _
    $region9: #{embedding_net_l2_forward.5} parent=1 // pred_fallthru
      _
    // Predicated region
    $region10: #{embedding_net_l2_forward.5} parent=1 // pred_check
      _
    $region11: #{embedding_net_l2_forward.5} parent=1 // pred_check_branch
      %24 = sbr.rel (0) target = $region13
    $region12: #{embedding_net_l2_forward.5} parent=1 // pred_region
      _
    $region13: #{embedding_net_l2_forward.5} parent=1 // pred_fallthru
      _
    // Predicated region
    $region14: #{embedding_net_l2_forward.5} parent=1 // pred_check
      _
    $region15: #{embedding_net_l2_forward.5} parent=1 // pred_check_branch
      %26 = sbr.rel (0) target = $region17
    $region16: #{embedding_net_l2_forward.5} parent=1 // pred_region
      _
    $region17: #{embedding_net_l2_forward.5} parent=1 // pred_fallthru
      _
    // Predicated region
    $region18: #{embedding_net_l2_forward.5} parent=1 // pred_check
      _
    $region19: #{embedding_net_l2_forward.5} parent=1 // pred_check_branch
      %28 = sbr.rel (0) target = $region21
    $region20: #{embedding_net_l2_forward.5} parent=1 // pred_region
      _
    $region21: #{embedding_net_l2_forward.5} parent=1 // pred_fallthru
      _
    // Predicated region
    $region22: #{embedding_net_l2_forward.5} parent=1 // pred_check
      _
    $region23: #{embedding_net_l2_forward.5} parent=1 // pred_check_branch
      %30 = sbr.rel (0) target = $region25
    $region24: #{embedding_net_l2_forward.5} parent=1 // pred_region
      _
    $region25: #{embedding_net_l2_forward.5} parent=1 // pred_fallthru
      _
    // Predicated region
    $region26: #{embedding_net_l2_forward.5} parent=1 // pred_check
      _
    $region27: #{embedding_net_l2_forward.5} parent=1 // pred_check_branch
      %32 = sbr.rel (0) target = $region29
    $region28: #{embedding_net_l2_forward.5} parent=1 // pred_region
      _
    $region29: #{embedding_net_l2_forward.5} parent=1 // pred_fallthru
      _
    // Predicated region
    $region30: #{embedding_net_l2_forward.5} parent=1 // pred_check
      _
    $region31: #{embedding_net_l2_forward.5} parent=1 // pred_check_branch
      %34 = sbr.rel (0) target = $region33
    $region32: #{embedding_net_l2_forward.5} parent=1 // pred_region
      _
    $region33: #{embedding_net_l2_forward.5} parent=1 // pred_fallthru
      _
    // Predicated region
    $region34: #{embedding_net_l2_forward.5} parent=1 // pred_check
      _
    $region35: #{embedding_net_l2_forward.5} parent=1 // pred_check_branch
      %36 = sbr.rel (0) target = $region37
    $region36: #{embedding_net_l2_forward.5} parent=1 // pred_region
      _
    $region37: #{embedding_net_l2_forward.5} parent=1 // pred_fallthru
      _
    %v37 = vld [vmem:[%s0] sm:$0xff]
    %v38 = vld [vmem:[%s0 + $0x8] sm:$0xff]
    %v39 = vld [vmem:[%s1] sm:$0xff]
    %v40 = vld [vmem:[%s1 + $0x8] sm:$0xff]
    %v41 = vld [vmem:[%s1 + $0x10] sm:$0xff]
    %v42 = vld [vmem:[%s1 + $0x18] sm:$0xff]
    %v43 = vld [vmem:[%s1 + $0x20] sm:$0xff]
    %v44 = vld [vmem:[%s1 + $0x28] sm:$0xff]
    %v45 = vld [vmem:[%s1 + $0x30] sm:$0xff]
    %v46 = vld [vmem:[%s1 + $0x38] sm:$0xff]
    %v47 = vld [vmem:[%s1 + $0x40] sm:$0xff]
    %v48 = vld [vmem:[%s1 + $0x48] sm:$0xff]
    %v49 = vld [vmem:[%s1 + $0x50] sm:$0xff]
    %v50 = vld [vmem:[%s1 + $0x58] sm:$0xff]
    %v51 = vld [vmem:[%s1 + $0x60] sm:$0xff]
    %v52 = vld [vmem:[%s1 + $0x68] sm:$0xff]
    %v53 = vld [vmem:[%s1 + $0x70] sm:$0xff]
    %v54 = vld [vmem:[%s1 + $0x78] sm:$0xff]
    %v55 = vld [vmem:[%s1 + $0x80] sm:$0xff]
    %v56 = vld [vmem:[%s1 + $0x88] sm:$0xff]
    %v57 = vld [vmem:[%s1 + $0x90] sm:$0xff]
    %v58 = vld [vmem:[%s1 + $0x98] sm:$0xff]
    %v59 = vld [vmem:[%s1 + $0xa0] sm:$0xff]
    %v60 = vld [vmem:[%s1 + $0xa8] sm:$0xff]
    %v61 = vld [vmem:[%s1 + $0xb0] sm:$0xff]
    %v62 = vld [vmem:[%s1 + $0xb8] sm:$0xff]
    %v63 = vld [vmem:[%s1 + $0xc0] sm:$0xff]
    %v64 = vld [vmem:[%s1 + $0xc8] sm:$0xff]
    %v65 = vld [vmem:[%s1 + $0xd0] sm:$0xff]
    %v66 = vld [vmem:[%s1 + $0xd8] sm:$0xff]
    %v67 = vld [vmem:[%s1 + $0xe0] sm:$0xff]
    %v68 = vld [vmem:[%s1 + $0xe8] sm:$0xff]
    %v69 = vld [vmem:[%s1 + $0xf0] sm:$0xff]
    %v70 = vld [vmem:[%s1 + $0xf8] sm:$0xff]
    %v71 = vld [vmem:[%s1 + $0x100] sm:$0xff]
    %v72 = vld [vmem:[%s1 + $0x108] sm:$0xff]
    %v73 = vld [vmem:[%s1 + $0x110] sm:$0xff]
    %v74 = vld [vmem:[%s1 + $0x118] sm:$0xff]
    %v75 = vld [vmem:[%s1 + $0x120] sm:$0xff]
    %v76 = vld [vmem:[%s1 + $0x128] sm:$0xff]
    %v77 = vld [vmem:[%s1 + $0x130] sm:$0xff]
    %v78 = vld [vmem:[%s1 + $0x138] sm:$0xff]
    %v79 = vld [vmem:[%s1 + $0x140] sm:$0xff]
    %v80 = vld [vmem:[%s1 + $0x148] sm:$0xff]
    %v81 = vld [vmem:[%s1 + $0x150] sm:$0xff]
    %v82 = vld [vmem:[%s1 + $0x158] sm:$0xff]
    %v83 = vld [vmem:[%s1 + $0x160] sm:$0xff]
    %v84 = vld [vmem:[%s1 + $0x168] sm:$0xff]
    %v85 = vld [vmem:[%s1 + $0x170] sm:$0xff]
    %v86 = vld [vmem:[%s1 + $0x178] sm:$0xff]
    %v87 = vld [vmem:[%s1 + $0x180] sm:$0xff]
    %v88 = vld [vmem:[%s1 + $0x188] sm:$0xff]
    %v89 = vld [vmem:[%s1 + $0x190] sm:$0xff]
    %v90 = vld [vmem:[%s1 + $0x198] sm:$0xff]
    %v91 = vld [vmem:[%s1 + $0x1a0] sm:$0xff]
    %v92 = vld [vmem:[%s1 + $0x1a8] sm:$0xff]
    %v93 = vld [vmem:[%s1 + $0x1b0] sm:$0xff]
    %v94 = vld [vmem:[%s1 + $0x1b8] sm:$0xff]
    %v95 = vld [vmem:[%s1 + $0x1c0] sm:$0xff]
    %v96 = vld [vmem:[%s1 + $0x1c8] sm:$0xff]
    %v97 = vld [vmem:[%s1 + $0x1d0] sm:$0xff]
    %v98 = vld [vmem:[%s1 + $0x1d8] sm:$0xff]
    %v99 = vld [vmem:[%s1 + $0x1e0] sm:$0xff]
    %v100 = vld [vmem:[%s1 + $0x1e8] sm:$0xff]
    %v101 = vld [vmem:[%s1 + $0x1f0] sm:$0xff]
    %v102 = vld [vmem:[%s1 + $0x1f8] sm:$0xff]
    %v103 = vld [vmem:[%s1 + $0x200] sm:$0xff]
    %v104 = vld [vmem:[%s1 + $0x208] sm:$0xff]
    %v105 = vld [vmem:[%s1 + $0x210] sm:$0xff]
    %v106 = vld [vmem:[%s1 + $0x218] sm:$0xff]
    %v107 = vld [vmem:[%s1 + $0x220] sm:$0xff]
    %v108 = vld [vmem:[%s1 + $0x228] sm:$0xff]
    %v109 = vld [vmem:[%s1 + $0x230] sm:$0xff]
    %v110 = vld [vmem:[%s1 + $0x238] sm:$0xff]
    %v111 = vld [vmem:[%s1 + $0x240] sm:$0xff]
    %v112 = vld [vmem:[%s1 + $0x248] sm:$0xff]
    %v113 = vld [vmem:[%s1 + $0x250] sm:$0xff]
    %v114 = vld [vmem:[%s1 + $0x258] sm:$0xff]
    %v115 = vld [vmem:[%s1 + $0x260] sm:$0xff]
    %v116 = vld [vmem:[%s1 + $0x268] sm:$0xff]
    %v117 = vld [vmem:[%s1 + $0x270] sm:$0xff]
    %v118 = vld [vmem:[%s1 + $0x278] sm:$0xff]
    %v119 = vld [vmem:[%s1 + $0x280] sm:$0xff]
    %v120 = vld [vmem:[%s1 + $0x288] sm:$0xff]
    %v121 = vld [vmem:[%s1 + $0x290] sm:$0xff]
    %v122 = vld [vmem:[%s1 + $0x298] sm:$0xff]
    %v123 = vld [vmem:[%s1 + $0x2a0] sm:$0xff]
    %v124 = vld [vmem:[%s1 + $0x2a8] sm:$0xff]
    %v125 = vld [vmem:[%s1 + $0x2b0] sm:$0xff]
    %v126 = vld [vmem:[%s1 + $0x2b8] sm:$0xff]
    %v127 = vld [vmem:[%s1 + $0x2c0] sm:$0xff]
    %v128 = vld [vmem:[%s1 + $0x2c8] sm:$0xff]
    %v129 = vld [vmem:[%s1 + $0x2d0] sm:$0xff]
    %v130 = vld [vmem:[%s1 + $0x2d8] sm:$0xff]
    %v131 = vld [vmem:[%s1 + $0x2e0] sm:$0xff]
    %v132 = vld [vmem:[%s1 + $0x2e8] sm:$0xff]
    %v133 = vld [vmem:[%s1 + $0x2f0] sm:$0xff]
    %v134 = vld [vmem:[%s1 + $0x2f8] sm:$0xff]
    %v135 = vld [vmem:[%s1 + $0x300] sm:$0xff]
    %v136 = vld [vmem:[%s1 + $0x308] sm:$0xff]
    %v137 = vld [vmem:[%s1 + $0x310] sm:$0xff]
    %v138 = vld [vmem:[%s1 + $0x318] sm:$0xff]
    %v139 = vld [vmem:[%s1 + $0x320] sm:$0xff]
    %v140 = vld [vmem:[%s1 + $0x328] sm:$0xff]
    %v141 = vld [vmem:[%s1 + $0x330] sm:$0xff]
    %v142 = vld [vmem:[%s1 + $0x338] sm:$0xff]
    %v143 = vld [vmem:[%s1 + $0x340] sm:$0xff]
    %v144 = vld [vmem:[%s1 + $0x348] sm:$0xff]
    %v145 = vld [vmem:[%s1 + $0x350] sm:$0xff]
    %v146 = vld [vmem:[%s1 + $0x358] sm:$0xff]
    %v147 = vld [vmem:[%s1 + $0x360] sm:$0xff]
    %v148 = vld [vmem:[%s1 + $0x368] sm:$0xff]
    %v149 = vld [vmem:[%s1 + $0x370] sm:$0xff]
    %v150 = vld [vmem:[%s1 + $0x378] sm:$0xff]
    %v151 = vld [vmem:[%s1 + $0x380] sm:$0xff]
    %v152 = vld [vmem:[%s1 + $0x388] sm:$0xff]
    %v153 = vld [vmem:[%s1 + $0x390] sm:$0xff]
    %v154 = vld [vmem:[%s1 + $0x398] sm:$0xff]
    %v155 = vld [vmem:[%s1 + $0x3a0] sm:$0xff]
    %v156 = vld [vmem:[%s1 + $0x3a8] sm:$0xff]
    %v157 = vld [vmem:[%s1 + $0x3b0] sm:$0xff]
    %v158 = vld [vmem:[%s1 + $0x3b8] sm:$0xff]
    %v159 = vld [vmem:[%s1 + $0x3c0] sm:$0xff]
    %v160 = vld [vmem:[%s1 + $0x3c8] sm:$0xff]
    %v161 = vld [vmem:[%s1 + $0x3d0] sm:$0xff]
    %v162 = vld [vmem:[%s1 + $0x3d8] sm:$0xff]
    %v163 = vld [vmem:[%s1 + $0x3e0] sm:$0xff]
    %v164 = vld [vmem:[%s1 + $0x3e8] sm:$0xff]
    %v165 = vld [vmem:[%s1 + $0x3f0] sm:$0xff]
    %v166 = vld [vmem:[%s1 + $0x3f8] sm:$0xff]
    %v167 = vld [vmem:[%s1 + $0x400] sm:$0xff]
    %v168 = vld [vmem:[%s1 + $0x408] sm:$0xff]
    %v169 = vld [vmem:[%s1 + $0x410] sm:$0xff]
    %v170 = vld [vmem:[%s1 + $0x418] sm:$0xff]
    %v171 = vld [vmem:[%s1 + $0x420] sm:$0xff]
    %v172 = vld [vmem:[%s1 + $0x428] sm:$0xff]
    %v173 = vld [vmem:[%s1 + $0x430] sm:$0xff]
    %v174 = vld [vmem:[%s1 + $0x438] sm:$0xff]
    %v175 = vld [vmem:[%s1 + $0x440] sm:$0xff]
    %v176 = vld [vmem:[%s1 + $0x448] sm:$0xff]
    %v177 = vld [vmem:[%s1 + $0x450] sm:$0xff]
    %v178 = vld [vmem:[%s1 + $0x458] sm:$0xff]
    %v179 = vld [vmem:[%s1 + $0x460] sm:$0xff]
    %v180 = vld [vmem:[%s1 + $0x468] sm:$0xff]
    %v181 = vld [vmem:[%s1 + $0x470] sm:$0xff]
    %v182 = vld [vmem:[%s1 + $0x478] sm:$0xff]
    %v183 = vld [vmem:[%s1 + $0x480] sm:$0xff]
    %v184 = vld [vmem:[%s1 + $0x488] sm:$0xff]
    %v185 = vld [vmem:[%s1 + $0x490] sm:$0xff]
    %v186 = vld [vmem:[%s1 + $0x498] sm:$0xff]
    %v187 = vld [vmem:[%s1 + $0x4a0] sm:$0xff]
    %v188 = vld [vmem:[%s1 + $0x4a8] sm:$0xff]
    %v189 = vld [vmem:[%s1 + $0x4b0] sm:$0xff]
    %v190 = vld [vmem:[%s1 + $0x4b8] sm:$0xff]
    %v191 = vld [vmem:[%s1 + $0x4c0] sm:$0xff]
    %v192 = vld [vmem:[%s1 + $0x4c8] sm:$0xff]
    %v193 = vld [vmem:[%s1 + $0x4d0] sm:$0xff]
    %v194 = vld [vmem:[%s1 + $0x4d8] sm:$0xff]
    %v195 = vld [vmem:[%s1 + $0x4e0] sm:$0xff]
    %v196 = vld [vmem:[%s1 + $0x4e8] sm:$0xff]
    %v197 = vld [vmem:[%s1 + $0x4f0] sm:$0xff]
    %v198 = vld [vmem:[%s1 + $0x4f8] sm:$0xff]
    %v199 = vld [vmem:[%s1 + $0x500] sm:$0xff]
    %v200 = vld [vmem:[%s1 + $0x508] sm:$0xff]
    %v201 = vld [vmem:[%s1 + $0x510] sm:$0xff]
    %v202 = vld [vmem:[%s1 + $0x518] sm:$0xff]
    %v203 = vld [vmem:[%s1 + $0x520] sm:$0xff]
    %v204 = vld [vmem:[%s1 + $0x528] sm:$0xff]
    %v205 = vld [vmem:[%s1 + $0x530] sm:$0xff]
    %v206 = vld [vmem:[%s1 + $0x538] sm:$0xff]
    %v207 = vld [vmem:[%s1 + $0x540] sm:$0xff]
    %v208 = vld [vmem:[%s1 + $0x548] sm:$0xff]
    %v209 = vld [vmem:[%s1 + $0x550] sm:$0xff]
    %v210 = vld [vmem:[%s1 + $0x558] sm:$0xff]
    %v211 = vld [vmem:[%s1 + $0x560] sm:$0xff]
    %v212 = vld [vmem:[%s1 + $0x568] sm:$0xff]
    %v213 = vld [vmem:[%s1 + $0x570] sm:$0xff]
    %v214 = vld [vmem:[%s1 + $0x578] sm:$0xff]
    %v215 = vld [vmem:[%s1 + $0x580] sm:$0xff]
    %v216 = vld [vmem:[%s1 + $0x588] sm:$0xff]
    %v217 = vld [vmem:[%s1 + $0x590] sm:$0xff]
    %v218 = vld [vmem:[%s1 + $0x598] sm:$0xff]
    %v219 = vld [vmem:[%s1 + $0x5a0] sm:$0xff]
    %v220 = vld [vmem:[%s1 + $0x5a8] sm:$0xff]
    %v221 = vld [vmem:[%s1 + $0x5b0] sm:$0xff]
    %v222 = vld [vmem:[%s1 + $0x5b8] sm:$0xff]
    %v223 = vld [vmem:[%s1 + $0x5c0] sm:$0xff]
    %v224 = vld [vmem:[%s1 + $0x5c8] sm:$0xff]
    %v225 = vld [vmem:[%s1 + $0x5d0] sm:$0xff]
    %v226 = vld [vmem:[%s1 + $0x5d8] sm:$0xff]
    %v227 = vld [vmem:[%s1 + $0x5e0] sm:$0xff]
    %v228 = vld [vmem:[%s1 + $0x5e8] sm:$0xff]
    %v229 = vld [vmem:[%s1 + $0x5f0] sm:$0xff]
    %v230 = vld [vmem:[%s1 + $0x5f8] sm:$0xff]
    %v231 = vld [vmem:[%s1 + $0x600] sm:$0xff]
    %v232 = vld [vmem:[%s1 + $0x608] sm:$0xff]
    %v233 = vld [vmem:[%s1 + $0x610] sm:$0xff]
    %v234 = vld [vmem:[%s1 + $0x618] sm:$0xff]
    %v235 = vld [vmem:[%s1 + $0x620] sm:$0xff]
    %v236 = vld [vmem:[%s1 + $0x628] sm:$0xff]
    %v237 = vld [vmem:[%s1 + $0x630] sm:$0xff]
    %v238 = vld [vmem:[%s1 + $0x638] sm:$0xff]
    %v239 = vld [vmem:[%s1 + $0x640] sm:$0xff]
    %v240 = vld [vmem:[%s1 + $0x648] sm:$0xff]
    %v241 = vld [vmem:[%s1 + $0x650] sm:$0xff]
    %v242 = vld [vmem:[%s1 + $0x658] sm:$0xff]
    %v243 = vld [vmem:[%s1 + $0x660] sm:$0xff]
    %v244 = vld [vmem:[%s1 + $0x668] sm:$0xff]
    %v245 = vld [vmem:[%s1 + $0x670] sm:$0xff]
    %v246 = vld [vmem:[%s1 + $0x678] sm:$0xff]
    %v247 = vld [vmem:[%s1 + $0x680] sm:$0xff]
    %v248 = vld [vmem:[%s1 + $0x688] sm:$0xff]
    %v249 = vld [vmem:[%s1 + $0x690] sm:$0xff]
    %v250 = vld [vmem:[%s1 + $0x698] sm:$0xff]
    %v251 = vld [vmem:[%s1 + $0x6a0] sm:$0xff]
    %v252 = vld [vmem:[%s1 + $0x6a8] sm:$0xff]
    %v253 = vld [vmem:[%s1 + $0x6b0] sm:$0xff]
    %v254 = vld [vmem:[%s1 + $0x6b8] sm:$0xff]
    %v255 = vld [vmem:[%s1 + $0x6c0] sm:$0xff]
    %v256 = vld [vmem:[%s1 + $0x6c8] sm:$0xff]
    %v257 = vld [vmem:[%s1 + $0x6d0] sm:$0xff]
    %v258 = vld [vmem:[%s1 + $0x6d8] sm:$0xff]
    %v259 = vld [vmem:[%s1 + $0x6e0] sm:$0xff]
    %v260 = vld [vmem:[%s1 + $0x6e8] sm:$0xff]
    %v261 = vld [vmem:[%s1 + $0x6f0] sm:$0xff]
    %v262 = vld [vmem:[%s1 + $0x6f8] sm:$0xff]
    %v263 = vld [vmem:[%s1 + $0x700] sm:$0xff]
    %v264 = vld [vmem:[%s1 + $0x708] sm:$0xff]
    %v265 = vld [vmem:[%s1 + $0x710] sm:$0xff]
    %v266 = vld [vmem:[%s1 + $0x718] sm:$0xff]
    %v267 = vld [vmem:[%s1 + $0x720] sm:$0xff]
    %v268 = vld [vmem:[%s1 + $0x728] sm:$0xff]
    %v269 = vld [vmem:[%s1 + $0x730] sm:$0xff]
    %v270 = vld [vmem:[%s1 + $0x738] sm:$0xff]
    %v271 = vld [vmem:[%s1 + $0x740] sm:$0xff]
    %v272 = vld [vmem:[%s1 + $0x748] sm:$0xff]
    %v273 = vld [vmem:[%s1 + $0x750] sm:$0xff]
    %v274 = vld [vmem:[%s1 + $0x758] sm:$0xff]
    %v275 = vld [vmem:[%s1 + $0x760] sm:$0xff]
    %v276 = vld [vmem:[%s1 + $0x768] sm:$0xff]
    %v277 = vld [vmem:[%s1 + $0x770] sm:$0xff]
    %v278 = vld [vmem:[%s1 + $0x778] sm:$0xff]
    %v279 = vld [vmem:[%s1 + $0x780] sm:$0xff]
    %v280 = vld [vmem:[%s1 + $0x788] sm:$0xff]
    %v281 = vld [vmem:[%s1 + $0x790] sm:$0xff]
    %v282 = vld [vmem:[%s1 + $0x798] sm:$0xff]
    %v283 = vld [vmem:[%s1 + $0x7a0] sm:$0xff]
    %v284 = vld [vmem:[%s1 + $0x7a8] sm:$0xff]
    %v285 = vld [vmem:[%s1 + $0x7b0] sm:$0xff]
    %v286 = vld [vmem:[%s1 + $0x7b8] sm:$0xff]
    %v287 = vld [vmem:[%s1 + $0x7c0] sm:$0xff]
    %v288 = vld [vmem:[%s1 + $0x7c8] sm:$0xff]
    %v289 = vld [vmem:[%s1 + $0x7d0] sm:$0xff]
    %v290 = vld [vmem:[%s1 + $0x7d8] sm:$0xff]
    %v291 = vld [vmem:[%s1 + $0x7e0] sm:$0xff]
    %v292 = vld [vmem:[%s1 + $0x7e8] sm:$0xff]
    %v293 = vld [vmem:[%s1 + $0x7f0] sm:$0xff]
    %v294 = vld [vmem:[%s1 + $0x7f8] sm:$0xff]
    %v295 = vld [vmem:[%s2] sm:$0x3]
    %v297 = vperm.slane %v295, 0
    %v298 = vperm.slane %v295, 1
    %303 = vst [vmem:[#allocation1] ss:$4 sm:$0xff] %v37
    %s304 = scalar_lea.vmem [#allocation1], 32
    %305 = vst [vmem:[%s304] ss:$4 sm:$0xff] %v38
    %v306 = vld.sshfl [vmem:[#allocation1] sm:$0xff pattern:$0x73625140]
    %v307 = vld.sshfl [vmem:[#allocation1 + $0x8] sm:$0xff pattern:$0x73625140]
    %v308 = vld.sshfl [vmem:[#allocation1 + $0x10] sm:$0xff pattern:$0x73625140]
    %v309 = vld.sshfl [vmem:[#allocation1 + $0x18] sm:$0xff pattern:$0x73625140]
    %v310 = vld.sshfl [vmem:[#allocation1 + $0x20] sm:$0xff pattern:$0x73625140]
    %v311 = vld.sshfl [vmem:[#allocation1 + $0x28] sm:$0xff pattern:$0x73625140]
    %v312 = vld.sshfl [vmem:[#allocation1 + $0x30] sm:$0xff pattern:$0x73625140]
    %v313 = vld.sshfl [vmem:[#allocation1 + $0x38] sm:$0xff pattern:$0x73625140]
    %322 = vmatpush.msra.mxu0 %v69
    %323 = vmatpush.msra.mxu0 %v67
    %324 = vmatpush.msra.mxu0 %v65
    %325 = vmatpush.msra.mxu0 %v63
    %326 = vmatpush.msra.mxu0 %v61
    %327 = vmatpush.msra.mxu0 %v59
    %328 = vmatpush.msra.mxu0 %v57
    %329 = vmatpush.msra.mxu0 %v55
    %330 = vmatpush.msra.mxu0 %v53
    %331 = vmatpush.msra.mxu0 %v51
    %332 = vmatpush.msra.mxu0 %v49
    %333 = vmatpush.msra.mxu0 %v47
    %334 = vmatpush.msra.mxu0 %v45
    %335 = vmatpush.msra.mxu0 %v43
    %336 = vmatpush.msra.mxu0 %v41
    %337 = vmatpush.msra.mxu0 %v39
    %338 = vmatmul.f32.gmra.mxu0 %v306
    %v339 = vpop.f32.mrf.mxu0
    %v340 = vadd.f32 %v297, %v339
    %341 = vdwg.mxu0
    %342 = vmatpush.msra.mxu0 %v101
    %343 = vmatpush.msra.mxu0 %v99
    %344 = vmatpush.msra.mxu0 %v97
    %345 = vmatpush.msra.mxu0 %v95
    %346 = vmatpush.msra.mxu0 %v93
    %347 = vmatpush.msra.mxu0 %v91
    %348 = vmatpush.msra.mxu0 %v89
    %349 = vmatpush.msra.mxu0 %v87
    %350 = vmatpush.msra.mxu0 %v85
    %351 = vmatpush.msra.mxu0 %v83
    %352 = vmatpush.msra.mxu0 %v81
    %353 = vmatpush.msra.mxu0 %v79
    %354 = vmatpush.msra.mxu0 %v77
    %355 = vmatpush.msra.mxu0 %v75
    %356 = vmatpush.msra.mxu0 %v73
    %357 = vmatpush.msra.mxu0 %v71
    %358 = vmatmul.f32.gmra.mxu0 %v307
    %v359 = vpop.f32.mrf.mxu0
    %v360 = vadd.f32 %v340, %v359
    %361 = vdwg.mxu0
    %362 = vmatpush.msra.mxu0 %v133
    %363 = vmatpush.msra.mxu0 %v131
    %364 = vmatpush.msra.mxu0 %v129
    %365 = vmatpush.msra.mxu0 %v127
    %366 = vmatpush.msra.mxu0 %v125
    %367 = vmatpush.msra.mxu0 %v123
    %368 = vmatpush.msra.mxu0 %v121
    %369 = vmatpush.msra.mxu0 %v119
    %370 = vmatpush.msra.mxu0 %v117
    %371 = vmatpush.msra.mxu0 %v115
    %372 = vmatpush.msra.mxu0 %v113
    %373 = vmatpush.msra.mxu0 %v111
    %374 = vmatpush.msra.mxu0 %v109
    %375 = vmatpush.msra.mxu0 %v107
    %376 = vmatpush.msra.mxu0 %v105
    %377 = vmatpush.msra.mxu0 %v103
    %378 = vmatmul.f32.gmra.mxu0 %v308
    %v379 = vpop.f32.mrf.mxu0
    %v380 = vadd.f32 %v360, %v379
    %381 = vdwg.mxu0
    %382 = vmatpush.msra.mxu0 %v165
    %383 = vmatpush.msra.mxu0 %v163
    %384 = vmatpush.msra.mxu0 %v161
    %385 = vmatpush.msra.mxu0 %v159
    %386 = vmatpush.msra.mxu0 %v157
    %387 = vmatpush.msra.mxu0 %v155
    %388 = vmatpush.msra.mxu0 %v153
    %389 = vmatpush.msra.mxu0 %v151
    %390 = vmatpush.msra.mxu0 %v149
    %391 = vmatpush.msra.mxu0 %v147
    %392 = vmatpush.msra.mxu0 %v145
    %393 = vmatpush.msra.mxu0 %v143
    %394 = vmatpush.msra.mxu0 %v141
    %395 = vmatpush.msra.mxu0 %v139
    %396 = vmatpush.msra.mxu0 %v137
    %397 = vmatpush.msra.mxu0 %v135
    %398 = vmatmul.f32.gmra.mxu0 %v309
    %v399 = vpop.f32.mrf.mxu0
    %v400 = vadd.f32 %v380, %v399
    %401 = vdwg.mxu0
    %402 = vmatpush.msra.mxu0 %v197
    %403 = vmatpush.msra.mxu0 %v195
    %404 = vmatpush.msra.mxu0 %v193
    %405 = vmatpush.msra.mxu0 %v191
    %406 = vmatpush.msra.mxu0 %v189
    %407 = vmatpush.msra.mxu0 %v187
    %408 = vmatpush.msra.mxu0 %v185
    %409 = vmatpush.msra.mxu0 %v183
    %410 = vmatpush.msra.mxu0 %v181
    %411 = vmatpush.msra.mxu0 %v179
    %412 = vmatpush.msra.mxu0 %v177
    %413 = vmatpush.msra.mxu0 %v175
    %414 = vmatpush.msra.mxu0 %v173
    %415 = vmatpush.msra.mxu0 %v171
    %416 = vmatpush.msra.mxu0 %v169
    %417 = vmatpush.msra.mxu0 %v167
    %418 = vmatmul.f32.gmra.mxu0 %v310
    %v419 = vpop.f32.mrf.mxu0
    %v420 = vadd.f32 %v400, %v419
    %421 = vdwg.mxu0
    %422 = vmatpush.msra.mxu0 %v229
    %423 = vmatpush.msra.mxu0 %v227
    %424 = vmatpush.msra.mxu0 %v225
    %425 = vmatpush.msra.mxu0 %v223
    %426 = vmatpush.msra.mxu0 %v221
    %427 = vmatpush.msra.mxu0 %v219
    %428 = vmatpush.msra.mxu0 %v217
    %429 = vmatpush.msra.mxu0 %v215
    %430 = vmatpush.msra.mxu0 %v213
    %431 = vmatpush.msra.mxu0 %v211
    %432 = vmatpush.msra.mxu0 %v209
    %433 = vmatpush.msra.mxu0 %v207
    %434 = vmatpush.msra.mxu0 %v205
    %435 = vmatpush.msra.mxu0 %v203
    %436 = vmatpush.msra.mxu0 %v201
    %437 = vmatpush.msra.mxu0 %v199
    %438 = vmatmul.f32.gmra.mxu0 %v311
    %v439 = vpop.f32.mrf.mxu0
    %v440 = vadd.f32 %v420, %v439
    %441 = vdwg.mxu0
    %442 = vmatpush.msra.mxu0 %v261
    %443 = vmatpush.msra.mxu0 %v259
    %444 = vmatpush.msra.mxu0 %v257
    %445 = vmatpush.msra.mxu0 %v255
    %446 = vmatpush.msra.mxu0 %v253
    %447 = vmatpush.msra.mxu0 %v251
    %448 = vmatpush.msra.mxu0 %v249
    %449 = vmatpush.msra.mxu0 %v247
    %450 = vmatpush.msra.mxu0 %v245
    %451 = vmatpush.msra.mxu0 %v243
    %452 = vmatpush.msra.mxu0 %v241
    %453 = vmatpush.msra.mxu0 %v239
    %454 = vmatpush.msra.mxu0 %v237
    %455 = vmatpush.msra.mxu0 %v235
    %456 = vmatpush.msra.mxu0 %v233
    %457 = vmatpush.msra.mxu0 %v231
    %458 = vmatmul.f32.gmra.mxu0 %v312
    %v459 = vpop.f32.mrf.mxu0
    %v460 = vadd.f32 %v440, %v459
    %461 = vdwg.mxu0
    %462 = vmatpush.msra.mxu0 %v293
    %463 = vmatpush.msra.mxu0 %v291
    %464 = vmatpush.msra.mxu0 %v289
    %465 = vmatpush.msra.mxu0 %v287
    %466 = vmatpush.msra.mxu0 %v285
    %467 = vmatpush.msra.mxu0 %v283
    %468 = vmatpush.msra.mxu0 %v281
    %469 = vmatpush.msra.mxu0 %v279
    %470 = vmatpush.msra.mxu0 %v277
    %471 = vmatpush.msra.mxu0 %v275
    %472 = vmatpush.msra.mxu0 %v273
    %473 = vmatpush.msra.mxu0 %v271
    %474 = vmatpush.msra.mxu0 %v269
    %475 = vmatpush.msra.mxu0 %v267
    %476 = vmatpush.msra.mxu0 %v265
    %477 = vmatpush.msra.mxu0 %v263
    %478 = vmatmul.f32.gmra.mxu0 %v313
    %v479 = vpop.f32.mrf.mxu0
    %v480 = vadd.f32 %v460, %v479
    %481 = vdwg.mxu0
    %482 = vmatpush.msra.mxu0 %v70
    %483 = vmatpush.msra.mxu0 %v68
    %484 = vmatpush.msra.mxu0 %v66
    %485 = vmatpush.msra.mxu0 %v64
    %486 = vmatpush.msra.mxu0 %v62
    %487 = vmatpush.msra.mxu0 %v60
    %488 = vmatpush.msra.mxu0 %v58
    %489 = vmatpush.msra.mxu0 %v56
    %490 = vmatpush.msra.mxu0 %v54
    %491 = vmatpush.msra.mxu0 %v52
    %492 = vmatpush.msra.mxu0 %v50
    %493 = vmatpush.msra.mxu0 %v48
    %494 = vmatpush.msra.mxu0 %v46
    %495 = vmatpush.msra.mxu0 %v44
    %496 = vmatpush.msra.mxu0 %v42
    %497 = vmatpush.msra.mxu0 %v40
    %498 = vmatmul.f32.gmra.mxu0 %v306
    %v499 = vpop.f32.mrf.mxu0
    %v500 = vadd.f32 %v298, %v499
    %501 = vdwg.mxu0
    %502 = vmatpush.msra.mxu0 %v102
    %503 = vmatpush.msra.mxu0 %v100
    %504 = vmatpush.msra.mxu0 %v98
    %505 = vmatpush.msra.mxu0 %v96
    %506 = vmatpush.msra.mxu0 %v94
    %507 = vmatpush.msra.mxu0 %v92
    %508 = vmatpush.msra.mxu0 %v90
    %509 = vmatpush.msra.mxu0 %v88
    %510 = vmatpush.msra.mxu0 %v86
    %511 = vmatpush.msra.mxu0 %v84
    %512 = vmatpush.msra.mxu0 %v82
    %513 = vmatpush.msra.mxu0 %v80
    %514 = vmatpush.msra.mxu0 %v78
    %515 = vmatpush.msra.mxu0 %v76
    %516 = vmatpush.msra.mxu0 %v74
    %517 = vmatpush.msra.mxu0 %v72
    %518 = vmatmul.f32.gmra.mxu0 %v307
    %v519 = vpop.f32.mrf.mxu0
    %v520 = vadd.f32 %v500, %v519
    %521 = vdwg.mxu0
    %522 = vmatpush.msra.mxu0 %v134
    %523 = vmatpush.msra.mxu0 %v132
    %524 = vmatpush.msra.mxu0 %v130
    %525 = vmatpush.msra.mxu0 %v128
    %526 = vmatpush.msra.mxu0 %v126
    %527 = vmatpush.msra.mxu0 %v124
    %528 = vmatpush.msra.mxu0 %v122
    %529 = vmatpush.msra.mxu0 %v120
    %530 = vmatpush.msra.mxu0 %v118
    %531 = vmatpush.msra.mxu0 %v116
    %532 = vmatpush.msra.mxu0 %v114
    %533 = vmatpush.msra.mxu0 %v112
    %534 = vmatpush.msra.mxu0 %v110
    %535 = vmatpush.msra.mxu0 %v108
    %536 = vmatpush.msra.mxu0 %v106
    %537 = vmatpush.msra.mxu0 %v104
    %538 = vmatmul.f32.gmra.mxu0 %v308
    %v539 = vpop.f32.mrf.mxu0
    %v540 = vadd.f32 %v520, %v539
    %541 = vdwg.mxu0
    %542 = vmatpush.msra.mxu0 %v166
    %543 = vmatpush.msra.mxu0 %v164
    %544 = vmatpush.msra.mxu0 %v162
    %545 = vmatpush.msra.mxu0 %v160
    %546 = vmatpush.msra.mxu0 %v158
    %547 = vmatpush.msra.mxu0 %v156
    %548 = vmatpush.msra.mxu0 %v154
    %549 = vmatpush.msra.mxu0 %v152
    %550 = vmatpush.msra.mxu0 %v150
    %551 = vmatpush.msra.mxu0 %v148
    %552 = vmatpush.msra.mxu0 %v146
    %553 = vmatpush.msra.mxu0 %v144
    %554 = vmatpush.msra.mxu0 %v142
    %555 = vmatpush.msra.mxu0 %v140
    %556 = vmatpush.msra.mxu0 %v138
    %557 = vmatpush.msra.mxu0 %v136
    %558 = vmatmul.f32.gmra.mxu0 %v309
    %v559 = vpop.f32.mrf.mxu0
    %v560 = vadd.f32 %v540, %v559
    %561 = vdwg.mxu0
    %562 = vmatpush.msra.mxu0 %v198
    %563 = vmatpush.msra.mxu0 %v196
    %564 = vmatpush.msra.mxu0 %v194
    %565 = vmatpush.msra.mxu0 %v192
    %566 = vmatpush.msra.mxu0 %v190
    %567 = vmatpush.msra.mxu0 %v188
    %568 = vmatpush.msra.mxu0 %v186
    %569 = vmatpush.msra.mxu0 %v184
    %570 = vmatpush.msra.mxu0 %v182
    %571 = vmatpush.msra.mxu0 %v180
    %572 = vmatpush.msra.mxu0 %v178
    %573 = vmatpush.msra.mxu0 %v176
    %574 = vmatpush.msra.mxu0 %v174
    %575 = vmatpush.msra.mxu0 %v172
    %576 = vmatpush.msra.mxu0 %v170
    %577 = vmatpush.msra.mxu0 %v168
    %578 = vmatmul.f32.gmra.mxu0 %v310
    %v579 = vpop.f32.mrf.mxu0
    %v580 = vadd.f32 %v560, %v579
    %581 = vdwg.mxu0
    %582 = vmatpush.msra.mxu0 %v230
    %583 = vmatpush.msra.mxu0 %v228
    %584 = vmatpush.msra.mxu0 %v226
    %585 = vmatpush.msra.mxu0 %v224
    %586 = vmatpush.msra.mxu0 %v222
    %587 = vmatpush.msra.mxu0 %v220
    %588 = vmatpush.msra.mxu0 %v218
    %589 = vmatpush.msra.mxu0 %v216
    %590 = vmatpush.msra.mxu0 %v214
    %591 = vmatpush.msra.mxu0 %v212
    %592 = vmatpush.msra.mxu0 %v210
    %593 = vmatpush.msra.mxu0 %v208
    %594 = vmatpush.msra.mxu0 %v206
    %595 = vmatpush.msra.mxu0 %v204
    %596 = vmatpush.msra.mxu0 %v202
    %597 = vmatpush.msra.mxu0 %v200
    %598 = vmatmul.f32.gmra.mxu0 %v311
    %v599 = vpop.f32.mrf.mxu0
    %v600 = vadd.f32 %v580, %v599
    %601 = vdwg.mxu0
    %602 = vmatpush.msra.mxu0 %v262
    %603 = vmatpush.msra.mxu0 %v260
    %604 = vmatpush.msra.mxu0 %v258
    %605 = vmatpush.msra.mxu0 %v256
    %606 = vmatpush.msra.mxu0 %v254
    %607 = vmatpush.msra.mxu0 %v252
    %608 = vmatpush.msra.mxu0 %v250
    %609 = vmatpush.msra.mxu0 %v248
    %610 = vmatpush.msra.mxu0 %v246
    %611 = vmatpush.msra.mxu0 %v244
    %612 = vmatpush.msra.mxu0 %v242
    %613 = vmatpush.msra.mxu0 %v240
    %614 = vmatpush.msra.mxu0 %v238
    %615 = vmatpush.msra.mxu0 %v236
    %616 = vmatpush.msra.mxu0 %v234
    %617 = vmatpush.msra.mxu0 %v232
    %618 = vmatmul.f32.gmra.mxu0 %v312
    %v619 = vpop.f32.mrf.mxu0
    %v620 = vadd.f32 %v600, %v619
    %621 = vdwg.mxu0
    %622 = vmatpush.msra.mxu0 %v294
    %623 = vmatpush.msra.mxu0 %v292
    %624 = vmatpush.msra.mxu0 %v290
    %625 = vmatpush.msra.mxu0 %v288
    %626 = vmatpush.msra.mxu0 %v286
    %627 = vmatpush.msra.mxu0 %v284
    %628 = vmatpush.msra.mxu0 %v282
    %629 = vmatpush.msra.mxu0 %v280
    %630 = vmatpush.msra.mxu0 %v278
    %631 = vmatpush.msra.mxu0 %v276
    %632 = vmatpush.msra.mxu0 %v274
    %633 = vmatpush.msra.mxu0 %v272
    %634 = vmatpush.msra.mxu0 %v270
    %635 = vmatpush.msra.mxu0 %v268
    %636 = vmatpush.msra.mxu0 %v266
    %637 = vmatpush.msra.mxu0 %v264
    %638 = vmatmul.f32.gmra.mxu0 %v313
    %v639 = vpop.f32.mrf.mxu0
    %v640 = vadd.f32 %v620, %v639
    %641 = vdwg.mxu0
    %v642 = vld [vmem:[#allocation2] sm:$0x1]
    %vm643 = vcmp.ge.f32.partialorder %v480, 0.0
    %vm644 = vcmp.ge.f32.partialorder %v640, 0.0
    %v646 = vperm.slane %v642, 0
    %647 = vset.pattern.permute.xlu0 0
    %648 = vperm.xlu0 %647, %v646
    %v649 = vpop.permute.xlu0 %648
    %v651 = vmul.f32 %v480, %v649
    %v652 = vmul.f32 %v640, %v649
    %v653 = vsel %vm643, %v480, %v651
    %v654 = vsel %vm644, %v640, %v652
    %v655 = vld [vmem:[%s4] sm:$0xff]
    %v656 = vld [vmem:[%s4 + $0x8] sm:$0xff]
    %v657 = vld [vmem:[%s4 + $0x10] sm:$0xff]
    %v658 = vld [vmem:[%s4 + $0x18] sm:$0xff]
    %v659 = vld [vmem:[%s4 + $0x20] sm:$0xff]
    %v660 = vld [vmem:[%s4 + $0x28] sm:$0xff]
    %v661 = vld [vmem:[%s4 + $0x30] sm:$0xff]
    %v662 = vld [vmem:[%s4 + $0x38] sm:$0xff]
    %v663 = vld [vmem:[%s4 + $0x40] sm:$0xff]
    %v664 = vld [vmem:[%s4 + $0x48] sm:$0xff]
    %v665 = vld [vmem:[%s4 + $0x50] sm:$0xff]
    %v666 = vld [vmem:[%s4 + $0x58] sm:$0xff]
    %v667 = vld [vmem:[%s4 + $0x60] sm:$0xff]
    %v668 = vld [vmem:[%s4 + $0x68] sm:$0xff]
    %v669 = vld [vmem:[%s4 + $0x70] sm:$0xff]
    %v670 = vld [vmem:[%s4 + $0x78] sm:$0xff]
    %v671 = vld [vmem:[%s4 + $0x80] sm:$0xff]
    %v672 = vld [vmem:[%s4 + $0x88] sm:$0xff]
    %v673 = vld [vmem:[%s4 + $0x90] sm:$0xff]
    %v674 = vld [vmem:[%s4 + $0x98] sm:$0xff]
    %v675 = vld [vmem:[%s4 + $0xa0] sm:$0xff]
    %v676 = vld [vmem:[%s4 + $0xa8] sm:$0xff]
    %v677 = vld [vmem:[%s4 + $0xb0] sm:$0xff]
    %v678 = vld [vmem:[%s4 + $0xb8] sm:$0xff]
    %v679 = vld [vmem:[%s4 + $0xc0] sm:$0xff]
    %v680 = vld [vmem:[%s4 + $0xc8] sm:$0xff]
    %v681 = vld [vmem:[%s4 + $0xd0] sm:$0xff]
    %v682 = vld [vmem:[%s4 + $0xd8] sm:$0xff]
    %v683 = vld [vmem:[%s4 + $0xe0] sm:$0xff]
    %v684 = vld [vmem:[%s4 + $0xe8] sm:$0xff]
    %v685 = vld [vmem:[%s4 + $0xf0] sm:$0xff]
    %v686 = vld [vmem:[%s4 + $0xf8] sm:$0xff]
    %v687 = vld [vmem:[%s4 + $0x100] sm:$0xff]
    %v688 = vld [vmem:[%s4 + $0x108] sm:$0xff]
    %v689 = vld [vmem:[%s4 + $0x110] sm:$0xff]
    %v690 = vld [vmem:[%s4 + $0x118] sm:$0xff]
    %v691 = vld [vmem:[%s4 + $0x120] sm:$0xff]
    %v692 = vld [vmem:[%s4 + $0x128] sm:$0xff]
    %v693 = vld [vmem:[%s4 + $0x130] sm:$0xff]
    %v694 = vld [vmem:[%s4 + $0x138] sm:$0xff]
    %v695 = vld [vmem:[%s4 + $0x140] sm:$0xff]
    %v696 = vld [vmem:[%s4 + $0x148] sm:$0xff]
    %v697 = vld [vmem:[%s4 + $0x150] sm:$0xff]
    %v698 = vld [vmem:[%s4 + $0x158] sm:$0xff]
    %v699 = vld [vmem:[%s4 + $0x160] sm:$0xff]
    %v700 = vld [vmem:[%s4 + $0x168] sm:$0xff]
    %v701 = vld [vmem:[%s4 + $0x170] sm:$0xff]
    %v702 = vld [vmem:[%s4 + $0x178] sm:$0xff]
    %v703 = vld [vmem:[%s4 + $0x180] sm:$0xff]
    %v704 = vld [vmem:[%s4 + $0x188] sm:$0xff]
    %v705 = vld [vmem:[%s4 + $0x190] sm:$0xff]
    %v706 = vld [vmem:[%s4 + $0x198] sm:$0xff]
    %v707 = vld [vmem:[%s4 + $0x1a0] sm:$0xff]
    %v708 = vld [vmem:[%s4 + $0x1a8] sm:$0xff]
    %v709 = vld [vmem:[%s4 + $0x1b0] sm:$0xff]
    %v710 = vld [vmem:[%s4 + $0x1b8] sm:$0xff]
    %v711 = vld [vmem:[%s4 + $0x1c0] sm:$0xff]
    %v712 = vld [vmem:[%s4 + $0x1c8] sm:$0xff]
    %v713 = vld [vmem:[%s4 + $0x1d0] sm:$0xff]
    %v714 = vld [vmem:[%s4 + $0x1d8] sm:$0xff]
    %v715 = vld [vmem:[%s4 + $0x1e0] sm:$0xff]
    %v716 = vld [vmem:[%s4 + $0x1e8] sm:$0xff]
    %v717 = vld [vmem:[%s4 + $0x1f0] sm:$0xff]
    %v718 = vld [vmem:[%s4 + $0x1f8] sm:$0xff]
    %v719 = vld [vmem:[%s5] sm:$0x3]
    %v721 = vperm.slane %v719, 0
    %v722 = vperm.slane %v719, 1
    %725 = vmatpush.msra.mxu0 %v685
    %726 = vmatpush.msra.mxu0 %v683
    %727 = vmatpush.msra.mxu0 %v681
    %728 = vmatpush.msra.mxu0 %v679
    %729 = vmatpush.msra.mxu0 %v677
    %730 = vmatpush.msra.mxu0 %v675
    %731 = vmatpush.msra.mxu0 %v673
    %732 = vmatpush.msra.mxu0 %v671
    %733 = vmatpush.msra.mxu0 %v669
    %734 = vmatpush.msra.mxu0 %v667
    %735 = vmatpush.msra.mxu0 %v665
    %736 = vmatpush.msra.mxu0 %v663
    %737 = vmatpush.msra.mxu0 %v661
    %738 = vmatpush.msra.mxu0 %v659
    %739 = vmatpush.msra.mxu0 %v657
    %740 = vmatpush.msra.mxu0 %v655
    %741 = vmatmul.f32.gmra.mxu0 %v653
    %v742 = vpop.f32.mrf.mxu0
    %v743 = vadd.f32 %v721, %v742
    %744 = vdwg.mxu0
    %745 = vmatpush.msra.mxu0 %v717
    %746 = vmatpush.msra.mxu0 %v715
    %747 = vmatpush.msra.mxu0 %v713
    %748 = vmatpush.msra.mxu0 %v711
    %749 = vmatpush.msra.mxu0 %v709
    %750 = vmatpush.msra.mxu0 %v707
    %751 = vmatpush.msra.mxu0 %v705
    %752 = vmatpush.msra.mxu0 %v703
    %753 = vmatpush.msra.mxu0 %v701
    %754 = vmatpush.msra.mxu0 %v699
    %755 = vmatpush.msra.mxu0 %v697
    %756 = vmatpush.msra.mxu0 %v695
    %757 = vmatpush.msra.mxu0 %v693
    %758 = vmatpush.msra.mxu0 %v691
    %759 = vmatpush.msra.mxu0 %v689
    %760 = vmatpush.msra.mxu0 %v687
    %761 = vmatmul.f32.gmra.mxu0 %v654
    %v762 = vpop.f32.mrf.mxu0
    %v763 = vadd.f32 %v743, %v762
    %764 = vdwg.mxu0
    %765 = vmatpush.msra.mxu0 %v686
    %766 = vmatpush.msra.mxu0 %v684
    %767 = vmatpush.msra.mxu0 %v682
    %768 = vmatpush.msra.mxu0 %v680
    %769 = vmatpush.msra.mxu0 %v678
    %770 = vmatpush.msra.mxu0 %v676
    %771 = vmatpush.msra.mxu0 %v674
    %772 = vmatpush.msra.mxu0 %v672
    %773 = vmatpush.msra.mxu0 %v670
    %774 = vmatpush.msra.mxu0 %v668
    %775 = vmatpush.msra.mxu0 %v666
    %776 = vmatpush.msra.mxu0 %v664
    %777 = vmatpush.msra.mxu0 %v662
    %778 = vmatpush.msra.mxu0 %v660
    %779 = vmatpush.msra.mxu0 %v658
    %780 = vmatpush.msra.mxu0 %v656
    %781 = vmatmul.f32.gmra.mxu0 %v653
    %v782 = vpop.f32.mrf.mxu0
    %v783 = vadd.f32 %v722, %v782
    %784 = vdwg.mxu0
    %785 = vmatpush.msra.mxu0 %v718
    %786 = vmatpush.msra.mxu0 %v716
    %787 = vmatpush.msra.mxu0 %v714
    %788 = vmatpush.msra.mxu0 %v712
    %789 = vmatpush.msra.mxu0 %v710
    %790 = vmatpush.msra.mxu0 %v708
    %791 = vmatpush.msra.mxu0 %v706
    %792 = vmatpush.msra.mxu0 %v704
    %793 = vmatpush.msra.mxu0 %v702
    %794 = vmatpush.msra.mxu0 %v700
    %795 = vmatpush.msra.mxu0 %v698
    %796 = vmatpush.msra.mxu0 %v696
    %797 = vmatpush.msra.mxu0 %v694
    %798 = vmatpush.msra.mxu0 %v692
    %799 = vmatpush.msra.mxu0 %v690
    %800 = vmatpush.msra.mxu0 %v688
    %801 = vmatmul.f32.gmra.mxu0 %v654
    %v802 = vpop.f32.mrf.mxu0
    %v803 = vadd.f32 %v783, %v802
    %804 = vdwg.mxu0
    %v805 = vld [vmem:[#allocation3] sm:$0x1]
    %vm806 = vcmp.ge.f32.partialorder %v763, 0.0
    %vm807 = vcmp.ge.f32.partialorder %v803, 0.0
    %v809 = vperm.slane %v805, 0
    %810 = vset.pattern.permute.xlu0 0
    %811 = vperm.xlu0 %810, %v809
    %v812 = vpop.permute.xlu0 %811
    %v814 = vmul.f32 %v763, %v812
    %v815 = vmul.f32 %v803, %v812
    %v816 = vsel %vm806, %v763, %v814
    %v817 = vsel %vm807, %v803, %v815
    %v818 = vld [vmem:[%s7] sm:$0xff]
    %v819 = vld [vmem:[%s7 + $0x8] sm:$0xff]
    %v820 = vld [vmem:[%s7 + $0x10] sm:$0xff]
    %v821 = vld [vmem:[%s7 + $0x18] sm:$0xff]
    %v822 = vld [vmem:[%s7 + $0x20] sm:$0xff]
    %v823 = vld [vmem:[%s7 + $0x28] sm:$0xff]
    %v824 = vld [vmem:[%s7 + $0x30] sm:$0xff]
    %v825 = vld [vmem:[%s7 + $0x38] sm:$0xff]
    %v826 = vld [vmem:[%s7 + $0x40] sm:$0xff]
    %v827 = vld [vmem:[%s7 + $0x48] sm:$0xff]
    %v828 = vld [vmem:[%s7 + $0x50] sm:$0xff]
    %v829 = vld [vmem:[%s7 + $0x58] sm:$0xff]
    %v830 = vld [vmem:[%s7 + $0x60] sm:$0xff]
    %v831 = vld [vmem:[%s7 + $0x68] sm:$0xff]
    %v832 = vld [vmem:[%s7 + $0x70] sm:$0xff]
    %v833 = vld [vmem:[%s7 + $0x78] sm:$0xff]
    %v834 = vld [vmem:[%s7 + $0x80] sm:$0xff]
    %v835 = vld [vmem:[%s7 + $0x88] sm:$0xff]
    %v836 = vld [vmem:[%s7 + $0x90] sm:$0xff]
    %v837 = vld [vmem:[%s7 + $0x98] sm:$0xff]
    %v838 = vld [vmem:[%s7 + $0xa0] sm:$0xff]
    %v839 = vld [vmem:[%s7 + $0xa8] sm:$0xff]
    %v840 = vld [vmem:[%s7 + $0xb0] sm:$0xff]
    %v841 = vld [vmem:[%s7 + $0xb8] sm:$0xff]
    %v842 = vld [vmem:[%s7 + $0xc0] sm:$0xff]
    %v843 = vld [vmem:[%s7 + $0xc8] sm:$0xff]
    %v844 = vld [vmem:[%s7 + $0xd0] sm:$0xff]
    %v845 = vld [vmem:[%s7 + $0xd8] sm:$0xff]
    %v846 = vld [vmem:[%s7 + $0xe0] sm:$0xff]
    %v847 = vld [vmem:[%s7 + $0xe8] sm:$0xff]
    %v848 = vld [vmem:[%s7 + $0xf0] sm:$0xff]
    %v849 = vld [vmem:[%s7 + $0xf8] sm:$0xff]
    %v850 = vld [vmem:[%s8] sm:$0x1]
    %v852 = vperm.slane %v850, 0
    %854 = vmatpush.msra.mxu0 %v833
    %855 = vmatpush.msra.mxu0 %v832
    %856 = vmatpush.msra.mxu0 %v831
    %857 = vmatpush.msra.mxu0 %v830
    %858 = vmatpush.msra.mxu0 %v829
    %859 = vmatpush.msra.mxu0 %v828
    %860 = vmatpush.msra.mxu0 %v827
    %861 = vmatpush.msra.mxu0 %v826
    %862 = vmatpush.msra.mxu0 %v825
    %863 = vmatpush.msra.mxu0 %v824
    %864 = vmatpush.msra.mxu0 %v823
    %865 = vmatpush.msra.mxu0 %v822
    %866 = vmatpush.msra.mxu0 %v821
    %867 = vmatpush.msra.mxu0 %v820
    %868 = vmatpush.msra.mxu0 %v819
    %869 = vmatpush.msra.mxu0 %v818
    %870 = vmatmul.f32.gmra.mxu0 %v816
    %v871 = vpop.f32.mrf.mxu0
    %v872 = vadd.f32 %v852, %v871
    %873 = vdwg.mxu0
    %874 = vmatpush.msra.mxu0 %v849
    %875 = vmatpush.msra.mxu0 %v848
    %876 = vmatpush.msra.mxu0 %v847
    %877 = vmatpush.msra.mxu0 %v846
    %878 = vmatpush.msra.mxu0 %v845
    %879 = vmatpush.msra.mxu0 %v844
    %880 = vmatpush.msra.mxu0 %v843
    %881 = vmatpush.msra.mxu0 %v842
    %882 = vmatpush.msra.mxu0 %v841
    %883 = vmatpush.msra.mxu0 %v840
    %884 = vmatpush.msra.mxu0 %v839
    %885 = vmatpush.msra.mxu0 %v838
    %886 = vmatpush.msra.mxu0 %v837
    %887 = vmatpush.msra.mxu0 %v836
    %888 = vmatpush.msra.mxu0 %v835
    %889 = vmatpush.msra.mxu0 %v834
    %890 = vmatmul.f32.gmra.mxu0 %v817
    %v891 = vpop.f32.mrf.mxu0
    %v892 = vadd.f32 %v872, %v891
    %893 = vdwg.mxu0
    %v894 = vmul.f32 %v892, %v892
    %vm895 = vcmask 9216
    %v896 = vsel %vm895, %v894, 0.0
    %897 = vadd.xlane.f32.xlu0 %v896
    %v898 = vpop.xlane.xlu0 %897
    %v899 = vrsqrt.pop %v898
    %v900 = vmul.f32 %v899, %v898
    %v901 = vmul.f32 %v900, %v899
    %v902 = vmul.f32 0.5, %v901
    %v903 = vsub.f32 1.5, %v902
    %v904 = vmul.f32 %v899, %v903
    %v905 = vmul.f32 %v898, %v904
    %vm906 = vcmp.eq.f32.partialorder %v898, inf
    %v907 = vsel %vm906, %v898, %v905
    %vm908 = vcmp.eq.f32.partialorder %v898, 0.0
    %v909 = vand.u32 %v898, 2147483648
    %v910 = vsel %vm908, %v909, %v907
    %v911 = vrcp.pop %v910
    %v912 = vmul.f32 %v910, %v911
    %v913 = vsub.f32 1.0, %v912
    %v914 = vmul.f32 %v911, %v913
    %v915 = vadd.f32 %v911, %v914
    %vm916 = vweird.f32 %v910
    %vm917 = vweird.f32 %v911
    %vm918 = vmor %vm916, %vm917
    %v919 = vsel %vm918, %v911, %v915
    %v920 = vand.u32 2147483647, %v910
    %vm921 = vcmp.eq.f32.partialorder %v920, 8.507059e+37
    %v922 = vand.u32 %v910, 2147483648
    %v923 = vor.u32 1.1754944e-38, %v922
    %v924 = vsel %vm921, %v923, %v919
    %v925 = vmul.f32 %v892, %v924
    %926 = vst.msk [vmem:[#allocation4] sm:$0x3] %vm895, %v925
    // Predicated region
    $region38: #{embedding_net_l2_forward.5} parent=1 // pred_check
      _
    $region39: #{embedding_net_l2_forward.5} parent=1 // pred_check_branch
      %928 = sbr.rel (0) target = $region41
    $region40: #{embedding_net_l2_forward.5} parent=1 // pred_region
      %930 = vsyncadd [#allocation5], 0
      %s932 = sshll.u32 [#allocation4], 4
      %s933 = int_to_ptr.vmem [resolvable:$true] %s932
      %s934 = sshll.u32 %s9, 4
      %s935 = int_to_ptr.hbm [resolvable:$true] %s934
      %937 = dma.vmem_to_hbm [thread:$0]  %s933, 32, %s935, [#allocation5]
    $region41: #{embedding_net_l2_forward.5} parent=1 // pred_fallthru
      _
    // Predicated region
    $region42: #{embedding_net_l2_forward.5} parent=1 // pred_check
      _
    $region43: #{embedding_net_l2_forward.5} parent=1 // pred_check_branch
      %939 = sbr.rel (0) target = $region45
    $region44: #{embedding_net_l2_forward.5} parent=1 // pred_region
      %941 = dma.done [#allocation5], 32
    $region45: #{embedding_net_l2_forward.5} parent=1 // pred_fallthru
      _
    %942 = vsyncpa [#allocation5], 1

</llo_original>
